<compile_context>
chip_gen: v5e
topology: v5e:2x2
jax: 0.10.0
libtpu: 0.0.40
codegen_flags: <defaults>
</compile_context>

<pallas_src>
from itertools import chain, combinations

import jax
import jax.numpy as jnp
import numpy as np
from jax.experimental import pallas as pl
from jax.experimental.pallas import tpu as pltpu

# ----------------------------- configuration -----------------------------
B = 2                     # batch
T = 4                     # time steps
INPUT_DIMS = [8, 12, 16]  # per-modality feature dims
HIDDEN_DIMS = [16, 12, 8]
COMPRESSED_DIM = 8
DFG_INPUT_DIMS = [10, 12, 14]
DFG_OUT_DIM = 12
DFG_INIT_CELL_DIMS = [20, 20, 20]
PATTERN_CELL_DIM = 16     # efficacy_cell_dim == pattern_cell_dim in the module
EFFICACY_DIM = 24
MEMORY_DIM = 14
MEMORY_CELL_DIM = 18
GAMMA_CELL_DIMS = [18, 18]
FEEDBACK_CELL_DIM = 16
OUTPUT_CELL_DIM = 20
OUTPUT_DIM = 1
NMOD = len(INPUT_DIMS)

HSUM = sum(HIDDEN_DIMS)          # 36
XSUM = sum(INPUT_DIMS)           # 36
MSUM = sum(DFG_INPUT_DIMS)       # 36
LANES = 256                      # slab lane width (>= widest fused weight: 228)
S4P = 128 + HSUM                 # fused LSTHM pre-activation width (CH @ lane 128)

# ------------------------- DFG static structure ---------------------------
POWERSET = list(chain.from_iterable(
    combinations(range(NMOD), r) for r in range(NMOD + 1)))[1:]
MULTI_KEYS = POWERSET[NMOD:]     # [(0,1),(0,2),(1,2),(0,1,2)]
PAIR_KEYS = MULTI_KEYS[:NMOD]    # the three pairs


def small_power_set(key):
    return list(chain.from_iterable(
        combinations(key, r) for r in range(len(key) + 1)))[1:-1]


INPUT_SHAPES = {(i,): DFG_INPUT_DIMS[i] for i in range(NMOD)}
TOTAL_EFF = 0
for _key in MULTI_KEYS:
    _uni = sum(DFG_INPUT_DIMS[m] for m in _key)
    _multi = (2 ** len(_key) - 2 - len(_key)) * DFG_OUT_DIM
    TOTAL_EFF += 2 ** len(_key) - 2
    INPUT_SHAPES[_key] = _uni + _multi
TOTAL_EFF += 2 ** NMOD - 1
T_IN_DIM = sum(DFG_INPUT_DIMS) + (2 ** NMOD - NMOD - 1) * DFG_OUT_DIM


def comp_dim(k):
    return DFG_INPUT_DIMS[k[0]] if len(k) == 1 else DFG_OUT_DIM


# ---------------------- deterministic parameter init ----------------------
def _init_linear(key, fan_in, fan_out):
    kw, kb = jax.random.split(key)
    bound = 1.0 / np.sqrt(fan_in)
    w = jax.random.uniform(kw, (fan_in, fan_out), jnp.float32, -bound, bound)
    b = jax.random.uniform(kb, (1, fan_out), jnp.float32, -bound, bound)
    return {'w': w, 'b': b}


def init_params(key):
    keys = iter(jax.random.split(key, 64))
    nk = lambda: next(keys)
    P = {}
    P['lsthm'] = [{'W': _init_linear(nk(), INPUT_DIMS[i], 4 * HIDDEN_DIMS[i]),
                   'U': _init_linear(nk(), HIDDEN_DIMS[i], 4 * HIDDEN_DIMS[i]),
                   'V': _init_linear(nk(), COMPRESSED_DIM, 4 * HIDDEN_DIMS[i])}
                  for i in range(NMOD)]
    P['dfg_init'] = [{'l1': _init_linear(nk(), 2 * HIDDEN_DIMS[i], DFG_INIT_CELL_DIMS[i]),
                      'l2': _init_linear(nk(), DFG_INIT_CELL_DIMS[i], DFG_INPUT_DIMS[i])}
                     for i in range(NMOD)]
    dfg = {
        'eff_l0': _init_linear(nk(), sum(DFG_INPUT_DIMS), EFFICACY_DIM),
        'eff_net': {'l1': _init_linear(nk(), EFFICACY_DIM, PATTERN_CELL_DIM),
                    'l2': _init_linear(nk(), PATTERN_CELL_DIM, DFG_OUT_DIM)},
        'eff_out': _init_linear(nk(), DFG_OUT_DIM, TOTAL_EFF),
        'nets': [{'l0': _init_linear(nk(), INPUT_SHAPES[k_], EFFICACY_DIM),
                  'pat': {'l1': _init_linear(nk(), EFFICACY_DIM, PATTERN_CELL_DIM),
                          'l2': _init_linear(nk(), PATTERN_CELL_DIM, DFG_OUT_DIM)}}
                 for k_ in MULTI_KEYS],
        't_net': {'l0': _init_linear(nk(), T_IN_DIM, EFFICACY_DIM),
                  'pat': {'l1': _init_linear(nk(), EFFICACY_DIM, PATTERN_CELL_DIM),
                          'l2': _init_linear(nk(), PATTERN_CELL_DIM, DFG_OUT_DIM)}},
    }
    P['dfg'] = dfg
    P['fc_gamma'] = [{'l1': _init_linear(nk(), DFG_OUT_DIM, GAMMA_CELL_DIMS[j]),
                      'l2': _init_linear(nk(), GAMMA_CELL_DIMS[j], MEMORY_DIM)}
                     for j in range(2)]
    P['fc_memory'] = {'l1': _init_linear(nk(), DFG_OUT_DIM, MEMORY_CELL_DIM),
                      'l2': _init_linear(nk(), MEMORY_CELL_DIM, MEMORY_DIM)}
    P['feedback'] = {'l1': _init_linear(nk(), DFG_OUT_DIM, FEEDBACK_CELL_DIM),
                     'l2': _init_linear(nk(), FEEDBACK_CELL_DIM, COMPRESSED_DIM)}
    P['fc_out'] = {'l1': _init_linear(nk(), MEMORY_DIM + sum(HIDDEN_DIMS), OUTPUT_CELL_DIM),
                   'l2': _init_linear(nk(), OUTPUT_CELL_DIM, OUTPUT_DIM)}
    return P


# ----------------------- host-side parameter packing -----------------------
class _Packer:
    """Packs every fused weight / bias into one (rows, LANES) f32 slab.

    Each entry is 8-row aligned so all kernel-side slices start on a sublane
    multiple of 8; registry maps name -> (row_offset, fan_in, fan_out).
    """

    def __init__(self):
        self._blocks, self._reg, self._row = [], {}, 0

    def add(self, name, mat):
        mat = np.asarray(mat, np.float32)
        if mat.ndim == 1:
            mat = mat[None, :]
        fi, fo = mat.shape
        assert fo <= LANES, (name, mat.shape)
        fi_pad = ((fi + 7) // 8) * 8
        blk = np.zeros((fi_pad, LANES), np.float32)
        blk[:fi, :fo] = mat
        self._blocks.append(blk)
        self._reg[name] = (self._row, fi, fo)
        self._row += fi_pad

    def finalize(self):
        slab = np.concatenate(self._blocks, axis=0)
        return jnp.asarray(slab), dict(self._reg)


def pack_params(P):
    pk = _Packer()
    add = pk.add
    np_w = lambda p: np.asarray(p['w'], np.float32)
    np_b = lambda p: np.asarray(p['b'], np.float32)     # (1, out)

    Hoff = np.cumsum([0] + HIDDEN_DIMS)      # [0,16,28,36]
    Xoff = np.cumsum([0] + INPUT_DIMS)       # [0,8,20,36]
    Moff = np.cumsum([0] + DFG_INPUT_DIMS)   # [0,10,22,36]

    # ---- LSTHM fused, gate-major layout [F | I | O | pad | CH] -------------
    # F/I/O occupy lanes [0, 3*HSUM); CH starts exactly at lane 128 so both
    # nonlinearity slices stay within a single 128-lane vreg tile.
    Wx = np.zeros((XSUM, S4P), np.float32)
    Whz = np.zeros((HSUM + COMPRESSED_DIM, S4P), np.float32)   # [Wh ; Wz]
    bl = np.zeros((1, S4P), np.float32)
    for i in range(NMOD):
        hd = HIDDEN_DIMS[i]
        w = np_w(P['lsthm'][i]['W'])
        u = np_w(P['lsthm'][i]['U'])
        v = np_w(P['lsthm'][i]['V'])
        bt = np_b(P['lsthm'][i]['W']) + np_b(P['lsthm'][i]['U']) + np_b(P['lsthm'][i]['V'])
        for g in range(4):
            cs = (g * HSUM if g < 3 else 128) + Hoff[i]
            Wx[Xoff[i]:Xoff[i + 1], cs:cs + hd] = w[:, g * hd:(g + 1) * hd]
            Whz[Hoff[i]:Hoff[i + 1], cs:cs + hd] = u[:, g * hd:(g + 1) * hd]
            Whz[HSUM:, cs:cs + hd] = v[:, g * hd:(g + 1) * hd]
            bl[0, cs:cs + hd] = bt[0, g * hd:(g + 1) * hd]
    add('lsthm_x', Wx); add('lsthm_hz', Whz); add('lsthm_b', bl)

    # ---- dfg_init SimpleNets, K-concat fused [prev_H | H] ------------------
    CELLS = DFG_INIT_CELL_DIMS
    Coff = np.cumsum([0] + CELLS)
    Wi = np.zeros((2 * HSUM, sum(CELLS)), np.float32)   # rows: [prev_H ; H]
    b1 = np.zeros((1, sum(CELLS)), np.float32)
    W2 = np.zeros((sum(CELLS), MSUM), np.float32)
    b2 = np.zeros((1, MSUM), np.float32)
    for i in range(NMOD):
        hd = HIDDEN_DIMS[i]
        l1w = np_w(P['dfg_init'][i]['l1'])
        Wi[Hoff[i]:Hoff[i + 1], Coff[i]:Coff[i + 1]] = l1w[:hd]
        Wi[HSUM + Hoff[i]:HSUM + Hoff[i + 1], Coff[i]:Coff[i + 1]] = l1w[hd:]
        b1[0, Coff[i]:Coff[i + 1]] = np_b(P['dfg_init'][i]['l1'])[0]
        W2[Coff[i]:Coff[i + 1], Moff[i]:Moff[i + 1]] = np_w(P['dfg_init'][i]['l2'])
        b2[0, Moff[i]:Moff[i + 1]] = np_b(P['dfg_init'][i]['l2'])[0]
    add('init1_w', Wi); add('init1_b', b1)
    add('init2_w', W2); add('init2_b', b2)

    # ---- efficacy model (plain chain of linears) ---------------------------
    D = P['dfg']
    add('eff_in_w', np_w(D['eff_l0']));  add('eff_in_b', np_b(D['eff_l0']))
    add('eff_l1_w', np_w(D['eff_net']['l1'])); add('eff_l1_b', np_b(D['eff_net']['l1']))
    add('eff_l2_w', np_w(D['eff_net']['l2'])); add('eff_l2_b', np_b(D['eff_net']['l2']))
    add('eff_out_w', np_w(D['eff_out'])); add('eff_out_b', np_b(D['eff_out']))

    # ---- single stacked efficacy-broadcast matrix (pairs | tri | top) ------
    TRIPLE = MULTI_KEYS[-1]
    tri_sps = small_power_set(TRIPLE)               # 3 singles + 3 pairs
    t_sps = tri_sps + [TRIPLE]
    pair_in_dims = [INPUT_SHAPES[k] for k in PAIR_KEYS]      # [22, 24, 26]
    pair_in = sum(pair_in_dims)                              # 72
    tri_in = sum(comp_dim(c) for c in tri_sps)               # 72
    top_in = sum(comp_dim(c) for c in t_sps)                 # 84
    R = np.zeros((TOTAL_EFF, pair_in + tri_in + top_in), np.float32)   # (19, 228)
    eff_idx, col = 0, 0
    for key_ in PAIR_KEYS:
        for comp in small_power_set(key_):
            d = comp_dim(comp)
            R[eff_idx, col:col + d] = 1.0
            eff_idx += 1; col += d
    for comp in tri_sps:
        d = comp_dim(comp)
        R[eff_idx, col:col + d] = 1.0
        eff_idx += 1; col += d
    for comp in t_sps:
        d = comp_dim(comp)
        R[eff_idx, col:col + d] = 1.0
        eff_idx += 1; col += d
    assert eff_idx == TOTAL_EFF and col == pair_in + tri_in + top_in
    add('R_all', R)

    # ---- the 3 pair fusion nets, batched block-diagonally ------------------
    EFF, PAT, OUT = EFFICACY_DIM, PATTERN_CELL_DIM, DFG_OUT_DIM
    Poff = np.cumsum([0] + pair_in_dims)
    n_p = len(PAIR_KEYS)
    W0 = np.zeros((pair_in, n_p * EFF), np.float32)
    b0 = np.zeros((1, n_p * EFF), np.float32)
    W1 = np.zeros((n_p * EFF, n_p * PAT), np.float32)
    b1p = np.zeros((1, n_p * PAT), np.float32)
    W2p = np.zeros((n_p * PAT, n_p * OUT), np.float32)
    b2p = np.zeros((1, n_p * OUT), np.float32)
    for p, key_ in enumerate(PAIR_KEYS):
        net = D['nets'][p]
        W0[Poff[p]:Poff[p + 1], p * EFF:(p + 1) * EFF] = np_w(net['l0'])
        b0[0, p * EFF:(p + 1) * EFF] = np_b(net['l0'])[0]
        W1[p * EFF:(p + 1) * EFF, p * PAT:(p + 1) * PAT] = np_w(net['pat']['l1'])
        b1p[0, p * PAT:(p + 1) * PAT] = np_b(net['pat']['l1'])[0]
        W2p[p * PAT:(p + 1) * PAT, p * OUT:(p + 1) * OUT] = np_w(net['pat']['l2'])
        b2p[0, p * OUT:(p + 1) * OUT] = np_b(net['pat']['l2'])[0]
    add('pair_w0', W0); add('pair_b0', b0)
    add('pair_w1', W1); add('pair_b1', b1p)
    add('pair_w2', W2p); add('pair_b2', b2p)

    # ---- (0,1,2) fusion net -------------------------------------------------
    netT = D['nets'][n_p]
    add('tri_w0', np_w(netT['l0'])); add('tri_b0', np_b(netT['l0']))
    add('tri_w1', np_w(netT['pat']['l1'])); add('tri_b1', np_b(netT['pat']['l1']))
    add('tri_w2', np_w(netT['pat']['l2'])); add('tri_b2', np_b(netT['pat']['l2']))

    # ---- top-level t-network ------------------------------------------------
    add('t_w0', np_w(D['t_net']['l0'])); add('t_b0', np_b(D['t_net']['l0']))
    add('t_w1', np_w(D['t_net']['pat']['l1'])); add('t_b1', np_b(D['t_net']['pat']['l1']))
    add('t_w2', np_w(D['t_net']['pat']['l2'])); add('t_b2', np_b(D['t_net']['pat']['l2']))

    # ---- gamma1 / gamma2 / memory / feedback heads (all consume dfg_out) ----
    head_l1 = [P['fc_gamma'][0]['l1'], P['fc_gamma'][1]['l1'],
               P['fc_memory']['l1'], P['feedback']['l1']]
    head_l2 = [P['fc_gamma'][0]['l2'], P['fc_gamma'][1]['l2'],
               P['fc_memory']['l2'], P['feedback']['l2']]
    head_cells = GAMMA_CELL_DIMS + [MEMORY_CELL_DIM, FEEDBACK_CELL_DIM]   # [18,18,18,16]
    head_outs = [MEMORY_DIM, MEMORY_DIM, MEMORY_DIM, COMPRESSED_DIM]      # [14,14,14,8]
    HCoff = np.cumsum([0] + head_cells)
    HOoff = np.cumsum([0] + head_outs)
    Wh1 = np.concatenate([np_w(p) for p in head_l1], axis=1)              # (12, 70)
    bh1 = np.concatenate([np_b(p) for p in head_l1], axis=1)
    Wh2 = np.zeros((sum(head_cells), sum(head_outs)), np.float32)
    bh2 = np.zeros((1, sum(head_outs)), np.float32)
    for j in range(4):
        Wh2[HCoff[j]:HCoff[j + 1], HOoff[j]:HOoff[j + 1]] = np_w(head_l2[j])
        bh2[0, HOoff[j]:HOoff[j + 1]] = np_b(head_l2[j])[0]
    add('head1_w', Wh1); add('head1_b', bh1)
    add('head2_w', Wh2); add('head2_b', bh2)

    # ---- output head, K-concat fused over [H | u] ---------------------------
    ow = np_w(P['fc_out']['l1'])                   # rows = [h (36) | u (14)]
    add('out1_w', ow); add('out1_b', np_b(P['fc_out']['l1']))
    add('out2_w', np_w(P['fc_out']['l2'])); add('out2_b', np_b(P['fc_out']['l2']))

    return pk.finalize()


# ------------------------------ Pallas kernel ------------------------------
def make_kernel(reg):
    HS = HSUM
    M0, M1 = DFG_INPUT_DIMS[0], DFG_INPUT_DIMS[1]          # 10, 12
    PW = 72                                                 # pair-base width
    TW = 72                                                 # tri-base width
    QW = 84                                                 # top-base width

    def kernel(x_ref, w_ref, out_ref):
        # x_ref : (T*B, sum(INPUT_DIMS))  time-major rows, modality-concatenated
        # w_ref : packed parameter slab (rows, LANES)
        def W(name):
            r, fi, fo = reg[name]
            return w_ref[r:r + fi, :fo]

        def dot(a, w):
            return jnp.dot(a, w, preferred_element_type=jnp.float32)

        # ---- hoist every slab slice out of the unrolled recurrence --------
        w_lx = W('lsthm_x'); w_lhz = W('lsthm_hz'); b_l = W('lsthm_b')
        w_i1 = W('init1_w'); b_i1 = W('init1_b')
        w_i2 = W('init2_w'); b_i2 = W('init2_b')
        w_e0 = W('eff_in_w'); b_e0 = W('eff_in_b')
        w_e1 = W('eff_l1_w'); b_e1 = W('eff_l1_b')
        w_e2 = W('eff_l2_w'); b_e2 = W('eff_l2_b')
        w_eo = W('eff_out_w'); b_eo = W('eff_out_b')
        w_R = W('R_all')
        w_p0 = W('pair_w0'); b_p0 = W('pair_b0')
        w_p1 = W('pair_w1'); b_p1 = W('pair_b1')
        w_p2 = W('pair_w2'); b_p2 = W('pair_b2')
        w_t0 = W('tri_w0'); b_t0 = W('tri_b0')
        w_t1 = W('tri_w1'); b_t1 = W('tri_b1')
        w_t2 = W('tri_w2'); b_t2 = W('tri_b2')
        w_q0 = W('t_w0'); b_q0 = W('t_b0')
        w_q1 = W('t_w1'); b_q1 = W('t_b1')
        w_q2 = W('t_w2'); b_q2 = W('t_b2')
        w_h1 = W('head1_w'); b_h1 = W('head1_b')
        w_h2 = W('head2_w'); b_h2 = W('head2_b')
        w_o1 = W('out1_w'); b_o1 = W('out1_b')
        w_o2 = W('out2_w'); b_o2 = W('out2_b')

        # ---- state-independent LSTHM input term for ALL timesteps ----------
        xw_all = dot(x_ref[...], w_lx) + b_l                 # (T*B, 164)

        H = jnp.zeros((B, HS), jnp.float32)
        C = jnp.zeros((B, HS), jnp.float32)
        z = jnp.zeros((B, COMPRESSED_DIM), jnp.float32)
        u = jnp.zeros((B, MEMORY_DIM), jnp.float32)

        for t in range(T):                        # T is small -> static unroll
            prev_H = H

            # ---- fused LSTHM cells: one gate-major pre-activation ----------
            s = dot(jnp.concatenate([prev_H, z], axis=1), w_lhz) \
                + xw_all[t * B:(t + 1) * B]                          # (B, 164)
            gates = jax.nn.sigmoid(s[:, :3 * HS])                    # lanes 0:108
            ch = jnp.tanh(s[:, 128:128 + HS])                        # lanes 128:164
            f_g = gates[:, :HS]
            i_g = gates[:, HS:2 * HS]
            o_g = gates[:, 2 * HS:3 * HS]
            C = f_g * C + i_g * ch
            H = jnp.tanh(C) * o_g

            # ---- dfg_init SimpleNets (block-diag, K-concat [prev_H|H]) -----
            y1 = jax.nn.relu(dot(jnp.concatenate([prev_H, H], axis=1), w_i1) + b_i1)
            mods = jax.nn.sigmoid(dot(y1, w_i2) + b_i2)              # (B, 36)

            # ---- efficacy model --------------------------------------------
            e_hid = dot(mods, w_e0) + b_e0
            e_mid = dot(jax.nn.relu(dot(e_hid, w_e1) + b_e1), w_e2) + b_e2
            eff = dot(e_mid, w_eo) + b_eo                            # (B, 19)
            eff_b = dot(eff, w_R)                                    # (B, 228)

            # ---- pair fusion nets: base = lane gather of mods --------------
            pair_base = jnp.concatenate(
                [mods[:, :M0 + M1],            # mods0 | mods1   (pair 0,1)
                 mods[:, :M0],                 # mods0           (pair 0,2)
                 mods[:, M0 + M1:],            # mods2
                 mods[:, M0:]],                # mods1 | mods2   (pair 1,2)
                axis=1)                                              # (B, 72)
            x_pair = pair_base * eff_b[:, :PW]
            yp = dot(x_pair, w_p0) + b_p0
            yp = jax.nn.relu(dot(yp, w_p1) + b_p1)
            pairs = dot(yp, w_p2) + b_p2                             # (B, 36)

            # ---- (0,1,2) fusion net: base = [mods | pairs] -----------------
            x_tri = jnp.concatenate([mods, pairs], axis=1) * eff_b[:, PW:PW + TW]
            yt = dot(x_tri, w_t0) + b_t0
            yt = jax.nn.relu(dot(yt, w_t1) + b_t1)
            tri = dot(yt, w_t2) + b_t2                               # (B, 12)

            # ---- top-level t-network: base = [mods | pairs | tri] ----------
            x_top = jnp.concatenate([mods, pairs, tri], axis=1) \
                * eff_b[:, PW + TW:PW + TW + QW]
            yq = dot(x_top, w_q0) + b_q0
            yq = jax.nn.relu(dot(yq, w_q1) + b_q1)
            dfg_out = dot(yq, w_q2) + b_q2                           # (B, 12)

            # ---- gamma / memory / feedback heads (fused) -------------------
            hh = jax.nn.relu(dot(dfg_out, w_h1) + b_h1)              # (B, 70)
            hy = dot(hh, w_h2) + b_h2                                # (B, 50)
            g1 = jax.nn.sigmoid(hy[:, 0:MEMORY_DIM])
            g2 = jax.nn.sigmoid(hy[:, MEMORY_DIM:2 * MEMORY_DIM])
            new_mem = jnp.tanh(hy[:, 2 * MEMORY_DIM:3 * MEMORY_DIM])
            fb = jax.nn.sigmoid(hy[:, 3 * MEMORY_DIM:3 * MEMORY_DIM + COMPRESSED_DIM])
            u = g1 * u + g2 * new_mem
            z = jax.nn.softmax(fb, axis=1)

        # ---- output head on last h and memory (K-concat [H|u]) -------------
        hid = jax.nn.relu(dot(jnp.concatenate([H, u], axis=1), w_o1) + b_o1)
        out = dot(hid, w_o2) + b_o2                                  # (B, 1)
        out_ref[...] = out.astype(out_ref.dtype)

    return kernel


def build_forward(reg):
    kernel = make_kernel(reg)
    call = pl.pallas_call(
        kernel,
        out_shape=jax.ShapeDtypeStruct((B, OUTPUT_DIM), jnp.float32),
        compiler_params=pltpu.CompilerParams(
            vmem_limit_bytes=16 * 1024 * 1024),
    )
    # NOTE: grid-less single invocation; with many independent sequences a
    # parallel grid axis over batch shards would use both v7x TensorCores and
    # amortize the ~1 MiB slab DMA.  Not applicable at B=2 here.
    return jax.jit(lambda x_all, slab: call(x_all, slab))


# --------------------------- pure-JAX reference ----------------------------
_PREC = jax.lax.Precision.HIGHEST


def _lref(p, x):
    return jnp.dot(x, p['w'], precision=_PREC) + p['b']


def _snref(p, x, act=None):
    y = _lref(p['l2'], jax.nn.relu(_lref(p['l1'], x)))
    return act(y) if act is not None else y


def _dfg_ref(P, mods):
    outputs = {(i,): mods[i] for i in range(NMOD)}
    eff = _lref(P['eff_out'],
                _snref(P['eff_net'], _lref(P['eff_l0'],
                                           jnp.concatenate(mods, axis=1))))
    eff_idx = 0
    for ki, key_ in enumerate(MULTI_KEYS):
        sps = small_power_set(key_)
        this_in = jnp.concatenate(
            [outputs[k] * eff[:, eff_idx + y:eff_idx + y + 1]
             for y, k in enumerate(sps)], axis=1)
        outputs[key_] = _snref(P['nets'][ki]['pat'],
                               _lref(P['nets'][ki]['l0'], this_in))
        eff_idx += len(sps)
    t_sps = small_power_set(MULTI_KEYS[-1]) + [MULTI_KEYS[-1]]
    t_in = jnp.concatenate(
        [outputs[k] * eff[:, eff_idx + y:eff_idx + y + 1]
         for y, k in enumerate(t_sps)], axis=1)
    return _snref(P['t_net']['pat'], _lref(P['t_net']['l0'], t_in))


def graph_mfn_ref(P, xs):
    z = jnp.zeros((B, COMPRESSED_DIM), jnp.float32)
    h = [jnp.zeros((B, hd), jnp.float32) for hd in HIDDEN_DIMS]
    c = [jnp.zeros((B, hd), jnp.float32) for hd in HIDDEN_DIMS]
    u = jnp.zeros((B, MEMORY_DIM), jnp.float32)
    for t in range(T):
        prev_h = h
        new_h, new_c = [], []
        for i in range(NMOD):
            lp, cell = P['lsthm'][i], HIDDEN_DIMS[i]
            s = (_lref(lp['W'], xs[i][:, t, :]) + _lref(lp['U'], h[i])
                 + _lref(lp['V'], z))
            f_g = jax.nn.sigmoid(s[:, :cell])
            i_g = jax.nn.sigmoid(s[:, cell:2 * cell])
            o_g = jax.nn.sigmoid(s[:, 2 * cell:3 * cell])
            ch = jnp.tanh(s[:, 3 * cell:])
            c_n = f_g * c[i] + i_g * ch
            new_c.append(c_n)
            new_h.append(jnp.tanh(c_n) * o_g)
        mods = [_snref(P['dfg_init'][i],
                       jnp.concatenate([prev_h[i], new_h[i]], axis=1),
                       jax.nn.sigmoid) for i in range(NMOD)]
        dfg_out = _dfg_ref(P['dfg'], mods)
        gamma1 = _snref(P['fc_gamma'][0], dfg_out, jax.nn.sigmoid)
        gamma2 = _snref(P['fc_gamma'][1], dfg_out, jax.nn.sigmoid)
        new_mem = _snref(P['fc_memory'], dfg_out, jnp.tanh)
        u = gamma1 * u + gamma2 * new_mem
        fb = jax.nn.sigmoid(_lref(P['feedback']['l2'],
                                  jax.nn.relu(_lref(P['feedback']['l1'], dfg_out))))
        z = jax.nn.softmax(fb, axis=1)
        h, c = new_h, new_c
    total = jnp.concatenate(h + [u], axis=1)
    return _snref(P['fc_out'], total)      # OUTPUT_DIM == 1 -> no activation


# ---------------------------------- main -----------------------------------
if __name__ == "__main__":
    key = jax.random.PRNGKey(0)
    kp, kx = jax.random.split(key)
    P = init_params(kp)
    xkeys = jax.random.split(kx, NMOD)
    xs = [jax.random.normal(xkeys[i], (B, T, INPUT_DIMS[i]), jnp.float32)
          for i in range(NMOD)]

    slab, reg = pack_params(P)
    forward = build_forward(reg)

    # time-major, modality-concatenated activations, flattened to (T*B, 36)
    x_all = jnp.concatenate(
        [jnp.transpose(x, (1, 0, 2)) for x in xs], axis=-1).reshape(T * B, XSUM)
    out = jax.block_until_ready(forward(x_all, slab))

    ref = graph_mfn_ref(P, xs)
    err = float(jnp.max(jnp.abs(out - ref)))
    assert out.shape == (B, OUTPUT_DIM)
    assert np.isfinite(np.asarray(out)).all()
    assert err < 2e-3, f"max abs diff vs JAX reference: {err}"
    print("KERNEL_OK")
</pallas_src>

<mosaic_0001>
module attributes {stable_mosaic.version = 11 : i64} {
  func.func @kernel(%arg0: memref<8x36xf32, #tpu.memory_space<vmem>>, %arg1: memref<1104x256xf32, #tpu.memory_space<vmem>>, %arg2: memref<2x1xf32, #tpu.memory_space<vmem>>) attributes {dimension_semantics = [], scalar_prefetch = 0 : i64, scratch_operands = 0 : i64, tpu.core_type = #tpu.core_type<tc>} {
    %c0 = arith.constant 0 : index
    %c0_0 = arith.constant 0 : index
    %0 = vector.load %arg1[%c0, %c0_0] : memref<1104x256xf32, #tpu.memory_space<vmem>>, vector<36x164xf32>
    %c40 = arith.constant 40 : index
    %c0_1 = arith.constant 0 : index
    %1 = vector.load %arg1[%c40, %c0_1] : memref<1104x256xf32, #tpu.memory_space<vmem>>, vector<44x164xf32>
    %c88 = arith.constant 88 : index
    %c0_2 = arith.constant 0 : index
    %2 = vector.load %arg1[%c88, %c0_2] : memref<1104x256xf32, #tpu.memory_space<vmem>>, vector<1x164xf32>
    %c96 = arith.constant 96 : index
    %c0_3 = arith.constant 0 : index
    %3 = vector.load %arg1[%c96, %c0_3] : memref<1104x256xf32, #tpu.memory_space<vmem>>, vector<72x60xf32>
    %c168 = arith.constant 168 : index
    %c0_4 = arith.constant 0 : index
    %4 = vector.load %arg1[%c168, %c0_4] : memref<1104x256xf32, #tpu.memory_space<vmem>>, vector<1x60xf32>
    %c176 = arith.constant 176 : index
    %c0_5 = arith.constant 0 : index
    %5 = vector.load %arg1[%c176, %c0_5] : memref<1104x256xf32, #tpu.memory_space<vmem>>, vector<60x36xf32>
    %c240 = arith.constant 240 : index
    %c0_6 = arith.constant 0 : index
    %6 = vector.load %arg1[%c240, %c0_6] : memref<1104x256xf32, #tpu.memory_space<vmem>>, vector<1x36xf32>
    %c248 = arith.constant 248 : index
    %c0_7 = arith.constant 0 : index
    %7 = vector.load %arg1[%c248, %c0_7] : memref<1104x256xf32, #tpu.memory_space<vmem>>, vector<36x24xf32>
    %c288 = arith.constant 288 : index
    %c0_8 = arith.constant 0 : index
    %8 = vector.load %arg1[%c288, %c0_8] : memref<1104x256xf32, #tpu.memory_space<vmem>>, vector<1x24xf32>
    %c296 = arith.constant 296 : index
    %c0_9 = arith.constant 0 : index
    %9 = vector.load %arg1[%c296, %c0_9] : memref<1104x256xf32, #tpu.memory_space<vmem>>, vector<24x16xf32>
    %c320 = arith.constant 320 : index
    %c0_10 = arith.constant 0 : index
    %10 = vector.load %arg1[%c320, %c0_10] : memref<1104x256xf32, #tpu.memory_space<vmem>>, vector<1x16xf32>
    %c328 = arith.constant 328 : index
    %c0_11 = arith.constant 0 : index
    %11 = vector.load %arg1[%c328, %c0_11] : memref<1104x256xf32, #tpu.memory_space<vmem>>, vector<16x12xf32>
    %c344 = arith.constant 344 : index
    %c0_12 = arith.constant 0 : index
    %12 = vector.load %arg1[%c344, %c0_12] : memref<1104x256xf32, #tpu.memory_space<vmem>>, vector<1x12xf32>
    %c352 = arith.constant 352 : index
    %c0_13 = arith.constant 0 : index
    %13 = vector.load %arg1[%c352, %c0_13] : memref<1104x256xf32, #tpu.memory_space<vmem>>, vector<12x19xf32>
    %c368 = arith.constant 368 : index
    %c0_14 = arith.constant 0 : index
    %14 = vector.load %arg1[%c368, %c0_14] : memref<1104x256xf32, #tpu.memory_space<vmem>>, vector<1x19xf32>
    %c376 = arith.constant 376 : index
    %c0_15 = arith.constant 0 : index
    %15 = vector.load %arg1[%c376, %c0_15] : memref<1104x256xf32, #tpu.memory_space<vmem>>, vector<19x228xf32>
    %c400 = arith.constant 400 : index
    %c0_16 = arith.constant 0 : index
    %16 = vector.load %arg1[%c400, %c0_16] : memref<1104x256xf32, #tpu.memory_space<vmem>>, vector<72x72xf32>
    %c472 = arith.constant 472 : index
    %c0_17 = arith.constant 0 : index
    %17 = vector.load %arg1[%c472, %c0_17] : memref<1104x256xf32, #tpu.memory_space<vmem>>, vector<1x72xf32>
    %c480 = arith.constant 480 : index
    %c0_18 = arith.constant 0 : index
    %18 = vector.load %arg1[%c480, %c0_18] : memref<1104x256xf32, #tpu.memory_space<vmem>>, vector<72x48xf32>
    %c552 = arith.constant 552 : index
    %c0_19 = arith.constant 0 : index
    %19 = vector.load %arg1[%c552, %c0_19] : memref<1104x256xf32, #tpu.memory_space<vmem>>, vector<1x48xf32>
    %c560 = arith.constant 560 : index
    %c0_20 = arith.constant 0 : index
    %20 = vector.load %arg1[%c560, %c0_20] : memref<1104x256xf32, #tpu.memory_space<vmem>>, vector<48x36xf32>
    %c608 = arith.constant 608 : index
    %c0_21 = arith.constant 0 : index
    %21 = vector.load %arg1[%c608, %c0_21] : memref<1104x256xf32, #tpu.memory_space<vmem>>, vector<1x36xf32>
    %c616 = arith.constant 616 : index
    %c0_22 = arith.constant 0 : index
    %22 = vector.load %arg1[%c616, %c0_22] : memref<1104x256xf32, #tpu.memory_space<vmem>>, vector<72x24xf32>
    %c688 = arith.constant 688 : index
    %c0_23 = arith.constant 0 : index
    %23 = vector.load %arg1[%c688, %c0_23] : memref<1104x256xf32, #tpu.memory_space<vmem>>, vector<1x24xf32>
    %c696 = arith.constant 696 : index
    %c0_24 = arith.constant 0 : index
    %24 = vector.load %arg1[%c696, %c0_24] : memref<1104x256xf32, #tpu.memory_space<vmem>>, vector<24x16xf32>
    %c720 = arith.constant 720 : index
    %c0_25 = arith.constant 0 : index
    %25 = vector.load %arg1[%c720, %c0_25] : memref<1104x256xf32, #tpu.memory_space<vmem>>, vector<1x16xf32>
    %c728 = arith.constant 728 : index
    %c0_26 = arith.constant 0 : index
    %26 = vector.load %arg1[%c728, %c0_26] : memref<1104x256xf32, #tpu.memory_space<vmem>>, vector<16x12xf32>
    %c744 = arith.constant 744 : index
    %c0_27 = arith.constant 0 : index
    %27 = vector.load %arg1[%c744, %c0_27] : memref<1104x256xf32, #tpu.memory_space<vmem>>, vector<1x12xf32>
    %c752 = arith.constant 752 : index
    %c0_28 = arith.constant 0 : index
    %28 = vector.load %arg1[%c752, %c0_28] : memref<1104x256xf32, #tpu.memory_space<vmem>>, vector<84x24xf32>
    %c840 = arith.constant 840 : index
    %c0_29 = arith.constant 0 : index
    %29 = vector.load %arg1[%c840, %c0_29] : memref<1104x256xf32, #tpu.memory_space<vmem>>, vector<1x24xf32>
    %c848 = arith.constant 848 : index
    %c0_30 = arith.constant 0 : index
    %30 = vector.load %arg1[%c848, %c0_30] : memref<1104x256xf32, #tpu.memory_space<vmem>>, vector<24x16xf32>
    %c872 = arith.constant 872 : index
    %c0_31 = arith.constant 0 : index
    %31 = vector.load %arg1[%c872, %c0_31] : memref<1104x256xf32, #tpu.memory_space<vmem>>, vector<1x16xf32>
    %c880 = arith.constant 880 : index
    %c0_32 = arith.constant 0 : index
    %32 = vector.load %arg1[%c880, %c0_32] : memref<1104x256xf32, #tpu.memory_space<vmem>>, vector<16x12xf32>
    %c896 = arith.constant 896 : index
    %c0_33 = arith.constant 0 : index
    %33 = vector.load %arg1[%c896, %c0_33] : memref<1104x256xf32, #tpu.memory_space<vmem>>, vector<1x12xf32>
    %c904 = arith.constant 904 : index
    %c0_34 = arith.constant 0 : index
    %34 = vector.load %arg1[%c904, %c0_34] : memref<1104x256xf32, #tpu.memory_space<vmem>>, vector<12x70xf32>
    %c920 = arith.constant 920 : index
    %c0_35 = arith.constant 0 : index
    %35 = vector.load %arg1[%c920, %c0_35] : memref<1104x256xf32, #tpu.memory_space<vmem>>, vector<1x70xf32>
    %c928 = arith.constant 928 : index
    %c0_36 = arith.constant 0 : index
    %36 = vector.load %arg1[%c928, %c0_36] : memref<1104x256xf32, #tpu.memory_space<vmem>>, vector<70x50xf32>
    %c1000 = arith.constant 1000 : index
    %c0_37 = arith.constant 0 : index
    %37 = vector.load %arg1[%c1000, %c0_37] : memref<1104x256xf32, #tpu.memory_space<vmem>>, vector<1x50xf32>
    %c1008 = arith.constant 1008 : index
    %c0_38 = arith.constant 0 : index
    %38 = vector.load %arg1[%c1008, %c0_38] : memref<1104x256xf32, #tpu.memory_space<vmem>>, vector<50x20xf32>
    %c1064 = arith.constant 1064 : index
    %c0_39 = arith.constant 0 : index
    %39 = vector.load %arg1[%c1064, %c0_39] : memref<1104x256xf32, #tpu.memory_space<vmem>>, vector<1x20xf32>
    %c1072 = arith.constant 1072 : index
    %c0_40 = arith.constant 0 : index
    %40 = vector.load %arg1[%c1072, %c0_40] : memref<1104x256xf32, #tpu.memory_space<vmem>>, vector<20x1xf32>
    %c1096 = arith.constant 1096 : index
    %c0_41 = arith.constant 0 : index
    %41 = vector.load %arg1[%c1096, %c0_41] : memref<1104x256xf32, #tpu.memory_space<vmem>>, vector<1x1xf32>
    %c0_42 = arith.constant 0 : index
    %c0_43 = arith.constant 0 : index
    %42 = vector.load %arg0[%c0_42, %c0_43] : memref<8x36xf32, #tpu.memory_space<vmem>>, vector<8x36xf32>
    %cst = arith.constant dense<0.000000e+00> : vector<8x164xf32>
    %43 = tpu.matmul %42, %0, %cst {dimension_numbers = #tpu.dot_dimension_numbers<[1], [0], [0], [1], [0, 0, 1, 1], [], []>} : vector<8x36xf32>, vector<36x164xf32>, vector<8x164xf32> -> vector<8x164xf32>
    %44 = vector.broadcast %2 : vector<1x164xf32> to vector<8x164xf32>
    %45 = arith.addf %43, %44 : vector<8x164xf32>
    %cst_44 = arith.constant 0.000000e+00 : f32
    %46 = vector.broadcast %cst_44 : f32 to vector<2x36xf32>
    %cst_45 = arith.constant 0.000000e+00 : f32
    %47 = vector.broadcast %cst_45 : f32 to vector<2x36xf32>
    %cst_46 = arith.constant 0.000000e+00 : f32
    %48 = vector.broadcast %cst_46 : f32 to vector<2x8xf32>
    %cst_47 = arith.constant 0.000000e+00 : f32
    %49 = vector.broadcast %cst_47 : f32 to vector<2x14xf32>
    %50 = tpu.concatenate %46, %48 in 1 : vector<2x36xf32>, vector<2x8xf32> -> vector<2x44xf32>
    %cst_48 = arith.constant dense<0.000000e+00> : vector<2x164xf32>
    %51 = tpu.matmul %50, %1, %cst_48 {dimension_numbers = #tpu.dot_dimension_numbers<[1], [0], [0], [1], [0, 0, 1, 1], [], []>} : vector<2x44xf32>, vector<44x164xf32>, vector<2x164xf32> -> vector<2x164xf32>
    %52 = vector.extract_strided_slice %45 {offsets = [0, 0], sizes = [2, 164], strides = [1, 1]} : vector<8x164xf32> to vector<2x164xf32>
    %53 = arith.addf %51, %52 : vector<2x164xf32>
    %54 = vector.extract_strided_slice %53 {offsets = [0, 0], sizes = [2, 108], strides = [1, 1]} : vector<2x164xf32> to vector<2x108xf32>
    %55 = arith.negf %54 : vector<2x108xf32>
    %56 = math.exp %55 : vector<2x108xf32>
    %cst_49 = arith.constant 1.000000e+00 : f32
    %57 = vector.broadcast %cst_49 : f32 to vector<2x108xf32>
    %58 = arith.addf %57, %56 : vector<2x108xf32>
    %59 = arith.divf %57, %58 : vector<2x108xf32>
    %60 = vector.extract_strided_slice %53 {offsets = [0, 128], sizes = [2, 36], strides = [1, 1]} : vector<2x164xf32> to vector<2x36xf32>
    %61 = math.tanh %60 : vector<2x36xf32>
    %62 = vector.extract_strided_slice %59 {offsets = [0, 0], sizes = [2, 36], strides = [1, 1]} : vector<2x108xf32> to vector<2x36xf32>
    %63 = vector.extract_strided_slice %59 {offsets = [0, 36], sizes = [2, 36], strides = [1, 1]} : vector<2x108xf32> to vector<2x36xf32>
    %64 = vector.extract_strided_slice %59 {offsets = [0, 72], sizes = [2, 36], strides = [1, 1]} : vector<2x108xf32> to vector<2x36xf32>
    %65 = arith.mulf %62, %47 : vector<2x36xf32>
    %66 = arith.mulf %63, %61 : vector<2x36xf32>
    %67 = arith.addf %65, %66 : vector<2x36xf32>
    %68 = math.tanh %67 : vector<2x36xf32>
    %69 = arith.mulf %68, %64 : vector<2x36xf32>
    %70 = tpu.concatenate %46, %69 in 1 : vector<2x36xf32>, vector<2x36xf32> -> vector<2x72xf32>
    %cst_50 = arith.constant dense<0.000000e+00> : vector<2x60xf32>
    %71 = tpu.matmul %70, %3, %cst_50 {dimension_numbers = #tpu.dot_dimension_numbers<[1], [0], [0], [1], [0, 0, 1, 1], [], []>} : vector<2x72xf32>, vector<72x60xf32>, vector<2x60xf32> -> vector<2x60xf32>
    %72 = vector.broadcast %4 : vector<1x60xf32> to vector<2x60xf32>
    %73 = arith.addf %71, %72 : vector<2x60xf32>
    %cst_51 = arith.constant 0.000000e+00 : f32
    %74 = vector.broadcast %cst_51 : f32 to vector<2x60xf32>
    %75 = arith.maximumf %73, %74 : vector<2x60xf32>
    %cst_52 = arith.constant dense<0.000000e+00> : vector<2x36xf32>
    %76 = tpu.matmul %75, %5, %cst_52 {dimension_numbers = #tpu.dot_dimension_numbers<[1], [0], [0], [1], [0, 0, 1, 1], [], []>} : vector<2x60xf32>, vector<60x36xf32>, vector<2x36xf32> -> vector<2x36xf32>
    %77 = vector.broadcast %6 : vector<1x36xf32> to vector<2x36xf32>
    %78 = arith.addf %76, %77 : vector<2x36xf32>
    %79 = arith.negf %78 : vector<2x36xf32>
    %80 = math.exp %79 : vector<2x36xf32>
    %cst_53 = arith.constant 1.000000e+00 : f32
    %81 = vector.broadcast %cst_53 : f32 to vector<2x36xf32>
    %82 = arith.addf %81, %80 : vector<2x36xf32>
    %83 = arith.divf %81, %82 : vector<2x36xf32>
    %cst_54 = arith.constant dense<0.000000e+00> : vector<2x24xf32>
    %84 = tpu.matmul %83, %7, %cst_54 {dimension_numbers = #tpu.dot_dimension_numbers<[1], [0], [0], [1], [0, 0, 1, 1], [], []>} : vector<2x36xf32>, vector<36x24xf32>, vector<2x24xf32> -> vector<2x24xf32>
    %85 = vector.broadcast %8 : vector<1x24xf32> to vector<2x24xf32>
    %86 = arith.addf %84, %85 : vector<2x24xf32>
    %cst_55 = arith.constant dense<0.000000e+00> : vector<2x16xf32>
    %87 = tpu.matmul %86, %9, %cst_55 {dimension_numbers = #tpu.dot_dimension_numbers<[1], [0], [0], [1], [0, 0, 1, 1], [], []>} : vector<2x24xf32>, vector<24x16xf32>, vector<2x16xf32> -> vector<2x16xf32>
    %88 = vector.broadcast %10 : vector<1x16xf32> to vector<2x16xf32>
    %89 = arith.addf %87, %88 : vector<2x16xf32>
    %cst_56 = arith.constant 0.000000e+00 : f32
    %90 = vector.broadcast %cst_56 : f32 to vector<2x16xf32>
    %91 = arith.maximumf %89, %90 : vector<2x16xf32>
    %cst_57 = arith.constant dense<0.000000e+00> : vector<2x12xf32>
    %92 = tpu.matmul %91, %11, %cst_57 {dimension_numbers = #tpu.dot_dimension_numbers<[1], [0], [0], [1], [0, 0, 1, 1], [], []>} : vector<2x16xf32>, vector<16x12xf32>, vector<2x12xf32> -> vector<2x12xf32>
    %93 = vector.broadcast %12 : vector<1x12xf32> to vector<2x12xf32>
    %94 = arith.addf %92, %93 : vector<2x12xf32>
    %cst_58 = arith.constant dense<0.000000e+00> : vector<2x19xf32>
    %95 = tpu.matmul %94, %13, %cst_58 {dimension_numbers = #tpu.dot_dimension_numbers<[1], [0], [0], [1], [0, 0, 1, 1], [], []>} : vector<2x12xf32>, vector<12x19xf32>, vector<2x19xf32> -> vector<2x19xf32>
    %96 = vector.broadcast %14 : vector<1x19xf32> to vector<2x19xf32>
    %97 = arith.addf %95, %96 : vector<2x19xf32>
    %cst_59 = arith.constant dense<0.000000e+00> : vector<2x228xf32>
    %98 = tpu.matmul %97, %15, %cst_59 {dimension_numbers = #tpu.dot_dimension_numbers<[1], [0], [0], [1], [0, 0, 1, 1], [], []>} : vector<2x19xf32>, vector<19x228xf32>, vector<2x228xf32> -> vector<2x228xf32>
    %99 = vector.extract_strided_slice %83 {offsets = [0, 0], sizes = [2, 22], strides = [1, 1]} : vector<2x36xf32> to vector<2x22xf32>
    %100 = vector.extract_strided_slice %83 {offsets = [0, 0], sizes = [2, 10], strides = [1, 1]} : vector<2x36xf32> to vector<2x10xf32>
    %101 = vector.extract_strided_slice %83 {offsets = [0, 22], sizes = [2, 14], strides = [1, 1]} : vector<2x36xf32> to vector<2x14xf32>
    %102 = vector.extract_strided_slice %83 {offsets = [0, 10], sizes = [2, 26], strides = [1, 1]} : vector<2x36xf32> to vector<2x26xf32>
    %103 = tpu.concatenate %99, %100, %101, %102 in 1 : vector<2x22xf32>, vector<2x10xf32>, vector<2x14xf32>, vector<2x26xf32> -> vector<2x72xf32>
    %104 = vector.extract_strided_slice %98 {offsets = [0, 0], sizes = [2, 72], strides = [1, 1]} : vector<2x228xf32> to vector<2x72xf32>
    %105 = arith.mulf %103, %104 : vector<2x72xf32>
    %cst_60 = arith.constant dense<0.000000e+00> : vector<2x72xf32>
    %106 = tpu.matmul %105, %16, %cst_60 {dimension_numbers = #tpu.dot_dimension_numbers<[1], [0], [0], [1], [0, 0, 1, 1], [], []>} : vector<2x72xf32>, vector<72x72xf32>, vector<2x72xf32> -> vector<2x72xf32>
    %107 = vector.broadcast %17 : vector<1x72xf32> to vector<2x72xf32>
    %108 = arith.addf %106, %107 : vector<2x72xf32>
    %cst_61 = arith.constant dense<0.000000e+00> : vector<2x48xf32>
    %109 = tpu.matmul %108, %18, %cst_61 {dimension_numbers = #tpu.dot_dimension_numbers<[1], [0], [0], [1], [0, 0, 1, 1], [], []>} : vector<2x72xf32>, vector<72x48xf32>, vector<2x48xf32> -> vector<2x48xf32>
    %110 = vector.broadcast %19 : vector<1x48xf32> to vector<2x48xf32>
    %111 = arith.addf %109, %110 : vector<2x48xf32>
    %cst_62 = arith.constant 0.000000e+00 : f32
    %112 = vector.broadcast %cst_62 : f32 to vector<2x48xf32>
    %113 = arith.maximumf %111, %112 : vector<2x48xf32>
    %cst_63 = arith.constant dense<0.000000e+00> : vector<2x36xf32>
    %114 = tpu.matmul %113, %20, %cst_63 {dimension_numbers = #tpu.dot_dimension_numbers<[1], [0], [0], [1], [0, 0, 1, 1], [], []>} : vector<2x48xf32>, vector<48x36xf32>, vector<2x36xf32> -> vector<2x36xf32>
    %115 = vector.broadcast %21 : vector<1x36xf32> to vector<2x36xf32>
    %116 = arith.addf %114, %115 : vector<2x36xf32>
    %117 = tpu.concatenate %83, %116 in 1 : vector<2x36xf32>, vector<2x36xf32> -> vector<2x72xf32>
    %118 = vector.extract_strided_slice %98 {offsets = [0, 72], sizes = [2, 72], strides = [1, 1]} : vector<2x228xf32> to vector<2x72xf32>
    %119 = arith.mulf %117, %118 : vector<2x72xf32>
    %cst_64 = arith.constant dense<0.000000e+00> : vector<2x24xf32>
    %120 = tpu.matmul %119, %22, %cst_64 {dimension_numbers = #tpu.dot_dimension_numbers<[1], [0], [0], [1], [0, 0, 1, 1], [], []>} : vector<2x72xf32>, vector<72x24xf32>, vector<2x24xf32> -> vector<2x24xf32>
    %121 = vector.broadcast %23 : vector<1x24xf32> to vector<2x24xf32>
    %122 = arith.addf %120, %121 : vector<2x24xf32>
    %cst_65 = arith.constant dense<0.000000e+00> : vector<2x16xf32>
    %123 = tpu.matmul %122, %24, %cst_65 {dimension_numbers = #tpu.dot_dimension_numbers<[1], [0], [0], [1], [0, 0, 1, 1], [], []>} : vector<2x24xf32>, vector<24x16xf32>, vector<2x16xf32> -> vector<2x16xf32>
    %124 = vector.broadcast %25 : vector<1x16xf32> to vector<2x16xf32>
    %125 = arith.addf %123, %124 : vector<2x16xf32>
    %cst_66 = arith.constant 0.000000e+00 : f32
    %126 = vector.broadcast %cst_66 : f32 to vector<2x16xf32>
    %127 = arith.maximumf %125, %126 : vector<2x16xf32>
    %cst_67 = arith.constant dense<0.000000e+00> : vector<2x12xf32>
    %128 = tpu.matmul %127, %26, %cst_67 {dimension_numbers = #tpu.dot_dimension_numbers<[1], [0], [0], [1], [0, 0, 1, 1], [], []>} : vector<2x16xf32>, vector<16x12xf32>, vector<2x12xf32> -> vector<2x12xf32>
    %129 = vector.broadcast %27 : vector<1x12xf32> to vector<2x12xf32>
    %130 = arith.addf %128, %129 : vector<2x12xf32>
    %131 = tpu.concatenate %83, %116, %130 in 1 : vector<2x36xf32>, vector<2x36xf32>, vector<2x12xf32> -> vector<2x84xf32>
    %132 = vector.extract_strided_slice %98 {offsets = [0, 144], sizes = [2, 84], strides = [1, 1]} : vector<2x228xf32> to vector<2x84xf32>
    %133 = arith.mulf %131, %132 : vector<2x84xf32>
    %cst_68 = arith.constant dense<0.000000e+00> : vector<2x24xf32>
    %134 = tpu.matmul %133, %28, %cst_68 {dimension_numbers = #tpu.dot_dimension_numbers<[1], [0], [0], [1], [0, 0, 1, 1], [], []>} : vector<2x84xf32>, vector<84x24xf32>, vector<2x24xf32> -> vector<2x24xf32>
    %135 = vector.broadcast %29 : vector<1x24xf32> to vector<2x24xf32>
    %136 = arith.addf %134, %135 : vector<2x24xf32>
    %cst_69 = arith.constant dense<0.000000e+00> : vector<2x16xf32>
    %137 = tpu.matmul %136, %30, %cst_69 {dimension_numbers = #tpu.dot_dimension_numbers<[1], [0], [0], [1], [0, 0, 1, 1], [], []>} : vector<2x24xf32>, vector<24x16xf32>, vector<2x16xf32> -> vector<2x16xf32>
    %138 = vector.broadcast %31 : vector<1x16xf32> to vector<2x16xf32>
    %139 = arith.addf %137, %138 : vector<2x16xf32>
    %cst_70 = arith.constant 0.000000e+00 : f32
    %140 = vector.broadcast %cst_70 : f32 to vector<2x16xf32>
    %141 = arith.maximumf %139, %140 : vector<2x16xf32>
    %cst_71 = arith.constant dense<0.000000e+00> : vector<2x12xf32>
    %142 = tpu.matmul %141, %32, %cst_71 {dimension_numbers = #tpu.dot_dimension_numbers<[1], [0], [0], [1], [0, 0, 1, 1], [], []>} : vector<2x16xf32>, vector<16x12xf32>, vector<2x12xf32> -> vector<2x12xf32>
    %143 = vector.broadcast %33 : vector<1x12xf32> to vector<2x12xf32>
    %144 = arith.addf %142, %143 : vector<2x12xf32>
    %cst_72 = arith.constant dense<0.000000e+00> : vector<2x70xf32>
    %145 = tpu.matmul %144, %34, %cst_72 {dimension_numbers = #tpu.dot_dimension_numbers<[1], [0], [0], [1], [0, 0, 1, 1], [], []>} : vector<2x12xf32>, vector<12x70xf32>, vector<2x70xf32> -> vector<2x70xf32>
    %146 = vector.broadcast %35 : vector<1x70xf32> to vector<2x70xf32>
    %147 = arith.addf %145, %146 : vector<2x70xf32>
    %cst_73 = arith.constant 0.000000e+00 : f32
    %148 = vector.broadcast %cst_73 : f32 to vector<2x70xf32>
    %149 = arith.maximumf %147, %148 : vector<2x70xf32>
    %cst_74 = arith.constant dense<0.000000e+00> : vector<2x50xf32>
    %150 = tpu.matmul %149, %36, %cst_74 {dimension_numbers = #tpu.dot_dimension_numbers<[1], [0], [0], [1], [0, 0, 1, 1], [], []>} : vector<2x70xf32>, vector<70x50xf32>, vector<2x50xf32> -> vector<2x50xf32>
    %151 = vector.broadcast %37 : vector<1x50xf32> to vector<2x50xf32>
    %152 = arith.addf %150, %151 : vector<2x50xf32>
    %153 = vector.extract_strided_slice %152 {offsets = [0, 0], sizes = [2, 14], strides = [1, 1]} : vector<2x50xf32> to vector<2x14xf32>
    %154 = arith.negf %153 : vector<2x14xf32>
    %155 = math.exp %154 : vector<2x14xf32>
    %cst_75 = arith.constant 1.000000e+00 : f32
    %156 = vector.broadcast %cst_75 : f32 to vector<2x14xf32>
    %157 = arith.addf %156, %155 : vector<2x14xf32>
    %158 = arith.divf %156, %157 : vector<2x14xf32>
    %159 = vector.extract_strided_slice %152 {offsets = [0, 14], sizes = [2, 14], strides = [1, 1]} : vector<2x50xf32> to vector<2x14xf32>
    %160 = arith.negf %159 : vector<2x14xf32>
    %161 = math.exp %160 : vector<2x14xf32>
    %cst_76 = arith.constant 1.000000e+00 : f32
    %162 = vector.broadcast %cst_76 : f32 to vector<2x14xf32>
    %163 = arith.addf %162, %161 : vector<2x14xf32>
    %164 = arith.divf %162, %163 : vector<2x14xf32>
    %165 = vector.extract_strided_slice %152 {offsets = [0, 28], sizes = [2, 14], strides = [1, 1]} : vector<2x50xf32> to vector<2x14xf32>
    %166 = math.tanh %165 : vector<2x14xf32>
    %167 = vector.extract_strided_slice %152 {offsets = [0, 42], sizes = [2, 8], strides = [1, 1]} : vector<2x50xf32> to vector<2x8xf32>
    %168 = arith.negf %167 : vector<2x8xf32>
    %169 = math.exp %168 : vector<2x8xf32>
    %cst_77 = arith.constant 1.000000e+00 : f32
    %170 = vector.broadcast %cst_77 : f32 to vector<2x8xf32>
    %171 = arith.addf %170, %169 : vector<2x8xf32>
    %172 = arith.divf %170, %171 : vector<2x8xf32>
    %173 = arith.mulf %158, %49 : vector<2x14xf32>
    %174 = arith.mulf %164, %166 : vector<2x14xf32>
    %175 = arith.addf %173, %174 : vector<2x14xf32>
    %cst_78 = arith.constant dense<0xFF800000> : vector<2xf32>
    %176 = vector.multi_reduction <maximumf>, %172, %cst_78 [1] : vector<2x8xf32> to vector<2xf32>
    %cst_79 = arith.constant 0xFF800000 : f32
    %177 = vector.broadcast %cst_79 : f32 to vector<2xf32>
    %178 = arith.maximumf %177, %176 : vector<2xf32>
    %179 = vector.shape_cast %178 : vector<2xf32> to vector<2x1xf32>
    %180 = vector.broadcast %179 : vector<2x1xf32> to vector<2x8xf32>
    %181 = arith.subf %172, %180 : vector<2x8xf32>
    %182 = math.exp %181 : vector<2x8xf32>
    %cst_80 = arith.constant dense<0.000000e+00> : vector<2xf32>
    %183 = vector.multi_reduction <add>, %182, %cst_80 [1] : vector<2x8xf32> to vector<2xf32>
    %184 = vector.shape_cast %183 : vector<2xf32> to vector<2x1xf32>
    %185 = vector.broadcast %184 : vector<2x1xf32> to vector<2x8xf32>
    %186 = arith.divf %182, %185 : vector<2x8xf32>
    %187 = tpu.concatenate %69, %186 in 1 : vector<2x36xf32>, vector<2x8xf32> -> vector<2x44xf32>
    %cst_81 = arith.constant dense<0.000000e+00> : vector<2x164xf32>
    %188 = tpu.matmul %187, %1, %cst_81 {dimension_numbers = #tpu.dot_dimension_numbers<[1], [0], [0], [1], [0, 0, 1, 1], [], []>} : vector<2x44xf32>, vector<44x164xf32>, vector<2x164xf32> -> vector<2x164xf32>
    %189 = vector.extract_strided_slice %45 {offsets = [2, 0], sizes = [2, 164], strides = [1, 1]} : vector<8x164xf32> to vector<2x164xf32>
    %190 = arith.addf %188, %189 : vector<2x164xf32>
    %191 = vector.extract_strided_slice %190 {offsets = [0, 0], sizes = [2, 108], strides = [1, 1]} : vector<2x164xf32> to vector<2x108xf32>
    %192 = arith.negf %191 : vector<2x108xf32>
    %193 = math.exp %192 : vector<2x108xf32>
    %cst_82 = arith.constant 1.000000e+00 : f32
    %194 = vector.broadcast %cst_82 : f32 to vector<2x108xf32>
    %195 = arith.addf %194, %193 : vector<2x108xf32>
    %196 = arith.divf %194, %195 : vector<2x108xf32>
    %197 = vector.extract_strided_slice %190 {offsets = [0, 128], sizes = [2, 36], strides = [1, 1]} : vector<2x164xf32> to vector<2x36xf32>
    %198 = math.tanh %197 : vector<2x36xf32>
    %199 = vector.extract_strided_slice %196 {offsets = [0, 0], sizes = [2, 36], strides = [1, 1]} : vector<2x108xf32> to vector<2x36xf32>
    %200 = vector.extract_strided_slice %196 {offsets = [0, 36], sizes = [2, 36], strides = [1, 1]} : vector<2x108xf32> to vector<2x36xf32>
    %201 = vector.extract_strided_slice %196 {offsets = [0, 72], sizes = [2, 36], strides = [1, 1]} : vector<2x108xf32> to vector<2x36xf32>
    %202 = arith.mulf %199, %67 : vector<2x36xf32>
    %203 = arith.mulf %200, %198 : vector<2x36xf32>
    %204 = arith.addf %202, %203 : vector<2x36xf32>
    %205 = math.tanh %204 : vector<2x36xf32>
    %206 = arith.mulf %205, %201 : vector<2x36xf32>
    %207 = tpu.concatenate %69, %206 in 1 : vector<2x36xf32>, vector<2x36xf32> -> vector<2x72xf32>
    %cst_83 = arith.constant dense<0.000000e+00> : vector<2x60xf32>
    %208 = tpu.matmul %207, %3, %cst_83 {dimension_numbers = #tpu.dot_dimension_numbers<[1], [0], [0], [1], [0, 0, 1, 1], [], []>} : vector<2x72xf32>, vector<72x60xf32>, vector<2x60xf32> -> vector<2x60xf32>
    %209 = vector.broadcast %4 : vector<1x60xf32> to vector<2x60xf32>
    %210 = arith.addf %208, %209 : vector<2x60xf32>
    %cst_84 = arith.constant 0.000000e+00 : f32
    %211 = vector.broadcast %cst_84 : f32 to vector<2x60xf32>
    %212 = arith.maximumf %210, %211 : vector<2x60xf32>
    %cst_85 = arith.constant dense<0.000000e+00> : vector<2x36xf32>
    %213 = tpu.matmul %212, %5, %cst_85 {dimension_numbers = #tpu.dot_dimension_numbers<[1], [0], [0], [1], [0, 0, 1, 1], [], []>} : vector<2x60xf32>, vector<60x36xf32>, vector<2x36xf32> -> vector<2x36xf32>
    %214 = vector.broadcast %6 : vector<1x36xf32> to vector<2x36xf32>
    %215 = arith.addf %213, %214 : vector<2x36xf32>
    %216 = arith.negf %215 : vector<2x36xf32>
    %217 = math.exp %216 : vector<2x36xf32>
    %cst_86 = arith.constant 1.000000e+00 : f32
    %218 = vector.broadcast %cst_86 : f32 to vector<2x36xf32>
    %219 = arith.addf %218, %217 : vector<2x36xf32>
    %220 = arith.divf %218, %219 : vector<2x36xf32>
    %cst_87 = arith.constant dense<0.000000e+00> : vector<2x24xf32>
    %221 = tpu.matmul %220, %7, %cst_87 {dimension_numbers = #tpu.dot_dimension_numbers<[1], [0], [0], [1], [0, 0, 1, 1], [], []>} : vector<2x36xf32>, vector<36x24xf32>, vector<2x24xf32> -> vector<2x24xf32>
    %222 = vector.broadcast %8 : vector<1x24xf32> to vector<2x24xf32>
    %223 = arith.addf %221, %222 : vector<2x24xf32>
    %cst_88 = arith.constant dense<0.000000e+00> : vector<2x16xf32>
    %224 = tpu.matmul %223, %9, %cst_88 {dimension_numbers = #tpu.dot_dimension_numbers<[1], [0], [0], [1], [0, 0, 1, 1], [], []>} : vector<2x24xf32>, vector<24x16xf32>, vector<2x16xf32> -> vector<2x16xf32>
    %225 = vector.broadcast %10 : vector<1x16xf32> to vector<2x16xf32>
    %226 = arith.addf %224, %225 : vector<2x16xf32>
    %cst_89 = arith.constant 0.000000e+00 : f32
    %227 = vector.broadcast %cst_89 : f32 to vector<2x16xf32>
    %228 = arith.maximumf %226, %227 : vector<2x16xf32>
    %cst_90 = arith.constant dense<0.000000e+00> : vector<2x12xf32>
    %229 = tpu.matmul %228, %11, %cst_90 {dimension_numbers = #tpu.dot_dimension_numbers<[1], [0], [0], [1], [0, 0, 1, 1], [], []>} : vector<2x16xf32>, vector<16x12xf32>, vector<2x12xf32> -> vector<2x12xf32>
    %230 = vector.broadcast %12 : vector<1x12xf32> to vector<2x12xf32>
    %231 = arith.addf %229, %230 : vector<2x12xf32>
    %cst_91 = arith.constant dense<0.000000e+00> : vector<2x19xf32>
    %232 = tpu.matmul %231, %13, %cst_91 {dimension_numbers = #tpu.dot_dimension_numbers<[1], [0], [0], [1], [0, 0, 1, 1], [], []>} : vector<2x12xf32>, vector<12x19xf32>, vector<2x19xf32> -> vector<2x19xf32>
    %233 = vector.broadcast %14 : vector<1x19xf32> to vector<2x19xf32>
    %234 = arith.addf %232, %233 : vector<2x19xf32>
    %cst_92 = arith.constant dense<0.000000e+00> : vector<2x228xf32>
    %235 = tpu.matmul %234, %15, %cst_92 {dimension_numbers = #tpu.dot_dimension_numbers<[1], [0], [0], [1], [0, 0, 1, 1], [], []>} : vector<2x19xf32>, vector<19x228xf32>, vector<2x228xf32> -> vector<2x228xf32>
    %236 = vector.extract_strided_slice %220 {offsets = [0, 0], sizes = [2, 22], strides = [1, 1]} : vector<2x36xf32> to vector<2x22xf32>
    %237 = vector.extract_strided_slice %220 {offsets = [0, 0], sizes = [2, 10], strides = [1, 1]} : vector<2x36xf32> to vector<2x10xf32>
    %238 = vector.extract_strided_slice %220 {offsets = [0, 22], sizes = [2, 14], strides = [1, 1]} : vector<2x36xf32> to vector<2x14xf32>
    %239 = vector.extract_strided_slice %220 {offsets = [0, 10], sizes = [2, 26], strides = [1, 1]} : vector<2x36xf32> to vector<2x26xf32>
    %240 = tpu.concatenate %236, %237, %238, %239 in 1 : vector<2x22xf32>, vector<2x10xf32>, vector<2x14xf32>, vector<2x26xf32> -> vector<2x72xf32>
    %241 = vector.extract_strided_slice %235 {offsets = [0, 0], sizes = [2, 72], strides = [1, 1]} : vector<2x228xf32> to vector<2x72xf32>
    %242 = arith.mulf %240, %241 : vector<2x72xf32>
    %cst_93 = arith.constant dense<0.000000e+00> : vector<2x72xf32>
    %243 = tpu.matmul %242, %16, %cst_93 {dimension_numbers = #tpu.dot_dimension_numbers<[1], [0], [0], [1], [0, 0, 1, 1], [], []>} : vector<2x72xf32>, vector<72x72xf32>, vector<2x72xf32> -> vector<2x72xf32>
    %244 = vector.broadcast %17 : vector<1x72xf32> to vector<2x72xf32>
    %245 = arith.addf %243, %244 : vector<2x72xf32>
    %cst_94 = arith.constant dense<0.000000e+00> : vector<2x48xf32>
    %246 = tpu.matmul %245, %18, %cst_94 {dimension_numbers = #tpu.dot_dimension_numbers<[1], [0], [0], [1], [0, 0, 1, 1], [], []>} : vector<2x72xf32>, vector<72x48xf32>, vector<2x48xf32> -> vector<2x48xf32>
    %247 = vector.broadcast %19 : vector<1x48xf32> to vector<2x48xf32>
    %248 = arith.addf %246, %247 : vector<2x48xf32>
    %cst_95 = arith.constant 0.000000e+00 : f32
    %249 = vector.broadcast %cst_95 : f32 to vector<2x48xf32>
    %250 = arith.maximumf %248, %249 : vector<2x48xf32>
    %cst_96 = arith.constant dense<0.000000e+00> : vector<2x36xf32>
    %251 = tpu.matmul %250, %20, %cst_96 {dimension_numbers = #tpu.dot_dimension_numbers<[1], [0], [0], [1], [0, 0, 1, 1], [], []>} : vector<2x48xf32>, vector<48x36xf32>, vector<2x36xf32> -> vector<2x36xf32>
    %252 = vector.broadcast %21 : vector<1x36xf32> to vector<2x36xf32>
    %253 = arith.addf %251, %252 : vector<2x36xf32>
    %254 = tpu.concatenate %220, %253 in 1 : vector<2x36xf32>, vector<2x36xf32> -> vector<2x72xf32>
    %255 = vector.extract_strided_slice %235 {offsets = [0, 72], sizes = [2, 72], strides = [1, 1]} : vector<2x228xf32> to vector<2x72xf32>
    %256 = arith.mulf %254, %255 : vector<2x72xf32>
    %cst_97 = arith.constant dense<0.000000e+00> : vector<2x24xf32>
    %257 = tpu.matmul %256, %22, %cst_97 {dimension_numbers = #tpu.dot_dimension_numbers<[1], [0], [0], [1], [0, 0, 1, 1], [], []>} : vector<2x72xf32>, vector<72x24xf32>, vector<2x24xf32> -> vector<2x24xf32>
    %258 = vector.broadcast %23 : vector<1x24xf32> to vector<2x24xf32>
    %259 = arith.addf %257, %258 : vector<2x24xf32>
    %cst_98 = arith.constant dense<0.000000e+00> : vector<2x16xf32>
    %260 = tpu.matmul %259, %24, %cst_98 {dimension_numbers = #tpu.dot_dimension_numbers<[1], [0], [0], [1], [0, 0, 1, 1], [], []>} : vector<2x24xf32>, vector<24x16xf32>, vector<2x16xf32> -> vector<2x16xf32>
    %261 = vector.broadcast %25 : vector<1x16xf32> to vector<2x16xf32>
    %262 = arith.addf %260, %261 : vector<2x16xf32>
    %cst_99 = arith.constant 0.000000e+00 : f32
    %263 = vector.broadcast %cst_99 : f32 to vector<2x16xf32>
    %264 = arith.maximumf %262, %263 : vector<2x16xf32>
    %cst_100 = arith.constant dense<0.000000e+00> : vector<2x12xf32>
    %265 = tpu.matmul %264, %26, %cst_100 {dimension_numbers = #tpu.dot_dimension_numbers<[1], [0], [0], [1], [0, 0, 1, 1], [], []>} : vector<2x16xf32>, vector<16x12xf32>, vector<2x12xf32> -> vector<2x12xf32>
    %266 = vector.broadcast %27 : vector<1x12xf32> to vector<2x12xf32>
    %267 = arith.addf %265, %266 : vector<2x12xf32>
    %268 = tpu.concatenate %220, %253, %267 in 1 : vector<2x36xf32>, vector<2x36xf32>, vector<2x12xf32> -> vector<2x84xf32>
    %269 = vector.extract_strided_slice %235 {offsets = [0, 144], sizes = [2, 84], strides = [1, 1]} : vector<2x228xf32> to vector<2x84xf32>
    %270 = arith.mulf %268, %269 : vector<2x84xf32>
    %cst_101 = arith.constant dense<0.000000e+00> : vector<2x24xf32>
    %271 = tpu.matmul %270, %28, %cst_101 {dimension_numbers = #tpu.dot_dimension_numbers<[1], [0], [0], [1], [0, 0, 1, 1], [], []>} : vector<2x84xf32>, vector<84x24xf32>, vector<2x24xf32> -> vector<2x24xf32>
    %272 = vector.broadcast %29 : vector<1x24xf32> to vector<2x24xf32>
    %273 = arith.addf %271, %272 : vector<2x24xf32>
    %cst_102 = arith.constant dense<0.000000e+00> : vector<2x16xf32>
    %274 = tpu.matmul %273, %30, %cst_102 {dimension_numbers = #tpu.dot_dimension_numbers<[1], [0], [0], [1], [0, 0, 1, 1], [], []>} : vector<2x24xf32>, vector<24x16xf32>, vector<2x16xf32> -> vector<2x16xf32>
    %275 = vector.broadcast %31 : vector<1x16xf32> to vector<2x16xf32>
    %276 = arith.addf %274, %275 : vector<2x16xf32>
    %cst_103 = arith.constant 0.000000e+00 : f32
    %277 = vector.broadcast %cst_103 : f32 to vector<2x16xf32>
    %278 = arith.maximumf %276, %277 : vector<2x16xf32>
    %cst_104 = arith.constant dense<0.000000e+00> : vector<2x12xf32>
    %279 = tpu.matmul %278, %32, %cst_104 {dimension_numbers = #tpu.dot_dimension_numbers<[1], [0], [0], [1], [0, 0, 1, 1], [], []>} : vector<2x16xf32>, vector<16x12xf32>, vector<2x12xf32> -> vector<2x12xf32>
    %280 = vector.broadcast %33 : vector<1x12xf32> to vector<2x12xf32>
    %281 = arith.addf %279, %280 : vector<2x12xf32>
    %cst_105 = arith.constant dense<0.000000e+00> : vector<2x70xf32>
    %282 = tpu.matmul %281, %34, %cst_105 {dimension_numbers = #tpu.dot_dimension_numbers<[1], [0], [0], [1], [0, 0, 1, 1], [], []>} : vector<2x12xf32>, vector<12x70xf32>, vector<2x70xf32> -> vector<2x70xf32>
    %283 = vector.broadcast %35 : vector<1x70xf32> to vector<2x70xf32>
    %284 = arith.addf %282, %283 : vector<2x70xf32>
    %cst_106 = arith.constant 0.000000e+00 : f32
    %285 = vector.broadcast %cst_106 : f32 to vector<2x70xf32>
    %286 = arith.maximumf %284, %285 : vector<2x70xf32>
    %cst_107 = arith.constant dense<0.000000e+00> : vector<2x50xf32>
    %287 = tpu.matmul %286, %36, %cst_107 {dimension_numbers = #tpu.dot_dimension_numbers<[1], [0], [0], [1], [0, 0, 1, 1], [], []>} : vector<2x70xf32>, vector<70x50xf32>, vector<2x50xf32> -> vector<2x50xf32>
    %288 = vector.broadcast %37 : vector<1x50xf32> to vector<2x50xf32>
    %289 = arith.addf %287, %288 : vector<2x50xf32>
    %290 = vector.extract_strided_slice %289 {offsets = [0, 0], sizes = [2, 14], strides = [1, 1]} : vector<2x50xf32> to vector<2x14xf32>
    %291 = arith.negf %290 : vector<2x14xf32>
    %292 = math.exp %291 : vector<2x14xf32>
    %cst_108 = arith.constant 1.000000e+00 : f32
    %293 = vector.broadcast %cst_108 : f32 to vector<2x14xf32>
    %294 = arith.addf %293, %292 : vector<2x14xf32>
    %295 = arith.divf %293, %294 : vector<2x14xf32>
    %296 = vector.extract_strided_slice %289 {offsets = [0, 14], sizes = [2, 14], strides = [1, 1]} : vector<2x50xf32> to vector<2x14xf32>
    %297 = arith.negf %296 : vector<2x14xf32>
    %298 = math.exp %297 : vector<2x14xf32>
    %cst_109 = arith.constant 1.000000e+00 : f32
    %299 = vector.broadcast %cst_109 : f32 to vector<2x14xf32>
    %300 = arith.addf %299, %298 : vector<2x14xf32>
    %301 = arith.divf %299, %300 : vector<2x14xf32>
    %302 = vector.extract_strided_slice %289 {offsets = [0, 28], sizes = [2, 14], strides = [1, 1]} : vector<2x50xf32> to vector<2x14xf32>
    %303 = math.tanh %302 : vector<2x14xf32>
    %304 = vector.extract_strided_slice %289 {offsets = [0, 42], sizes = [2, 8], strides = [1, 1]} : vector<2x50xf32> to vector<2x8xf32>
    %305 = arith.negf %304 : vector<2x8xf32>
    %306 = math.exp %305 : vector<2x8xf32>
    %cst_110 = arith.constant 1.000000e+00 : f32
    %307 = vector.broadcast %cst_110 : f32 to vector<2x8xf32>
    %308 = arith.addf %307, %306 : vector<2x8xf32>
    %309 = arith.divf %307, %308 : vector<2x8xf32>
    %310 = arith.mulf %295, %175 : vector<2x14xf32>
    %311 = arith.mulf %301, %303 : vector<2x14xf32>
    %312 = arith.addf %310, %311 : vector<2x14xf32>
    %cst_111 = arith.constant dense<0xFF800000> : vector<2xf32>
    %313 = vector.multi_reduction <maximumf>, %309, %cst_111 [1] : vector<2x8xf32> to vector<2xf32>
    %cst_112 = arith.constant 0xFF800000 : f32
    %314 = vector.broadcast %cst_112 : f32 to vector<2xf32>
    %315 = arith.maximumf %314, %313 : vector<2xf32>
    %316 = vector.shape_cast %315 : vector<2xf32> to vector<2x1xf32>
    %317 = vector.broadcast %316 : vector<2x1xf32> to vector<2x8xf32>
    %318 = arith.subf %309, %317 : vector<2x8xf32>
    %319 = math.exp %318 : vector<2x8xf32>
    %cst_113 = arith.constant dense<0.000000e+00> : vector<2xf32>
    %320 = vector.multi_reduction <add>, %319, %cst_113 [1] : vector<2x8xf32> to vector<2xf32>
    %321 = vector.shape_cast %320 : vector<2xf32> to vector<2x1xf32>
    %322 = vector.broadcast %321 : vector<2x1xf32> to vector<2x8xf32>
    %323 = arith.divf %319, %322 : vector<2x8xf32>
    %324 = tpu.concatenate %206, %323 in 1 : vector<2x36xf32>, vector<2x8xf32> -> vector<2x44xf32>
    %cst_114 = arith.constant dense<0.000000e+00> : vector<2x164xf32>
    %325 = tpu.matmul %324, %1, %cst_114 {dimension_numbers = #tpu.dot_dimension_numbers<[1], [0], [0], [1], [0, 0, 1, 1], [], []>} : vector<2x44xf32>, vector<44x164xf32>, vector<2x164xf32> -> vector<2x164xf32>
    %326 = vector.extract_strided_slice %45 {offsets = [4, 0], sizes = [2, 164], strides = [1, 1]} : vector<8x164xf32> to vector<2x164xf32>
    %327 = arith.addf %325, %326 : vector<2x164xf32>
    %328 = vector.extract_strided_slice %327 {offsets = [0, 0], sizes = [2, 108], strides = [1, 1]} : vector<2x164xf32> to vector<2x108xf32>
    %329 = arith.negf %328 : vector<2x108xf32>
    %330 = math.exp %329 : vector<2x108xf32>
    %cst_115 = arith.constant 1.000000e+00 : f32
    %331 = vector.broadcast %cst_115 : f32 to vector<2x108xf32>
    %332 = arith.addf %331, %330 : vector<2x108xf32>
    %333 = arith.divf %331, %332 : vector<2x108xf32>
    %334 = vector.extract_strided_slice %327 {offsets = [0, 128], sizes = [2, 36], strides = [1, 1]} : vector<2x164xf32> to vector<2x36xf32>
    %335 = math.tanh %334 : vector<2x36xf32>
    %336 = vector.extract_strided_slice %333 {offsets = [0, 0], sizes = [2, 36], strides = [1, 1]} : vector<2x108xf32> to vector<2x36xf32>
    %337 = vector.extract_strided_slice %333 {offsets = [0, 36], sizes = [2, 36], strides = [1, 1]} : vector<2x108xf32> to vector<2x36xf32>
    %338 = vector.extract_strided_slice %333 {offsets = [0, 72], sizes = [2, 36], strides = [1, 1]} : vector<2x108xf32> to vector<2x36xf32>
    %339 = arith.mulf %336, %204 : vector<2x36xf32>
    %340 = arith.mulf %337, %335 : vector<2x36xf32>
    %341 = arith.addf %339, %340 : vector<2x36xf32>
    %342 = math.tanh %341 : vector<2x36xf32>
    %343 = arith.mulf %342, %338 : vector<2x36xf32>
    %344 = tpu.concatenate %206, %343 in 1 : vector<2x36xf32>, vector<2x36xf32> -> vector<2x72xf32>
    %cst_116 = arith.constant dense<0.000000e+00> : vector<2x60xf32>
    %345 = tpu.matmul %344, %3, %cst_116 {dimension_numbers = #tpu.dot_dimension_numbers<[1], [0], [0], [1], [0, 0, 1, 1], [], []>} : vector<2x72xf32>, vector<72x60xf32>, vector<2x60xf32> -> vector<2x60xf32>
    %346 = vector.broadcast %4 : vector<1x60xf32> to vector<2x60xf32>
    %347 = arith.addf %345, %346 : vector<2x60xf32>
    %cst_117 = arith.constant 0.000000e+00 : f32
    %348 = vector.broadcast %cst_117 : f32 to vector<2x60xf32>
    %349 = arith.maximumf %347, %348 : vector<2x60xf32>
    %cst_118 = arith.constant dense<0.000000e+00> : vector<2x36xf32>
    %350 = tpu.matmul %349, %5, %cst_118 {dimension_numbers = #tpu.dot_dimension_numbers<[1], [0], [0], [1], [0, 0, 1, 1], [], []>} : vector<2x60xf32>, vector<60x36xf32>, vector<2x36xf32> -> vector<2x36xf32>
    %351 = vector.broadcast %6 : vector<1x36xf32> to vector<2x36xf32>
    %352 = arith.addf %350, %351 : vector<2x36xf32>
    %353 = arith.negf %352 : vector<2x36xf32>
    %354 = math.exp %353 : vector<2x36xf32>
    %cst_119 = arith.constant 1.000000e+00 : f32
    %355 = vector.broadcast %cst_119 : f32 to vector<2x36xf32>
    %356 = arith.addf %355, %354 : vector<2x36xf32>
    %357 = arith.divf %355, %356 : vector<2x36xf32>
    %cst_120 = arith.constant dense<0.000000e+00> : vector<2x24xf32>
    %358 = tpu.matmul %357, %7, %cst_120 {dimension_numbers = #tpu.dot_dimension_numbers<[1], [0], [0], [1], [0, 0, 1, 1], [], []>} : vector<2x36xf32>, vector<36x24xf32>, vector<2x24xf32> -> vector<2x24xf32>
    %359 = vector.broadcast %8 : vector<1x24xf32> to vector<2x24xf32>
    %360 = arith.addf %358, %359 : vector<2x24xf32>
    %cst_121 = arith.constant dense<0.000000e+00> : vector<2x16xf32>
    %361 = tpu.matmul %360, %9, %cst_121 {dimension_numbers = #tpu.dot_dimension_numbers<[1], [0], [0], [1], [0, 0, 1, 1], [], []>} : vector<2x24xf32>, vector<24x16xf32>, vector<2x16xf32> -> vector<2x16xf32>
    %362 = vector.broadcast %10 : vector<1x16xf32> to vector<2x16xf32>
    %363 = arith.addf %361, %362 : vector<2x16xf32>
    %cst_122 = arith.constant 0.000000e+00 : f32
    %364 = vector.broadcast %cst_122 : f32 to vector<2x16xf32>
    %365 = arith.maximumf %363, %364 : vector<2x16xf32>
    %cst_123 = arith.constant dense<0.000000e+00> : vector<2x12xf32>
    %366 = tpu.matmul %365, %11, %cst_123 {dimension_numbers = #tpu.dot_dimension_numbers<[1], [0], [0], [1], [0, 0, 1, 1], [], []>} : vector<2x16xf32>, vector<16x12xf32>, vector<2x12xf32> -> vector<2x12xf32>
    %367 = vector.broadcast %12 : vector<1x12xf32> to vector<2x12xf32>
    %368 = arith.addf %366, %367 : vector<2x12xf32>
    %cst_124 = arith.constant dense<0.000000e+00> : vector<2x19xf32>
    %369 = tpu.matmul %368, %13, %cst_124 {dimension_numbers = #tpu.dot_dimension_numbers<[1], [0], [0], [1], [0, 0, 1, 1], [], []>} : vector<2x12xf32>, vector<12x19xf32>, vector<2x19xf32> -> vector<2x19xf32>
    %370 = vector.broadcast %14 : vector<1x19xf32> to vector<2x19xf32>
    %371 = arith.addf %369, %370 : vector<2x19xf32>
    %cst_125 = arith.constant dense<0.000000e+00> : vector<2x228xf32>
    %372 = tpu.matmul %371, %15, %cst_125 {dimension_numbers = #tpu.dot_dimension_numbers<[1], [0], [0], [1], [0, 0, 1, 1], [], []>} : vector<2x19xf32>, vector<19x228xf32>, vector<2x228xf32> -> vector<2x228xf32>
    %373 = vector.extract_strided_slice %357 {offsets = [0, 0], sizes = [2, 22], strides = [1, 1]} : vector<2x36xf32> to vector<2x22xf32>
    %374 = vector.extract_strided_slice %357 {offsets = [0, 0], sizes = [2, 10], strides = [1, 1]} : vector<2x36xf32> to vector<2x10xf32>
    %375 = vector.extract_strided_slice %357 {offsets = [0, 22], sizes = [2, 14], strides = [1, 1]} : vector<2x36xf32> to vector<2x14xf32>
    %376 = vector.extract_strided_slice %357 {offsets = [0, 10], sizes = [2, 26], strides = [1, 1]} : vector<2x36xf32> to vector<2x26xf32>
    %377 = tpu.concatenate %373, %374, %375, %376 in 1 : vector<2x22xf32>, vector<2x10xf32>, vector<2x14xf32>, vector<2x26xf32> -> vector<2x72xf32>
    %378 = vector.extract_strided_slice %372 {offsets = [0, 0], sizes = [2, 72], strides = [1, 1]} : vector<2x228xf32> to vector<2x72xf32>
    %379 = arith.mulf %377, %378 : vector<2x72xf32>
    %cst_126 = arith.constant dense<0.000000e+00> : vector<2x72xf32>
    %380 = tpu.matmul %379, %16, %cst_126 {dimension_numbers = #tpu.dot_dimension_numbers<[1], [0], [0], [1], [0, 0, 1, 1], [], []>} : vector<2x72xf32>, vector<72x72xf32>, vector<2x72xf32> -> vector<2x72xf32>
    %381 = vector.broadcast %17 : vector<1x72xf32> to vector<2x72xf32>
    %382 = arith.addf %380, %381 : vector<2x72xf32>
    %cst_127 = arith.constant dense<0.000000e+00> : vector<2x48xf32>
    %383 = tpu.matmul %382, %18, %cst_127 {dimension_numbers = #tpu.dot_dimension_numbers<[1], [0], [0], [1], [0, 0, 1, 1], [], []>} : vector<2x72xf32>, vector<72x48xf32>, vector<2x48xf32> -> vector<2x48xf32>
    %384 = vector.broadcast %19 : vector<1x48xf32> to vector<2x48xf32>
    %385 = arith.addf %383, %384 : vector<2x48xf32>
    %cst_128 = arith.constant 0.000000e+00 : f32
    %386 = vector.broadcast %cst_128 : f32 to vector<2x48xf32>
    %387 = arith.maximumf %385, %386 : vector<2x48xf32>
    %cst_129 = arith.constant dense<0.000000e+00> : vector<2x36xf32>
    %388 = tpu.matmul %387, %20, %cst_129 {dimension_numbers = #tpu.dot_dimension_numbers<[1], [0], [0], [1], [0, 0, 1, 1], [], []>} : vector<2x48xf32>, vector<48x36xf32>, vector<2x36xf32> -> vector<2x36xf32>
    %389 = vector.broadcast %21 : vector<1x36xf32> to vector<2x36xf32>
    %390 = arith.addf %388, %389 : vector<2x36xf32>
    %391 = tpu.concatenate %357, %390 in 1 : vector<2x36xf32>, vector<2x36xf32> -> vector<2x72xf32>
    %392 = vector.extract_strided_slice %372 {offsets = [0, 72], sizes = [2, 72], strides = [1, 1]} : vector<2x228xf32> to vector<2x72xf32>
    %393 = arith.mulf %391, %392 : vector<2x72xf32>
    %cst_130 = arith.constant dense<0.000000e+00> : vector<2x24xf32>
    %394 = tpu.matmul %393, %22, %cst_130 {dimension_numbers = #tpu.dot_dimension_numbers<[1], [0], [0], [1], [0, 0, 1, 1], [], []>} : vector<2x72xf32>, vector<72x24xf32>, vector<2x24xf32> -> vector<2x24xf32>
    %395 = vector.broadcast %23 : vector<1x24xf32> to vector<2x24xf32>
    %396 = arith.addf %394, %395 : vector<2x24xf32>
    %cst_131 = arith.constant dense<0.000000e+00> : vector<2x16xf32>
    %397 = tpu.matmul %396, %24, %cst_131 {dimension_numbers = #tpu.dot_dimension_numbers<[1], [0], [0], [1], [0, 0, 1, 1], [], []>} : vector<2x24xf32>, vector<24x16xf32>, vector<2x16xf32> -> vector<2x16xf32>
    %398 = vector.broadcast %25 : vector<1x16xf32> to vector<2x16xf32>
    %399 = arith.addf %397, %398 : vector<2x16xf32>
    %cst_132 = arith.constant 0.000000e+00 : f32
    %400 = vector.broadcast %cst_132 : f32 to vector<2x16xf32>
    %401 = arith.maximumf %399, %400 : vector<2x16xf32>
    %cst_133 = arith.constant dense<0.000000e+00> : vector<2x12xf32>
    %402 = tpu.matmul %401, %26, %cst_133 {dimension_numbers = #tpu.dot_dimension_numbers<[1], [0], [0], [1], [0, 0, 1, 1], [], []>} : vector<2x16xf32>, vector<16x12xf32>, vector<2x12xf32> -> vector<2x12xf32>
    %403 = vector.broadcast %27 : vector<1x12xf32> to vector<2x12xf32>
    %404 = arith.addf %402, %403 : vector<2x12xf32>
    %405 = tpu.concatenate %357, %390, %404 in 1 : vector<2x36xf32>, vector<2x36xf32>, vector<2x12xf32> -> vector<2x84xf32>
    %406 = vector.extract_strided_slice %372 {offsets = [0, 144], sizes = [2, 84], strides = [1, 1]} : vector<2x228xf32> to vector<2x84xf32>
    %407 = arith.mulf %405, %406 : vector<2x84xf32>
    %cst_134 = arith.constant dense<0.000000e+00> : vector<2x24xf32>
    %408 = tpu.matmul %407, %28, %cst_134 {dimension_numbers = #tpu.dot_dimension_numbers<[1], [0], [0], [1], [0, 0, 1, 1], [], []>} : vector<2x84xf32>, vector<84x24xf32>, vector<2x24xf32> -> vector<2x24xf32>
    %409 = vector.broadcast %29 : vector<1x24xf32> to vector<2x24xf32>
    %410 = arith.addf %408, %409 : vector<2x24xf32>
    %cst_135 = arith.constant dense<0.000000e+00> : vector<2x16xf32>
    %411 = tpu.matmul %410, %30, %cst_135 {dimension_numbers = #tpu.dot_dimension_numbers<[1], [0], [0], [1], [0, 0, 1, 1], [], []>} : vector<2x24xf32>, vector<24x16xf32>, vector<2x16xf32> -> vector<2x16xf32>
    %412 = vector.broadcast %31 : vector<1x16xf32> to vector<2x16xf32>
    %413 = arith.addf %411, %412 : vector<2x16xf32>
    %cst_136 = arith.constant 0.000000e+00 : f32
    %414 = vector.broadcast %cst_136 : f32 to vector<2x16xf32>
    %415 = arith.maximumf %413, %414 : vector<2x16xf32>
    %cst_137 = arith.constant dense<0.000000e+00> : vector<2x12xf32>
    %416 = tpu.matmul %415, %32, %cst_137 {dimension_numbers = #tpu.dot_dimension_numbers<[1], [0], [0], [1], [0, 0, 1, 1], [], []>} : vector<2x16xf32>, vector<16x12xf32>, vector<2x12xf32> -> vector<2x12xf32>
    %417 = vector.broadcast %33 : vector<1x12xf32> to vector<2x12xf32>
    %418 = arith.addf %416, %417 : vector<2x12xf32>
    %cst_138 = arith.constant dense<0.000000e+00> : vector<2x70xf32>
    %419 = tpu.matmul %418, %34, %cst_138 {dimension_numbers = #tpu.dot_dimension_numbers<[1], [0], [0], [1], [0, 0, 1, 1], [], []>} : vector<2x12xf32>, vector<12x70xf32>, vector<2x70xf32> -> vector<2x70xf32>
    %420 = vector.broadcast %35 : vector<1x70xf32> to vector<2x70xf32>
    %421 = arith.addf %419, %420 : vector<2x70xf32>
    %cst_139 = arith.constant 0.000000e+00 : f32
    %422 = vector.broadcast %cst_139 : f32 to vector<2x70xf32>
    %423 = arith.maximumf %421, %422 : vector<2x70xf32>
    %cst_140 = arith.constant dense<0.000000e+00> : vector<2x50xf32>
    %424 = tpu.matmul %423, %36, %cst_140 {dimension_numbers = #tpu.dot_dimension_numbers<[1], [0], [0], [1], [0, 0, 1, 1], [], []>} : vector<2x70xf32>, vector<70x50xf32>, vector<2x50xf32> -> vector<2x50xf32>
    %425 = vector.broadcast %37 : vector<1x50xf32> to vector<2x50xf32>
    %426 = arith.addf %424, %425 : vector<2x50xf32>
    %427 = vector.extract_strided_slice %426 {offsets = [0, 0], sizes = [2, 14], strides = [1, 1]} : vector<2x50xf32> to vector<2x14xf32>
    %428 = arith.negf %427 : vector<2x14xf32>
    %429 = math.exp %428 : vector<2x14xf32>
    %cst_141 = arith.constant 1.000000e+00 : f32
    %430 = vector.broadcast %cst_141 : f32 to vector<2x14xf32>
    %431 = arith.addf %430, %429 : vector<2x14xf32>
    %432 = arith.divf %430, %431 : vector<2x14xf32>
    %433 = vector.extract_strided_slice %426 {offsets = [0, 14], sizes = [2, 14], strides = [1, 1]} : vector<2x50xf32> to vector<2x14xf32>
    %434 = arith.negf %433 : vector<2x14xf32>
    %435 = math.exp %434 : vector<2x14xf32>
    %cst_142 = arith.constant 1.000000e+00 : f32
    %436 = vector.broadcast %cst_142 : f32 to vector<2x14xf32>
    %437 = arith.addf %436, %435 : vector<2x14xf32>
    %438 = arith.divf %436, %437 : vector<2x14xf32>
    %439 = vector.extract_strided_slice %426 {offsets = [0, 28], sizes = [2, 14], strides = [1, 1]} : vector<2x50xf32> to vector<2x14xf32>
    %440 = math.tanh %439 : vector<2x14xf32>
    %441 = vector.extract_strided_slice %426 {offsets = [0, 42], sizes = [2, 8], strides = [1, 1]} : vector<2x50xf32> to vector<2x8xf32>
    %442 = arith.negf %441 : vector<2x8xf32>
    %443 = math.exp %442 : vector<2x8xf32>
    %cst_143 = arith.constant 1.000000e+00 : f32
    %444 = vector.broadcast %cst_143 : f32 to vector<2x8xf32>
    %445 = arith.addf %444, %443 : vector<2x8xf32>
    %446 = arith.divf %444, %445 : vector<2x8xf32>
    %447 = arith.mulf %432, %312 : vector<2x14xf32>
    %448 = arith.mulf %438, %440 : vector<2x14xf32>
    %449 = arith.addf %447, %448 : vector<2x14xf32>
    %cst_144 = arith.constant dense<0xFF800000> : vector<2xf32>
    %450 = vector.multi_reduction <maximumf>, %446, %cst_144 [1] : vector<2x8xf32> to vector<2xf32>
    %cst_145 = arith.constant 0xFF800000 : f32
    %451 = vector.broadcast %cst_145 : f32 to vector<2xf32>
    %452 = arith.maximumf %451, %450 : vector<2xf32>
    %453 = vector.shape_cast %452 : vector<2xf32> to vector<2x1xf32>
    %454 = vector.broadcast %453 : vector<2x1xf32> to vector<2x8xf32>
    %455 = arith.subf %446, %454 : vector<2x8xf32>
    %456 = math.exp %455 : vector<2x8xf32>
    %cst_146 = arith.constant dense<0.000000e+00> : vector<2xf32>
    %457 = vector.multi_reduction <add>, %456, %cst_146 [1] : vector<2x8xf32> to vector<2xf32>
    %458 = vector.shape_cast %457 : vector<2xf32> to vector<2x1xf32>
    %459 = vector.broadcast %458 : vector<2x1xf32> to vector<2x8xf32>
    %460 = arith.divf %456, %459 : vector<2x8xf32>
    %461 = tpu.concatenate %343, %460 in 1 : vector<2x36xf32>, vector<2x8xf32> -> vector<2x44xf32>
    %cst_147 = arith.constant dense<0.000000e+00> : vector<2x164xf32>
    %462 = tpu.matmul %461, %1, %cst_147 {dimension_numbers = #tpu.dot_dimension_numbers<[1], [0], [0], [1], [0, 0, 1, 1], [], []>} : vector<2x44xf32>, vector<44x164xf32>, vector<2x164xf32> -> vector<2x164xf32>
    %463 = vector.extract_strided_slice %45 {offsets = [6, 0], sizes = [2, 164], strides = [1, 1]} : vector<8x164xf32> to vector<2x164xf32>
    %464 = arith.addf %462, %463 : vector<2x164xf32>
    %465 = vector.extract_strided_slice %464 {offsets = [0, 0], sizes = [2, 108], strides = [1, 1]} : vector<2x164xf32> to vector<2x108xf32>
    %466 = arith.negf %465 : vector<2x108xf32>
    %467 = math.exp %466 : vector<2x108xf32>
    %cst_148 = arith.constant 1.000000e+00 : f32
    %468 = vector.broadcast %cst_148 : f32 to vector<2x108xf32>
    %469 = arith.addf %468, %467 : vector<2x108xf32>
    %470 = arith.divf %468, %469 : vector<2x108xf32>
    %471 = vector.extract_strided_slice %464 {offsets = [0, 128], sizes = [2, 36], strides = [1, 1]} : vector<2x164xf32> to vector<2x36xf32>
    %472 = math.tanh %471 : vector<2x36xf32>
    %473 = vector.extract_strided_slice %470 {offsets = [0, 0], sizes = [2, 36], strides = [1, 1]} : vector<2x108xf32> to vector<2x36xf32>
    %474 = vector.extract_strided_slice %470 {offsets = [0, 36], sizes = [2, 36], strides = [1, 1]} : vector<2x108xf32> to vector<2x36xf32>
    %475 = vector.extract_strided_slice %470 {offsets = [0, 72], sizes = [2, 36], strides = [1, 1]} : vector<2x108xf32> to vector<2x36xf32>
    %476 = arith.mulf %473, %341 : vector<2x36xf32>
    %477 = arith.mulf %474, %472 : vector<2x36xf32>
    %478 = arith.addf %476, %477 : vector<2x36xf32>
    %479 = math.tanh %478 : vector<2x36xf32>
    %480 = arith.mulf %479, %475 : vector<2x36xf32>
    %481 = tpu.concatenate %343, %480 in 1 : vector<2x36xf32>, vector<2x36xf32> -> vector<2x72xf32>
    %cst_149 = arith.constant dense<0.000000e+00> : vector<2x60xf32>
    %482 = tpu.matmul %481, %3, %cst_149 {dimension_numbers = #tpu.dot_dimension_numbers<[1], [0], [0], [1], [0, 0, 1, 1], [], []>} : vector<2x72xf32>, vector<72x60xf32>, vector<2x60xf32> -> vector<2x60xf32>
    %483 = vector.broadcast %4 : vector<1x60xf32> to vector<2x60xf32>
    %484 = arith.addf %482, %483 : vector<2x60xf32>
    %cst_150 = arith.constant 0.000000e+00 : f32
    %485 = vector.broadcast %cst_150 : f32 to vector<2x60xf32>
    %486 = arith.maximumf %484, %485 : vector<2x60xf32>
    %cst_151 = arith.constant dense<0.000000e+00> : vector<2x36xf32>
    %487 = tpu.matmul %486, %5, %cst_151 {dimension_numbers = #tpu.dot_dimension_numbers<[1], [0], [0], [1], [0, 0, 1, 1], [], []>} : vector<2x60xf32>, vector<60x36xf32>, vector<2x36xf32> -> vector<2x36xf32>
    %488 = vector.broadcast %6 : vector<1x36xf32> to vector<2x36xf32>
    %489 = arith.addf %487, %488 : vector<2x36xf32>
    %490 = arith.negf %489 : vector<2x36xf32>
    %491 = math.exp %490 : vector<2x36xf32>
    %cst_152 = arith.constant 1.000000e+00 : f32
    %492 = vector.broadcast %cst_152 : f32 to vector<2x36xf32>
    %493 = arith.addf %492, %491 : vector<2x36xf32>
    %494 = arith.divf %492, %493 : vector<2x36xf32>
    %cst_153 = arith.constant dense<0.000000e+00> : vector<2x24xf32>
    %495 = tpu.matmul %494, %7, %cst_153 {dimension_numbers = #tpu.dot_dimension_numbers<[1], [0], [0], [1], [0, 0, 1, 1], [], []>} : vector<2x36xf32>, vector<36x24xf32>, vector<2x24xf32> -> vector<2x24xf32>
    %496 = vector.broadcast %8 : vector<1x24xf32> to vector<2x24xf32>
    %497 = arith.addf %495, %496 : vector<2x24xf32>
    %cst_154 = arith.constant dense<0.000000e+00> : vector<2x16xf32>
    %498 = tpu.matmul %497, %9, %cst_154 {dimension_numbers = #tpu.dot_dimension_numbers<[1], [0], [0], [1], [0, 0, 1, 1], [], []>} : vector<2x24xf32>, vector<24x16xf32>, vector<2x16xf32> -> vector<2x16xf32>
    %499 = vector.broadcast %10 : vector<1x16xf32> to vector<2x16xf32>
    %500 = arith.addf %498, %499 : vector<2x16xf32>
    %cst_155 = arith.constant 0.000000e+00 : f32
    %501 = vector.broadcast %cst_155 : f32 to vector<2x16xf32>
    %502 = arith.maximumf %500, %501 : vector<2x16xf32>
    %cst_156 = arith.constant dense<0.000000e+00> : vector<2x12xf32>
    %503 = tpu.matmul %502, %11, %cst_156 {dimension_numbers = #tpu.dot_dimension_numbers<[1], [0], [0], [1], [0, 0, 1, 1], [], []>} : vector<2x16xf32>, vector<16x12xf32>, vector<2x12xf32> -> vector<2x12xf32>
    %504 = vector.broadcast %12 : vector<1x12xf32> to vector<2x12xf32>
    %505 = arith.addf %503, %504 : vector<2x12xf32>
    %cst_157 = arith.constant dense<0.000000e+00> : vector<2x19xf32>
    %506 = tpu.matmul %505, %13, %cst_157 {dimension_numbers = #tpu.dot_dimension_numbers<[1], [0], [0], [1], [0, 0, 1, 1], [], []>} : vector<2x12xf32>, vector<12x19xf32>, vector<2x19xf32> -> vector<2x19xf32>
    %507 = vector.broadcast %14 : vector<1x19xf32> to vector<2x19xf32>
    %508 = arith.addf %506, %507 : vector<2x19xf32>
    %cst_158 = arith.constant dense<0.000000e+00> : vector<2x228xf32>
    %509 = tpu.matmul %508, %15, %cst_158 {dimension_numbers = #tpu.dot_dimension_numbers<[1], [0], [0], [1], [0, 0, 1, 1], [], []>} : vector<2x19xf32>, vector<19x228xf32>, vector<2x228xf32> -> vector<2x228xf32>
    %510 = vector.extract_strided_slice %494 {offsets = [0, 0], sizes = [2, 22], strides = [1, 1]} : vector<2x36xf32> to vector<2x22xf32>
    %511 = vector.extract_strided_slice %494 {offsets = [0, 0], sizes = [2, 10], strides = [1, 1]} : vector<2x36xf32> to vector<2x10xf32>
    %512 = vector.extract_strided_slice %494 {offsets = [0, 22], sizes = [2, 14], strides = [1, 1]} : vector<2x36xf32> to vector<2x14xf32>
    %513 = vector.extract_strided_slice %494 {offsets = [0, 10], sizes = [2, 26], strides = [1, 1]} : vector<2x36xf32> to vector<2x26xf32>
    %514 = tpu.concatenate %510, %511, %512, %513 in 1 : vector<2x22xf32>, vector<2x10xf32>, vector<2x14xf32>, vector<2x26xf32> -> vector<2x72xf32>
    %515 = vector.extract_strided_slice %509 {offsets = [0, 0], sizes = [2, 72], strides = [1, 1]} : vector<2x228xf32> to vector<2x72xf32>
    %516 = arith.mulf %514, %515 : vector<2x72xf32>
    %cst_159 = arith.constant dense<0.000000e+00> : vector<2x72xf32>
    %517 = tpu.matmul %516, %16, %cst_159 {dimension_numbers = #tpu.dot_dimension_numbers<[1], [0], [0], [1], [0, 0, 1, 1], [], []>} : vector<2x72xf32>, vector<72x72xf32>, vector<2x72xf32> -> vector<2x72xf32>
    %518 = vector.broadcast %17 : vector<1x72xf32> to vector<2x72xf32>
    %519 = arith.addf %517, %518 : vector<2x72xf32>
    %cst_160 = arith.constant dense<0.000000e+00> : vector<2x48xf32>
    %520 = tpu.matmul %519, %18, %cst_160 {dimension_numbers = #tpu.dot_dimension_numbers<[1], [0], [0], [1], [0, 0, 1, 1], [], []>} : vector<2x72xf32>, vector<72x48xf32>, vector<2x48xf32> -> vector<2x48xf32>
    %521 = vector.broadcast %19 : vector<1x48xf32> to vector<2x48xf32>
    %522 = arith.addf %520, %521 : vector<2x48xf32>
    %cst_161 = arith.constant 0.000000e+00 : f32
    %523 = vector.broadcast %cst_161 : f32 to vector<2x48xf32>
    %524 = arith.maximumf %522, %523 : vector<2x48xf32>
    %cst_162 = arith.constant dense<0.000000e+00> : vector<2x36xf32>
    %525 = tpu.matmul %524, %20, %cst_162 {dimension_numbers = #tpu.dot_dimension_numbers<[1], [0], [0], [1], [0, 0, 1, 1], [], []>} : vector<2x48xf32>, vector<48x36xf32>, vector<2x36xf32> -> vector<2x36xf32>
    %526 = vector.broadcast %21 : vector<1x36xf32> to vector<2x36xf32>
    %527 = arith.addf %525, %526 : vector<2x36xf32>
    %528 = tpu.concatenate %494, %527 in 1 : vector<2x36xf32>, vector<2x36xf32> -> vector<2x72xf32>
    %529 = vector.extract_strided_slice %509 {offsets = [0, 72], sizes = [2, 72], strides = [1, 1]} : vector<2x228xf32> to vector<2x72xf32>
    %530 = arith.mulf %528, %529 : vector<2x72xf32>
    %cst_163 = arith.constant dense<0.000000e+00> : vector<2x24xf32>
    %531 = tpu.matmul %530, %22, %cst_163 {dimension_numbers = #tpu.dot_dimension_numbers<[1], [0], [0], [1], [0, 0, 1, 1], [], []>} : vector<2x72xf32>, vector<72x24xf32>, vector<2x24xf32> -> vector<2x24xf32>
    %532 = vector.broadcast %23 : vector<1x24xf32> to vector<2x24xf32>
    %533 = arith.addf %531, %532 : vector<2x24xf32>
    %cst_164 = arith.constant dense<0.000000e+00> : vector<2x16xf32>
    %534 = tpu.matmul %533, %24, %cst_164 {dimension_numbers = #tpu.dot_dimension_numbers<[1], [0], [0], [1], [0, 0, 1, 1], [], []>} : vector<2x24xf32>, vector<24x16xf32>, vector<2x16xf32> -> vector<2x16xf32>
    %535 = vector.broadcast %25 : vector<1x16xf32> to vector<2x16xf32>
    %536 = arith.addf %534, %535 : vector<2x16xf32>
    %cst_165 = arith.constant 0.000000e+00 : f32
    %537 = vector.broadcast %cst_165 : f32 to vector<2x16xf32>
    %538 = arith.maximumf %536, %537 : vector<2x16xf32>
    %cst_166 = arith.constant dense<0.000000e+00> : vector<2x12xf32>
    %539 = tpu.matmul %538, %26, %cst_166 {dimension_numbers = #tpu.dot_dimension_numbers<[1], [0], [0], [1], [0, 0, 1, 1], [], []>} : vector<2x16xf32>, vector<16x12xf32>, vector<2x12xf32> -> vector<2x12xf32>
    %540 = vector.broadcast %27 : vector<1x12xf32> to vector<2x12xf32>
    %541 = arith.addf %539, %540 : vector<2x12xf32>
    %542 = tpu.concatenate %494, %527, %541 in 1 : vector<2x36xf32>, vector<2x36xf32>, vector<2x12xf32> -> vector<2x84xf32>
    %543 = vector.extract_strided_slice %509 {offsets = [0, 144], sizes = [2, 84], strides = [1, 1]} : vector<2x228xf32> to vector<2x84xf32>
    %544 = arith.mulf %542, %543 : vector<2x84xf32>
    %cst_167 = arith.constant dense<0.000000e+00> : vector<2x24xf32>
    %545 = tpu.matmul %544, %28, %cst_167 {dimension_numbers = #tpu.dot_dimension_numbers<[1], [0], [0], [1], [0, 0, 1, 1], [], []>} : vector<2x84xf32>, vector<84x24xf32>, vector<2x24xf32> -> vector<2x24xf32>
    %546 = vector.broadcast %29 : vector<1x24xf32> to vector<2x24xf32>
    %547 = arith.addf %545, %546 : vector<2x24xf32>
    %cst_168 = arith.constant dense<0.000000e+00> : vector<2x16xf32>
    %548 = tpu.matmul %547, %30, %cst_168 {dimension_numbers = #tpu.dot_dimension_numbers<[1], [0], [0], [1], [0, 0, 1, 1], [], []>} : vector<2x24xf32>, vector<24x16xf32>, vector<2x16xf32> -> vector<2x16xf32>
    %549 = vector.broadcast %31 : vector<1x16xf32> to vector<2x16xf32>
    %550 = arith.addf %548, %549 : vector<2x16xf32>
    %cst_169 = arith.constant 0.000000e+00 : f32
    %551 = vector.broadcast %cst_169 : f32 to vector<2x16xf32>
    %552 = arith.maximumf %550, %551 : vector<2x16xf32>
    %cst_170 = arith.constant dense<0.000000e+00> : vector<2x12xf32>
    %553 = tpu.matmul %552, %32, %cst_170 {dimension_numbers = #tpu.dot_dimension_numbers<[1], [0], [0], [1], [0, 0, 1, 1], [], []>} : vector<2x16xf32>, vector<16x12xf32>, vector<2x12xf32> -> vector<2x12xf32>
    %554 = vector.broadcast %33 : vector<1x12xf32> to vector<2x12xf32>
    %555 = arith.addf %553, %554 : vector<2x12xf32>
    %cst_171 = arith.constant dense<0.000000e+00> : vector<2x70xf32>
    %556 = tpu.matmul %555, %34, %cst_171 {dimension_numbers = #tpu.dot_dimension_numbers<[1], [0], [0], [1], [0, 0, 1, 1], [], []>} : vector<2x12xf32>, vector<12x70xf32>, vector<2x70xf32> -> vector<2x70xf32>
    %557 = vector.broadcast %35 : vector<1x70xf32> to vector<2x70xf32>
    %558 = arith.addf %556, %557 : vector<2x70xf32>
    %cst_172 = arith.constant 0.000000e+00 : f32
    %559 = vector.broadcast %cst_172 : f32 to vector<2x70xf32>
    %560 = arith.maximumf %558, %559 : vector<2x70xf32>
    %cst_173 = arith.constant dense<0.000000e+00> : vector<2x50xf32>
    %561 = tpu.matmul %560, %36, %cst_173 {dimension_numbers = #tpu.dot_dimension_numbers<[1], [0], [0], [1], [0, 0, 1, 1], [], []>} : vector<2x70xf32>, vector<70x50xf32>, vector<2x50xf32> -> vector<2x50xf32>
    %562 = vector.broadcast %37 : vector<1x50xf32> to vector<2x50xf32>
    %563 = arith.addf %561, %562 : vector<2x50xf32>
    %564 = vector.extract_strided_slice %563 {offsets = [0, 0], sizes = [2, 14], strides = [1, 1]} : vector<2x50xf32> to vector<2x14xf32>
    %565 = arith.negf %564 : vector<2x14xf32>
    %566 = math.exp %565 : vector<2x14xf32>
    %cst_174 = arith.constant 1.000000e+00 : f32
    %567 = vector.broadcast %cst_174 : f32 to vector<2x14xf32>
    %568 = arith.addf %567, %566 : vector<2x14xf32>
    %569 = arith.divf %567, %568 : vector<2x14xf32>
    %570 = vector.extract_strided_slice %563 {offsets = [0, 14], sizes = [2, 14], strides = [1, 1]} : vector<2x50xf32> to vector<2x14xf32>
    %571 = arith.negf %570 : vector<2x14xf32>
    %572 = math.exp %571 : vector<2x14xf32>
    %cst_175 = arith.constant 1.000000e+00 : f32
    %573 = vector.broadcast %cst_175 : f32 to vector<2x14xf32>
    %574 = arith.addf %573, %572 : vector<2x14xf32>
    %575 = arith.divf %573, %574 : vector<2x14xf32>
    %576 = vector.extract_strided_slice %563 {offsets = [0, 28], sizes = [2, 14], strides = [1, 1]} : vector<2x50xf32> to vector<2x14xf32>
    %577 = math.tanh %576 : vector<2x14xf32>
    %578 = arith.mulf %569, %449 : vector<2x14xf32>
    %579 = arith.mulf %575, %577 : vector<2x14xf32>
    %580 = arith.addf %578, %579 : vector<2x14xf32>
    %581 = tpu.concatenate %480, %580 in 1 : vector<2x36xf32>, vector<2x14xf32> -> vector<2x50xf32>
    %cst_176 = arith.constant dense<0.000000e+00> : vector<2x20xf32>
    %582 = tpu.matmul %581, %38, %cst_176 {dimension_numbers = #tpu.dot_dimension_numbers<[1], [0], [0], [1], [0, 0, 1, 1], [], []>} : vector<2x50xf32>, vector<50x20xf32>, vector<2x20xf32> -> vector<2x20xf32>
    %583 = vector.broadcast %39 : vector<1x20xf32> to vector<2x20xf32>
    %584 = arith.addf %582, %583 : vector<2x20xf32>
    %cst_177 = arith.constant 0.000000e+00 : f32
    %585 = vector.broadcast %cst_177 : f32 to vector<2x20xf32>
    %586 = arith.maximumf %584, %585 : vector<2x20xf32>
    %cst_178 = arith.constant dense<0.000000e+00> : vector<2x1xf32>
    %587 = tpu.matmul %586, %40, %cst_178 {dimension_numbers = #tpu.dot_dimension_numbers<[1], [0], [0], [1], [0, 0, 1, 1], [], []>} : vector<2x20xf32>, vector<20x1xf32>, vector<2x1xf32> -> vector<2x1xf32>
    %588 = vector.broadcast %41 : vector<1x1xf32> to vector<2x1xf32>
    %589 = arith.addf %587, %588 : vector<2x1xf32>
    %c0_179 = arith.constant 0 : index
    %c0_180 = arith.constant 0 : index
    %590 = vector.load %arg2[%c0_179, %c0_180] : memref<2x1xf32, #tpu.memory_space<vmem>>, vector<2x1xf32>
    tpu.vector_store %arg2[%c0_179, %c0_180], %589 {strides = array<i32>} : memref<2x1xf32, #tpu.memory_space<vmem>>, vector<2x1xf32>,
    return
  }
}

</mosaic_0001>

<llo_original>
// kernel: _lambda_.1
$region0: #{_lambda_.1}
  #allocation0 [shape = 'u32[]', space=smem, size = 0x4, offset = 0x4, fixed_abs, tag = 'smem constant byte address 0x4 - core index']
  #allocation1 [shape = 'u32[72,128]{1,0:T(1,128)}', space=vmem, size = 0x9000, scoped, tag = 'internal scratch']
  %s0 = inlined_call_operand.hbm [shape: f32[8,36], index: 0, kind: input, shape index: {}]
  %s1 = inlined_call_operand.hbm [shape: f32[1104,256], index: 1, kind: input, shape index: {}]
  %s2 = inlined_call_operand.vmem [shape: f32[2,1], index: 2, kind: output, shape index: {}]
  %s3 = sld [smem:[#allocation0]]
  $region26: #{_lambda_.1} parent=0
    _
  %s5 = ssub.s32 1, %s3
  %s6 = scalar_select 0, %s5, %s3
  $region1: #{_lambda_.1} parent=0
    #allocation2 [shape = 'u8[4096]{0}', space=vmem, size = 0x1000, scoped, tag = 'input window, operand 0, single buffered']
    #allocation3 [shape = 's32[1]{0}', space=sflag, size = 0x4, scoped, tag = 'scoped memory for _lambda_.1']
    #allocation4 [shape = 'u8[1130496]{0}', space=vmem, size = 0x114000, scoped, tag = 'input window, operand 1, single buffered']
    #allocation5 [shape = 's32[1]{0}', space=sflag, size = 0x4, scoped, tag = 'scoped memory for _lambda_.1']
    %7 = vsyncpa [#allocation3], 0
    %8 = vsyncpa [#allocation5], 0
    // Predicated region
    $region2: #{_lambda_.1} parent=1 // pred_check
      _
    $region3: #{_lambda_.1} parent=1 // pred_check_branch
      %10 = sbr.rel (0) target = $region5
    $region4: #{_lambda_.1} parent=1 // pred_region
      %12 = vsyncadd [#allocation3], 0
      %s14 = sshll.u32 %s0, 4
      %s15 = int_to_ptr.hbm [resolvable:$true] %s14
      %s16 = sshll.u32 [#allocation2], 4
      %s17 = int_to_ptr.vmem [resolvable:$true] %s16
      %19 = dma.hbm_to_vmem [thread:$0]  %s15, 128, %s17, [#allocation3]
    $region5: #{_lambda_.1} parent=1 // pred_fallthru
      _
    // Predicated region
    $region6: #{_lambda_.1} parent=1 // pred_check
      _
    $region7: #{_lambda_.1} parent=1 // pred_check_branch
      %21 = sbr.rel (0) target = $region9
    $region8: #{_lambda_.1} parent=1 // pred_region
      %23 = vsyncadd [#allocation5], 0
      %s24 = sshll.u32 %s1, 4
      %s25 = int_to_ptr.hbm [resolvable:$true] %s24
      %s26 = sshll.u32 [#allocation4], 4
      %s27 = int_to_ptr.vmem [resolvable:$true] %s26
      %32 = dma.hbm_to_vmem [thread:$0]  %s25, 35328, %s27, [#allocation5], 256, 256, 16
    $region9: #{_lambda_.1} parent=1 // pred_fallthru
      _
    // Predicated region
    $region10: #{_lambda_.1} parent=1 // pred_check
      _
    $region11: #{_lambda_.1} parent=1 // pred_check_branch
      %34 = sbr.rel (0) target = $region13
    $region12: #{_lambda_.1} parent=1 // pred_region
      %36 = dma.done [#allocation3], 128
    $region13: #{_lambda_.1} parent=1 // pred_fallthru
      _
    // Predicated region
    $region14: #{_lambda_.1} parent=1 // pred_check
      _
    $region15: #{_lambda_.1} parent=1 // pred_check_branch
      %38 = sbr.rel (0) target = $region17
    $region16: #{_lambda_.1} parent=1 // pred_region
      %40 = dma.done [#allocation5], 35328
    $region17: #{_lambda_.1} parent=1 // pred_fallthru
      _
    %v41 = vld [vmem:[#allocation4] sm:$0xff]
    %v42 = vld [vmem:[#allocation4 + $0x8] sm:$0xff]
    %v43 = vld [vmem:[#allocation4 + $0x10] sm:$0xff]
    %v44 = vld [vmem:[#allocation4 + $0x18] sm:$0xff]
    %v45 = vld [vmem:[#allocation4 + $0x20] sm:$0xff]
    %v46 = vld [vmem:[#allocation4 + $0x28] sm:$0xff]
    %v47 = vld [vmem:[#allocation4 + $0x30] sm:$0xff]
    %v48 = vld [vmem:[#allocation4 + $0x38] sm:$0xff]
    %v49 = vld [vmem:[#allocation4 + $0x40] sm:$0xf]
    %v50 = vld [vmem:[#allocation4 + $0x48] sm:$0xf]
    %v51 = vld [vmem:[#allocation4 + $0x50] sm:$0xff]
    %v52 = vld [vmem:[#allocation4 + $0x58] sm:$0xff]
    %v53 = vld [vmem:[#allocation4 + $0x60] sm:$0xff]
    %v54 = vld [vmem:[#allocation4 + $0x68] sm:$0xff]
    %v55 = vld [vmem:[#allocation4 + $0x70] sm:$0xff]
    %v56 = vld [vmem:[#allocation4 + $0x78] sm:$0xff]
    %v57 = vld [vmem:[#allocation4 + $0x80] sm:$0xff]
    %v58 = vld [vmem:[#allocation4 + $0x88] sm:$0xff]
    %v59 = vld [vmem:[#allocation4 + $0x90] sm:$0xff]
    %v60 = vld [vmem:[#allocation4 + $0x98] sm:$0xff]
    %v61 = vld [vmem:[#allocation4 + $0xa0] sm:$0xf]
    %v62 = vld [vmem:[#allocation4 + $0xa8] sm:$0xf]
    %s63 = scalar_lea.vmem [#allocation4], 176
    %v64 = vld [vmem:[%s63] ss:$8 sm:$0x3]
    %v65 = vld [vmem:[#allocation4 + $0xc0] sm:$0xff]
    %v66 = vld [vmem:[#allocation4 + $0xd0] sm:$0xff]
    %v67 = vld [vmem:[#allocation4 + $0xe0] sm:$0xff]
    %v68 = vld [vmem:[#allocation4 + $0xf0] sm:$0xff]
    %v69 = vld [vmem:[#allocation4 + $0x100] sm:$0xff]
    %v70 = vld [vmem:[#allocation4 + $0x110] sm:$0xff]
    %v71 = vld [vmem:[#allocation4 + $0x120] sm:$0xff]
    %v72 = vld [vmem:[#allocation4 + $0x130] sm:$0xff]
    %v73 = vld [vmem:[#allocation4 + $0x140] sm:$0xff]
    %v74 = vld [vmem:[#allocation4 + $0x150] ss:$0 sm:$0xff]
    %v75 = vld [vmem:[#allocation4 + $0x160] sm:$0xff]
    %v76 = vld [vmem:[#allocation4 + $0x170] sm:$0xff]
    %v77 = vld [vmem:[#allocation4 + $0x180] sm:$0xff]
    %v78 = vld [vmem:[#allocation4 + $0x190] sm:$0xff]
    %v79 = vld [vmem:[#allocation4 + $0x1a0] sm:$0xff]
    %v80 = vld [vmem:[#allocation4 + $0x1b0] sm:$0xff]
    %v81 = vld [vmem:[#allocation4 + $0x1c0] sm:$0xff]
    %v82 = vld [vmem:[#allocation4 + $0x1d0] sm:$0xf]
    %v83 = vld [vmem:[#allocation4 + $0x1e0] ss:$0 sm:$0xff]
    %v84 = vld [vmem:[#allocation4 + $0x1f0] sm:$0xff]
    %v85 = vld [vmem:[#allocation4 + $0x200] sm:$0xff]
    %v86 = vld [vmem:[#allocation4 + $0x210] sm:$0xff]
    %v87 = vld [vmem:[#allocation4 + $0x220] sm:$0xff]
    %v88 = vld [vmem:[#allocation4 + $0x230] sm:$0xf]
    %v89 = vld [vmem:[#allocation4 + $0x240] ss:$0 sm:$0xff]
    %v90 = vld [vmem:[#allocation4 + $0x250] sm:$0xff]
    %v91 = vld [vmem:[#allocation4 + $0x260] sm:$0xff]
    %v92 = vld [vmem:[#allocation4 + $0x270] sm:$0xff]
    %v93 = vld [vmem:[#allocation4 + $0x280] ss:$0 sm:$0xff]
    %v94 = vld [vmem:[#allocation4 + $0x290] sm:$0xff]
    %v95 = vld [vmem:[#allocation4 + $0x2a0] sm:$0xff]
    %v96 = vld [vmem:[#allocation4 + $0x2b0] ss:$0 sm:$0xff]
    %v97 = vld [vmem:[#allocation4 + $0x2c0] sm:$0xff]
    %v98 = vld [vmem:[#allocation4 + $0x2d0] sm:$0xf]
    %v99 = vld [vmem:[#allocation4 + $0x2e0] ss:$0 sm:$0xff]
    %v100 = vld [vmem:[#allocation4 + $0x2f0] sm:$0xff]
    %v101 = vld [vmem:[#allocation4 + $0x2f8] sm:$0xff]
    %v102 = vld [vmem:[#allocation4 + $0x300] sm:$0xff]
    %v103 = vld [vmem:[#allocation4 + $0x308] sm:$0xff]
    %v104 = vld [vmem:[#allocation4 + $0x310] sm:$0x7]
    %v105 = vld [vmem:[#allocation4 + $0x318] sm:$0x7]
    %v106 = vld [vmem:[#allocation4 + $0x320] sm:$0xff]
    %v107 = vld [vmem:[#allocation4 + $0x330] sm:$0xff]
    %v108 = vld [vmem:[#allocation4 + $0x340] sm:$0xff]
    %v109 = vld [vmem:[#allocation4 + $0x350] sm:$0xff]
    %v110 = vld [vmem:[#allocation4 + $0x360] sm:$0xff]
    %v111 = vld [vmem:[#allocation4 + $0x370] sm:$0xff]
    %v112 = vld [vmem:[#allocation4 + $0x380] sm:$0xff]
    %v113 = vld [vmem:[#allocation4 + $0x390] sm:$0xff]
    %v114 = vld [vmem:[#allocation4 + $0x3a0] sm:$0xff]
    %v115 = vld [vmem:[#allocation4 + $0x3b0] ss:$0 sm:$0xff]
    %v116 = vld [vmem:[#allocation4 + $0x3c0] sm:$0xff]
    %v117 = vld [vmem:[#allocation4 + $0x3d0] sm:$0xff]
    %v118 = vld [vmem:[#allocation4 + $0x3e0] sm:$0xff]
    %v119 = vld [vmem:[#allocation4 + $0x3f0] sm:$0xff]
    %v120 = vld [vmem:[#allocation4 + $0x400] sm:$0xff]
    %v121 = vld [vmem:[#allocation4 + $0x410] sm:$0xff]
    %v122 = vld [vmem:[#allocation4 + $0x420] sm:$0xff]
    %v123 = vld [vmem:[#allocation4 + $0x430] sm:$0xff]
    %v124 = vld [vmem:[#allocation4 + $0x440] sm:$0xff]
    %v125 = vld [vmem:[#allocation4 + $0x450] ss:$0 sm:$0xff]
    %v126 = vld [vmem:[#allocation4 + $0x460] sm:$0xff]
    %v127 = vld [vmem:[#allocation4 + $0x470] sm:$0xff]
    %v128 = vld [vmem:[#allocation4 + $0x480] sm:$0xff]
    %v129 = vld [vmem:[#allocation4 + $0x490] sm:$0xff]
    %v130 = vld [vmem:[#allocation4 + $0x4a0] sm:$0xff]
    %v131 = vld [vmem:[#allocation4 + $0x4b0] sm:$0xff]
    %v132 = vld [vmem:[#allocation4 + $0x4c0] ss:$0 sm:$0xff]
    %v133 = vld [vmem:[#allocation4 + $0x4d0] sm:$0xff]
    %v134 = vld [vmem:[#allocation4 + $0x4e0] sm:$0xff]
    %v135 = vld [vmem:[#allocation4 + $0x4f0] sm:$0xff]
    %v136 = vld [vmem:[#allocation4 + $0x500] sm:$0xff]
    %v137 = vld [vmem:[#allocation4 + $0x510] sm:$0xff]
    %v138 = vld [vmem:[#allocation4 + $0x520] sm:$0xff]
    %v139 = vld [vmem:[#allocation4 + $0x530] sm:$0xff]
    %v140 = vld [vmem:[#allocation4 + $0x540] sm:$0xff]
    %v141 = vld [vmem:[#allocation4 + $0x550] sm:$0xff]
    %v142 = vld [vmem:[#allocation4 + $0x560] ss:$0 sm:$0xff]
    %v143 = vld [vmem:[#allocation4 + $0x570] sm:$0xff]
    %v144 = vld [vmem:[#allocation4 + $0x580] sm:$0xff]
    %v145 = vld [vmem:[#allocation4 + $0x590] sm:$0xff]
    %v146 = vld [vmem:[#allocation4 + $0x5a0] ss:$0 sm:$0xff]
    %v147 = vld [vmem:[#allocation4 + $0x5b0] sm:$0xff]
    %v148 = vld [vmem:[#allocation4 + $0x5c0] sm:$0xff]
    %v149 = vld [vmem:[#allocation4 + $0x5d0] ss:$0 sm:$0xff]
    %v150 = vld [vmem:[#allocation4 + $0x5e0] sm:$0xff]
    %v151 = vld [vmem:[#allocation4 + $0x5f0] sm:$0xff]
    %v152 = vld [vmem:[#allocation4 + $0x600] sm:$0xff]
    %v153 = vld [vmem:[#allocation4 + $0x610] sm:$0xff]
    %v154 = vld [vmem:[#allocation4 + $0x620] sm:$0xff]
    %v155 = vld [vmem:[#allocation4 + $0x630] sm:$0xff]
    %v156 = vld [vmem:[#allocation4 + $0x640] sm:$0xff]
    %v157 = vld [vmem:[#allocation4 + $0x650] sm:$0xff]
    %v158 = vld [vmem:[#allocation4 + $0x660] sm:$0xff]
    %v159 = vld [vmem:[#allocation4 + $0x670] sm:$0xff]
    %v160 = vld [vmem:[#allocation4 + $0x680] sm:$0xf]
    %v161 = vld [vmem:[#allocation4 + $0x690] ss:$0 sm:$0xff]
    %v162 = vld [vmem:[#allocation4 + $0x6a0] sm:$0xff]
    %v163 = vld [vmem:[#allocation4 + $0x6b0] sm:$0xff]
    %v164 = vld [vmem:[#allocation4 + $0x6c0] sm:$0xff]
    %v165 = vld [vmem:[#allocation4 + $0x6d0] ss:$0 sm:$0xff]
    %v166 = vld [vmem:[#allocation4 + $0x6e0] sm:$0xff]
    %v167 = vld [vmem:[#allocation4 + $0x6f0] sm:$0xff]
    %v168 = vld [vmem:[#allocation4 + $0x700] ss:$0 sm:$0xff]
    %v169 = vld [vmem:[#allocation4 + $0x710] sm:$0xff]
    %v170 = vld [vmem:[#allocation4 + $0x720] sm:$0xf]
    %v171 = vld [vmem:[#allocation4 + $0x730] ss:$0 sm:$0xff]
    %v172 = vld [vmem:[#allocation4 + $0x740] sm:$0xff]
    %v173 = vld [vmem:[#allocation4 + $0x750] sm:$0xff]
    %v174 = vld [vmem:[#allocation4 + $0x760] sm:$0xff]
    %v175 = vld [vmem:[#allocation4 + $0x770] sm:$0xff]
    %v176 = vld [vmem:[#allocation4 + $0x780] sm:$0xff]
    %v177 = vld [vmem:[#allocation4 + $0x790] sm:$0xff]
    %v178 = vld [vmem:[#allocation4 + $0x7a0] sm:$0xff]
    %v179 = vld [vmem:[#allocation4 + $0x7b0] sm:$0xff]
    %v180 = vld [vmem:[#allocation4 + $0x7c0] sm:$0x3f]
    %v181 = vld [vmem:[#allocation4 + $0x7d0] ss:$0 sm:$0xff]
    %v182 = vld [vmem:[#allocation4 + $0x7e0] sm:$0xff]
    %v183 = vld [vmem:[#allocation4 + $0x7f0] sm:$0xff]
    %v184 = vld [vmem:[#allocation4 + $0x800] sm:$0xff]
    %v185 = vld [vmem:[#allocation4 + $0x810] sm:$0xff]
    %v186 = vld [vmem:[#allocation4 + $0x820] sm:$0xff]
    %v187 = vld [vmem:[#allocation4 + $0x830] sm:$0xff]
    %v188 = vld [vmem:[#allocation4 + $0x840] sm:$0x3]
    %v189 = vld [vmem:[#allocation4 + $0x850] ss:$0 sm:$0xff]
    %v190 = vld [vmem:[#allocation4 + $0x860] sm:$0xff]
    %v191 = vld [vmem:[#allocation4 + $0x870] sm:$0xff]
    %v192 = vld [vmem:[#allocation4 + $0x880] sm:$0xf]
    %v193 = vld [vmem:[#allocation4 + $0x890] ss:$0 sm:$0xff]
    %v194 = vld [vmem:[#allocation2] sm:$0xff]
    %v196 = vperm.slane %v64, 0
    %v197 = vperm.slane %v64, 1
    %vm200 = vcmask 293888
    %v202 = vsel %vm200, %v194, 0
    %vm204 = vcmask 1043456
    %v206 = vsel %vm204, %v49, 0
    %v209 = vsel %vm204, %v50, 0
    %211 = vmatpush.msra.mxu0 0.0
    %212 = vmatpush.msra.mxu0 0.0
    %213 = vmatpush.msra.mxu0 0.0
    %214 = vmatpush.msra.mxu0 0.0
    %215 = vmatpush.msra.mxu0 0.0
    %216 = vmatpush.msra.mxu0 0.0
    %217 = vmatpush.msra.mxu0 0.0
    %218 = vmatpush.msra.mxu0 0.0
    %219 = vmatpush.msra.mxu0 0.0
    %220 = vmatpush.msra.mxu0 0.0
    %221 = vmatpush.msra.mxu0 0.0
    %222 = vmatpush.msra.mxu0 %v206
    %223 = vmatpush.msra.mxu0 %v47
    %224 = vmatpush.msra.mxu0 %v45
    %225 = vmatpush.msra.mxu0 %v43
    %226 = vmatpush.msra.mxu0 %v41
    %227 = vmatmul.f32.gmra.mxu0 %v202
    %v228 = vpop.f32.mrf.mxu0
    %v229 = vadd.f32 %v196, %v228
    %230 = vdwg.mxu0
    %231 = vmatpush.msra.mxu0 0.0
    %232 = vmatpush.msra.mxu0 0.0
    %233 = vmatpush.msra.mxu0 0.0
    %234 = vmatpush.msra.mxu0 0.0
    %235 = vmatpush.msra.mxu0 0.0
    %236 = vmatpush.msra.mxu0 0.0
    %237 = vmatpush.msra.mxu0 0.0
    %238 = vmatpush.msra.mxu0 0.0
    %239 = vmatpush.msra.mxu0 0.0
    %240 = vmatpush.msra.mxu0 0.0
    %241 = vmatpush.msra.mxu0 0.0
    %242 = vmatpush.msra.mxu0 %v209
    %243 = vmatpush.msra.mxu0 %v48
    %244 = vmatpush.msra.mxu0 %v46
    %245 = vmatpush.msra.mxu0 %v44
    %246 = vmatpush.msra.mxu0 %v42
    %247 = vmatmul.f32.gmra.mxu0 %v202
    %v248 = vpop.f32.mrf.mxu0
    %v249 = vadd.f32 %v197, %v248
    %250 = vdwg.mxu0
    %vm251 = vcmask 359424
    %v253 = vsel %vm251, 0.0, 0
    %v256 = vsel %vm204, %v61, 0
    %v259 = vsel %vm204, %v62, 0
    %261 = vmatpush.msra.mxu0 0.0
    %262 = vmatpush.msra.mxu0 0.0
    %263 = vmatpush.msra.mxu0 0.0
    %264 = vmatpush.msra.mxu0 0.0
    %265 = vmatpush.msra.mxu0 0.0
    %266 = vmatpush.msra.mxu0 0.0
    %267 = vmatpush.msra.mxu0 0.0
    %268 = vmatpush.msra.mxu0 0.0
    %269 = vmatpush.msra.mxu0 0.0
    %270 = vmatpush.msra.mxu0 0.0
    %271 = vmatpush.msra.mxu0 %v256
    %272 = vmatpush.msra.mxu0 %v59
    %273 = vmatpush.msra.mxu0 %v57
    %274 = vmatpush.msra.mxu0 %v55
    %275 = vmatpush.msra.mxu0 %v53
    %276 = vmatpush.msra.mxu0 %v51
    %277 = vmatmul.f32.gmra.mxu0 %v253
    %v278 = vpop.f32.mrf.mxu0
    %v279 = vadd.f32 %v229, %v278
    %280 = vdwg.mxu0
    %281 = vmatpush.msra.mxu0 0.0
    %282 = vmatpush.msra.mxu0 0.0
    %283 = vmatpush.msra.mxu0 0.0
    %284 = vmatpush.msra.mxu0 0.0
    %285 = vmatpush.msra.mxu0 0.0
    %286 = vmatpush.msra.mxu0 0.0
    %287 = vmatpush.msra.mxu0 0.0
    %288 = vmatpush.msra.mxu0 0.0
    %289 = vmatpush.msra.mxu0 0.0
    %290 = vmatpush.msra.mxu0 0.0
    %291 = vmatpush.msra.mxu0 %v259
    %292 = vmatpush.msra.mxu0 %v60
    %293 = vmatpush.msra.mxu0 %v58
    %294 = vmatpush.msra.mxu0 %v56
    %295 = vmatpush.msra.mxu0 %v54
    %296 = vmatpush.msra.mxu0 %v52
    %297 = vmatmul.f32.gmra.mxu0 %v253
    %v298 = vpop.f32.mrf.mxu0
    %v299 = vadd.f32 %v249, %v298
    %300 = vdwg.mxu0
    %v301 = vxor.u32 %v279, 2147483648
    %v302 = vmul.f32 %v301, 1.442695
    %v303 = vpow.pop %v302
    %v304 = vadd.f32 %v303, 1.0
    %v305 = vrcp.pop %v304
    %v306 = vmul.f32 %v304, %v305
    %v307 = vsub.f32 1.0, %v306
    %v308 = vmul.f32 %v305, %v307
    %v309 = vadd.f32 %v305, %v308
    %vm310 = vweird.f32 %v304
    %vm311 = vweird.f32 %v305
    %vm312 = vmor %vm310, %vm311
    %v313 = vsel %vm312, %v305, %v309
    %v314 = vand.u32 2147483647, %v304
    %vm315 = vcmp.eq.f32.partialorder %v314, 8.507059e+37
    %v316 = vand.u32 %v304, 2147483648
    %v317 = vor.u32 1.1754944e-38, %v316
    %v318 = vsel %vm315, %v317, %v313
    %v319 = vmul.f32 1.0, %v318
    %v320 = vtanh.pop %v299
    %v321 = vmul.f32 %v319, 0.0
    %323 = vrot.lane.b32.xlu0 %v320, 36
    %v324 = vpop.permute.xlu0 %323
    %v326 = vmul.f32 %v319, %v324
    %328 = vrot.lane.b32.xlu0 %v326, 92
    %v329 = vpop.permute.xlu0 %328
    %v331 = vadd.f32 %v321, %v329
    %v332 = vtanh.pop %v331
    %334 = vrot.lane.b32.xlu0 %v319, 56
    %v335 = vpop.permute.xlu0 %334
    %v337 = vmul.f32 %v332, %v335
    %339 = vrot.lane.b32.xlu0 %v337, 36
    %v340 = vpop.permute.xlu0 %339
    %v342 = vsel %vm200, 0.0, %v340
    %vm343 = vcmask 588800
    %v345 = vsel %vm343, %v342, 0
    %347 = vmatpush.msra.mxu0 0.0
    %348 = vmatpush.msra.mxu0 0.0
    %349 = vmatpush.msra.mxu0 0.0
    %350 = vmatpush.msra.mxu0 0.0
    %351 = vmatpush.msra.mxu0 0.0
    %352 = vmatpush.msra.mxu0 0.0
    %353 = vmatpush.msra.mxu0 0.0
    %354 = vmatpush.msra.mxu0 %v73
    %355 = vmatpush.msra.mxu0 %v72
    %356 = vmatpush.msra.mxu0 %v71
    %357 = vmatpush.msra.mxu0 %v70
    %358 = vmatpush.msra.mxu0 %v69
    %359 = vmatpush.msra.mxu0 %v68
    %360 = vmatpush.msra.mxu0 %v67
    %361 = vmatpush.msra.mxu0 %v66
    %362 = vmatpush.msra.mxu0 %v65
    %363 = vmatmul.f32.gmra.mxu0 %v345
    %v364 = vpop.f32.mrf.mxu0
    %v365 = vadd.f32 %v74, %v364
    %366 = vdwg.mxu0
    %v367 = vmax.f32 %v365, 0.0
    %vm368 = vcmask 490496
    %v370 = vsel %vm368, %v367, 0
    %v373 = vsel %vm204, %v82, 0
    %375 = vmatpush.msra.mxu0 0.0
    %376 = vmatpush.msra.mxu0 0.0
    %377 = vmatpush.msra.mxu0 0.0
    %378 = vmatpush.msra.mxu0 0.0
    %379 = vmatpush.msra.mxu0 0.0
    %380 = vmatpush.msra.mxu0 0.0
    %381 = vmatpush.msra.mxu0 0.0
    %382 = vmatpush.msra.mxu0 0.0
    %383 = vmatpush.msra.mxu0 %v373
    %384 = vmatpush.msra.mxu0 %v81
    %385 = vmatpush.msra.mxu0 %v80
    %386 = vmatpush.msra.mxu0 %v79
    %387 = vmatpush.msra.mxu0 %v78
    %388 = vmatpush.msra.mxu0 %v77
    %389 = vmatpush.msra.mxu0 %v76
    %390 = vmatpush.msra.mxu0 %v75
    %391 = vmatmul.f32.gmra.mxu0 %v370
    %v392 = vpop.f32.mrf.mxu0
    %v393 = vadd.f32 %v83, %v392
    %394 = vdwg.mxu0
    %v395 = vxor.u32 %v393, 2147483648
    %v396 = vmul.f32 %v395, 1.442695
    %v397 = vpow.pop %v396
    %v398 = vadd.f32 %v397, 1.0
    %v399 = vrcp.pop %v398
    %v400 = vmul.f32 %v398, %v399
    %v401 = vsub.f32 1.0, %v400
    %v402 = vmul.f32 %v399, %v401
    %v403 = vadd.f32 %v399, %v402
    %vm404 = vweird.f32 %v398
    %vm405 = vweird.f32 %v399
    %vm406 = vmor %vm404, %vm405
    %v407 = vsel %vm406, %v399, %v403
    %v408 = vand.u32 2147483647, %v398
    %vm409 = vcmp.eq.f32.partialorder %v408, 8.507059e+37
    %v410 = vand.u32 %v398, 2147483648
    %v411 = vor.u32 1.1754944e-38, %v410
    %v412 = vsel %vm409, %v411, %v407
    %v413 = vmul.f32 1.0, %v412
    %v415 = vsel %vm200, %v413, 0
    %v418 = vsel %vm204, %v88, 0
    %420 = vmatpush.msra.mxu0 0.0
    %421 = vmatpush.msra.mxu0 0.0
    %422 = vmatpush.msra.mxu0 0.0
    %423 = vmatpush.msra.mxu0 0.0
    %424 = vmatpush.msra.mxu0 0.0
    %425 = vmatpush.msra.mxu0 0.0
    %426 = vmatpush.msra.mxu0 0.0
    %427 = vmatpush.msra.mxu0 0.0
    %428 = vmatpush.msra.mxu0 0.0
    %429 = vmatpush.msra.mxu0 0.0
    %430 = vmatpush.msra.mxu0 0.0
    %431 = vmatpush.msra.mxu0 %v418
    %432 = vmatpush.msra.mxu0 %v87
    %433 = vmatpush.msra.mxu0 %v86
    %434 = vmatpush.msra.mxu0 %v85
    %435 = vmatpush.msra.mxu0 %v84
    %436 = vmatmul.f32.gmra.mxu0 %v415
    %v437 = vpop.f32.mrf.mxu0
    %v438 = vadd.f32 %v89, %v437
    %439 = vdwg.mxu0
    %vm440 = vcmask 195584
    %v442 = vsel %vm440, %v438, 0
    %444 = vmatpush.msra.mxu0 0.0
    %445 = vmatpush.msra.mxu0 0.0
    %446 = vmatpush.msra.mxu0 0.0
    %447 = vmatpush.msra.mxu0 0.0
    %448 = vmatpush.msra.mxu0 0.0
    %449 = vmatpush.msra.mxu0 0.0
    %450 = vmatpush.msra.mxu0 0.0
    %451 = vmatpush.msra.mxu0 0.0
    %452 = vmatpush.msra.mxu0 0.0
    %453 = vmatpush.msra.mxu0 0.0
    %454 = vmatpush.msra.mxu0 0.0
    %455 = vmatpush.msra.mxu0 0.0
    %456 = vmatpush.msra.mxu0 0.0
    %457 = vmatpush.msra.mxu0 %v92
    %458 = vmatpush.msra.mxu0 %v91
    %459 = vmatpush.msra.mxu0 %v90
    %460 = vmatmul.f32.gmra.mxu0 %v442
    %v461 = vpop.f32.mrf.mxu0
    %v462 = vadd.f32 %v93, %v461
    %463 = vdwg.mxu0
    %v464 = vmax.f32 %v462, 0.0
    %vm465 = vcmask 130048
    %v467 = vsel %vm465, %v464, 0
    %469 = vmatpush.msra.mxu0 0.0
    %470 = vmatpush.msra.mxu0 0.0
    %471 = vmatpush.msra.mxu0 0.0
    %472 = vmatpush.msra.mxu0 0.0
    %473 = vmatpush.msra.mxu0 0.0
    %474 = vmatpush.msra.mxu0 0.0
    %475 = vmatpush.msra.mxu0 0.0
    %476 = vmatpush.msra.mxu0 0.0
    %477 = vmatpush.msra.mxu0 0.0
    %478 = vmatpush.msra.mxu0 0.0
    %479 = vmatpush.msra.mxu0 0.0
    %480 = vmatpush.msra.mxu0 0.0
    %481 = vmatpush.msra.mxu0 0.0
    %482 = vmatpush.msra.mxu0 0.0
    %483 = vmatpush.msra.mxu0 %v95
    %484 = vmatpush.msra.mxu0 %v94
    %485 = vmatmul.f32.gmra.mxu0 %v467
    %v486 = vpop.f32.mrf.mxu0
    %v487 = vadd.f32 %v96, %v486
    %488 = vdwg.mxu0
    %vm489 = vcmask 97280
    %v491 = vsel %vm489, %v487, 0
    %v494 = vsel %vm204, %v98, 0
    %496 = vmatpush.msra.mxu0 0.0
    %497 = vmatpush.msra.mxu0 0.0
    %498 = vmatpush.msra.mxu0 0.0
    %499 = vmatpush.msra.mxu0 0.0
    %500 = vmatpush.msra.mxu0 0.0
    %501 = vmatpush.msra.mxu0 0.0
    %502 = vmatpush.msra.mxu0 0.0
    %503 = vmatpush.msra.mxu0 0.0
    %504 = vmatpush.msra.mxu0 0.0
    %505 = vmatpush.msra.mxu0 0.0
    %506 = vmatpush.msra.mxu0 0.0
    %507 = vmatpush.msra.mxu0 0.0
    %508 = vmatpush.msra.mxu0 0.0
    %509 = vmatpush.msra.mxu0 0.0
    %510 = vmatpush.msra.mxu0 %v494
    %511 = vmatpush.msra.mxu0 %v97
    %512 = vmatmul.f32.gmra.mxu0 %v491
    %v513 = vpop.f32.mrf.mxu0
    %v514 = vadd.f32 %v99, %v513
    %515 = vdwg.mxu0
    %vm516 = vcmask 154624
    %v518 = vsel %vm516, %v514, 0
    %vm520 = vcmask 1042432
    %v522 = vsel %vm520, %v104, 0
    %v525 = vsel %vm520, %v105, 0
    %527 = vmatpush.msra.mxu0 0.0
    %528 = vmatpush.msra.mxu0 0.0
    %529 = vmatpush.msra.mxu0 0.0
    %530 = vmatpush.msra.mxu0 0.0
    %531 = vmatpush.msra.mxu0 0.0
    %532 = vmatpush.msra.mxu0 0.0
    %533 = vmatpush.msra.mxu0 0.0
    %534 = vmatpush.msra.mxu0 0.0
    %535 = vmatpush.msra.mxu0 0.0
    %536 = vmatpush.msra.mxu0 0.0
    %537 = vmatpush.msra.mxu0 0.0
    %538 = vmatpush.msra.mxu0 0.0
    %539 = vmatpush.msra.mxu0 0.0
    %540 = vmatpush.msra.mxu0 %v522
    %541 = vmatpush.msra.mxu0 %v102
    %542 = vmatpush.msra.mxu0 %v100
    %543 = vmatmul.f32.gmra.mxu0 %v518
    %v544 = vpop.f32.mrf.mxu0
    %v545 = vadd.f32 0.0, %v544
    %546 = vdwg.mxu0
    %547 = vmatpush.msra.mxu0 0.0
    %548 = vmatpush.msra.mxu0 0.0
    %549 = vmatpush.msra.mxu0 0.0
    %550 = vmatpush.msra.mxu0 0.0
    %551 = vmatpush.msra.mxu0 0.0
    %552 = vmatpush.msra.mxu0 0.0
    %553 = vmatpush.msra.mxu0 0.0
    %554 = vmatpush.msra.mxu0 0.0
    %555 = vmatpush.msra.mxu0 0.0
    %556 = vmatpush.msra.mxu0 0.0
    %557 = vmatpush.msra.mxu0 0.0
    %558 = vmatpush.msra.mxu0 0.0
    %559 = vmatpush.msra.mxu0 0.0
    %560 = vmatpush.msra.mxu0 %v525
    %561 = vmatpush.msra.mxu0 %v103
    %562 = vmatpush.msra.mxu0 %v101
    %563 = vmatmul.f32.gmra.mxu0 %v518
    %v564 = vpop.f32.mrf.mxu0
    %v565 = vadd.f32 0.0, %v564
    %566 = vdwg.mxu0
    %567 = vrot.lane.b32.xlu0 %v413, 22
    %v568 = vpop.permute.xlu0 %567
    %570 = vrot.lane.b32.xlu0 %v413, 10
    %v571 = vpop.permute.xlu0 %570
    %573 = vrot.lane.b32.xlu0 %v413, 36
    %v574 = vpop.permute.xlu0 %573
    %vm576 = vcmask 179200
    %v577 = vsel %vm576, %v413, %v568
    %vm578 = vcmask 261120
    %v579 = vsel %vm578, %v577, %v571
    %vm580 = vcmask 375808
    %v581 = vsel %vm580, %v579, %v574
    %v582 = vmul.f32 %v581, %v545
    %v584 = vsel %vm343, %v582, 0
    %586 = vmatpush.msra.mxu0 0.0
    %587 = vmatpush.msra.mxu0 0.0
    %588 = vmatpush.msra.mxu0 0.0
    %589 = vmatpush.msra.mxu0 0.0
    %590 = vmatpush.msra.mxu0 0.0
    %591 = vmatpush.msra.mxu0 0.0
    %592 = vmatpush.msra.mxu0 0.0
    %593 = vmatpush.msra.mxu0 %v114
    %594 = vmatpush.msra.mxu0 %v113
    %595 = vmatpush.msra.mxu0 %v112
    %596 = vmatpush.msra.mxu0 %v111
    %597 = vmatpush.msra.mxu0 %v110
    %598 = vmatpush.msra.mxu0 %v109
    %599 = vmatpush.msra.mxu0 %v108
    %600 = vmatpush.msra.mxu0 %v107
    %601 = vmatpush.msra.mxu0 %v106
    %602 = vmatmul.f32.gmra.mxu0 %v584
    %v603 = vpop.f32.mrf.mxu0
    %v604 = vadd.f32 %v115, %v603
    %605 = vdwg.mxu0
    %v607 = vsel %vm343, %v604, 0
    %609 = vmatpush.msra.mxu0 0.0
    %610 = vmatpush.msra.mxu0 0.0
    %611 = vmatpush.msra.mxu0 0.0
    %612 = vmatpush.msra.mxu0 0.0
    %613 = vmatpush.msra.mxu0 0.0
    %614 = vmatpush.msra.mxu0 0.0
    %615 = vmatpush.msra.mxu0 0.0
    %616 = vmatpush.msra.mxu0 %v124
    %617 = vmatpush.msra.mxu0 %v123
    %618 = vmatpush.msra.mxu0 %v122
    %619 = vmatpush.msra.mxu0 %v121
    %620 = vmatpush.msra.mxu0 %v120
    %621 = vmatpush.msra.mxu0 %v119
    %622 = vmatpush.msra.mxu0 %v118
    %623 = vmatpush.msra.mxu0 %v117
    %624 = vmatpush.msra.mxu0 %v116
    %625 = vmatmul.f32.gmra.mxu0 %v607
    %v626 = vpop.f32.mrf.mxu0
    %v627 = vadd.f32 %v125, %v626
    %628 = vdwg.mxu0
    %v629 = vmax.f32 %v627, 0.0
    %vm630 = vcmask 392192
    %v632 = vsel %vm630, %v629, 0
    %634 = vmatpush.msra.mxu0 0.0
    %635 = vmatpush.msra.mxu0 0.0
    %636 = vmatpush.msra.mxu0 0.0
    %637 = vmatpush.msra.mxu0 0.0
    %638 = vmatpush.msra.mxu0 0.0
    %639 = vmatpush.msra.mxu0 0.0
    %640 = vmatpush.msra.mxu0 0.0
    %641 = vmatpush.msra.mxu0 0.0
    %642 = vmatpush.msra.mxu0 0.0
    %643 = vmatpush.msra.mxu0 0.0
    %644 = vmatpush.msra.mxu0 %v131
    %645 = vmatpush.msra.mxu0 %v130
    %646 = vmatpush.msra.mxu0 %v129
    %647 = vmatpush.msra.mxu0 %v128
    %648 = vmatpush.msra.mxu0 %v127
    %649 = vmatpush.msra.mxu0 %v126
    %650 = vmatmul.f32.gmra.mxu0 %v632
    %v651 = vpop.f32.mrf.mxu0
    %v652 = vadd.f32 %v132, %v651
    %653 = vdwg.mxu0
    %655 = vrot.lane.b32.xlu0 %v652, 36
    %v656 = vpop.permute.xlu0 %655
    %v658 = vsel %vm200, %v413, %v656
    %661 = vrot.lane.b32.xlu0 %v545, 56
    %v662 = vpop.permute.xlu0 %661
    %663 = vrot.lane.b32.xlu0 %v565, 56
    %v664 = vpop.permute.xlu0 %663
    %vm665 = vcmask 457728
    %v666 = vsel %vm665, %v662, %v664
    %v668 = vmul.f32 %v658, %v666
    %v670 = vsel %vm343, %v668, 0
    %672 = vmatpush.msra.mxu0 0.0
    %673 = vmatpush.msra.mxu0 0.0
    %674 = vmatpush.msra.mxu0 0.0
    %675 = vmatpush.msra.mxu0 0.0
    %676 = vmatpush.msra.mxu0 0.0
    %677 = vmatpush.msra.mxu0 0.0
    %678 = vmatpush.msra.mxu0 0.0
    %679 = vmatpush.msra.mxu0 %v141
    %680 = vmatpush.msra.mxu0 %v140
    %681 = vmatpush.msra.mxu0 %v139
    %682 = vmatpush.msra.mxu0 %v138
    %683 = vmatpush.msra.mxu0 %v137
    %684 = vmatpush.msra.mxu0 %v136
    %685 = vmatpush.msra.mxu0 %v135
    %686 = vmatpush.msra.mxu0 %v134
    %687 = vmatpush.msra.mxu0 %v133
    %688 = vmatmul.f32.gmra.mxu0 %v670
    %v689 = vpop.f32.mrf.mxu0
    %v690 = vadd.f32 %v142, %v689
    %691 = vdwg.mxu0
    %v693 = vsel %vm440, %v690, 0
    %695 = vmatpush.msra.mxu0 0.0
    %696 = vmatpush.msra.mxu0 0.0
    %697 = vmatpush.msra.mxu0 0.0
    %698 = vmatpush.msra.mxu0 0.0
    %699 = vmatpush.msra.mxu0 0.0
    %700 = vmatpush.msra.mxu0 0.0
    %701 = vmatpush.msra.mxu0 0.0
    %702 = vmatpush.msra.mxu0 0.0
    %703 = vmatpush.msra.mxu0 0.0
    %704 = vmatpush.msra.mxu0 0.0
    %705 = vmatpush.msra.mxu0 0.0
    %706 = vmatpush.msra.mxu0 0.0
    %707 = vmatpush.msra.mxu0 0.0
    %708 = vmatpush.msra.mxu0 %v145
    %709 = vmatpush.msra.mxu0 %v144
    %710 = vmatpush.msra.mxu0 %v143
    %711 = vmatmul.f32.gmra.mxu0 %v693
    %v712 = vpop.f32.mrf.mxu0
    %v713 = vadd.f32 %v146, %v712
    %714 = vdwg.mxu0
    %v715 = vmax.f32 %v713, 0.0
    %v717 = vsel %vm465, %v715, 0
    %719 = vmatpush.msra.mxu0 0.0
    %720 = vmatpush.msra.mxu0 0.0
    %721 = vmatpush.msra.mxu0 0.0
    %722 = vmatpush.msra.mxu0 0.0
    %723 = vmatpush.msra.mxu0 0.0
    %724 = vmatpush.msra.mxu0 0.0
    %725 = vmatpush.msra.mxu0 0.0
    %726 = vmatpush.msra.mxu0 0.0
    %727 = vmatpush.msra.mxu0 0.0
    %728 = vmatpush.msra.mxu0 0.0
    %729 = vmatpush.msra.mxu0 0.0
    %730 = vmatpush.msra.mxu0 0.0
    %731 = vmatpush.msra.mxu0 0.0
    %732 = vmatpush.msra.mxu0 0.0
    %733 = vmatpush.msra.mxu0 %v148
    %734 = vmatpush.msra.mxu0 %v147
    %735 = vmatmul.f32.gmra.mxu0 %v717
    %v736 = vpop.f32.mrf.mxu0
    %v737 = vadd.f32 %v149, %v736
    %738 = vdwg.mxu0
    %740 = vrot.lane.b32.xlu0 %v737, 72
    %v741 = vpop.permute.xlu0 %740
    %v743 = vsel %vm343, %v658, %v741
    %744 = vrot.lane.b32.xlu0 %v565, 112
    %v745 = vpop.permute.xlu0 %744
    %v747 = vmul.f32 %v743, %v745
    %vm748 = vcmask 687104
    %v750 = vsel %vm748, %v747, 0
    %v753 = vsel %vm204, %v160, 0
    %755 = vmatpush.msra.mxu0 0.0
    %756 = vmatpush.msra.mxu0 0.0
    %757 = vmatpush.msra.mxu0 0.0
    %758 = vmatpush.msra.mxu0 0.0
    %759 = vmatpush.msra.mxu0 0.0
    %760 = vmatpush.msra.mxu0 %v753
    %761 = vmatpush.msra.mxu0 %v159
    %762 = vmatpush.msra.mxu0 %v158
    %763 = vmatpush.msra.mxu0 %v157
    %764 = vmatpush.msra.mxu0 %v156
    %765 = vmatpush.msra.mxu0 %v155
    %766 = vmatpush.msra.mxu0 %v154
    %767 = vmatpush.msra.mxu0 %v153
    %768 = vmatpush.msra.mxu0 %v152
    %769 = vmatpush.msra.mxu0 %v151
    %770 = vmatpush.msra.mxu0 %v150
    %771 = vmatmul.f32.gmra.mxu0 %v750
    %v772 = vpop.f32.mrf.mxu0
    %v773 = vadd.f32 %v161, %v772
    %774 = vdwg.mxu0
    %v776 = vsel %vm440, %v773, 0
    %778 = vmatpush.msra.mxu0 0.0
    %779 = vmatpush.msra.mxu0 0.0
    %780 = vmatpush.msra.mxu0 0.0
    %781 = vmatpush.msra.mxu0 0.0
    %782 = vmatpush.msra.mxu0 0.0
    %783 = vmatpush.msra.mxu0 0.0
    %784 = vmatpush.msra.mxu0 0.0
    %785 = vmatpush.msra.mxu0 0.0
    %786 = vmatpush.msra.mxu0 0.0
    %787 = vmatpush.msra.mxu0 0.0
    %788 = vmatpush.msra.mxu0 0.0
    %789 = vmatpush.msra.mxu0 0.0
    %790 = vmatpush.msra.mxu0 0.0
    %791 = vmatpush.msra.mxu0 %v164
    %792 = vmatpush.msra.mxu0 %v163
    %793 = vmatpush.msra.mxu0 %v162
    %794 = vmatmul.f32.gmra.mxu0 %v776
    %v795 = vpop.f32.mrf.mxu0
    %v796 = vadd.f32 %v165, %v795
    %797 = vdwg.mxu0
    %v798 = vmax.f32 %v796, 0.0
    %v800 = vsel %vm465, %v798, 0
    %802 = vmatpush.msra.mxu0 0.0
    %803 = vmatpush.msra.mxu0 0.0
    %804 = vmatpush.msra.mxu0 0.0
    %805 = vmatpush.msra.mxu0 0.0
    %806 = vmatpush.msra.mxu0 0.0
    %807 = vmatpush.msra.mxu0 0.0
    %808 = vmatpush.msra.mxu0 0.0
    %809 = vmatpush.msra.mxu0 0.0
    %810 = vmatpush.msra.mxu0 0.0
    %811 = vmatpush.msra.mxu0 0.0
    %812 = vmatpush.msra.mxu0 0.0
    %813 = vmatpush.msra.mxu0 0.0
    %814 = vmatpush.msra.mxu0 0.0
    %815 = vmatpush.msra.mxu0 0.0
    %816 = vmatpush.msra.mxu0 %v167
    %817 = vmatpush.msra.mxu0 %v166
    %818 = vmatmul.f32.gmra.mxu0 %v800
    %v819 = vpop.f32.mrf.mxu0
    %v820 = vadd.f32 %v168, %v819
    %821 = vdwg.mxu0
    %v823 = vsel %vm489, %v820, 0
    %v826 = vsel %vm204, %v170, 0
    %828 = vmatpush.msra.mxu0 0.0
    %829 = vmatpush.msra.mxu0 0.0
    %830 = vmatpush.msra.mxu0 0.0
    %831 = vmatpush.msra.mxu0 0.0
    %832 = vmatpush.msra.mxu0 0.0
    %833 = vmatpush.msra.mxu0 0.0
    %834 = vmatpush.msra.mxu0 0.0
    %835 = vmatpush.msra.mxu0 0.0
    %836 = vmatpush.msra.mxu0 0.0
    %837 = vmatpush.msra.mxu0 0.0
    %838 = vmatpush.msra.mxu0 0.0
    %839 = vmatpush.msra.mxu0 0.0
    %840 = vmatpush.msra.mxu0 0.0
    %841 = vmatpush.msra.mxu0 0.0
    %842 = vmatpush.msra.mxu0 %v826
    %843 = vmatpush.msra.mxu0 %v169
    %844 = vmatmul.f32.gmra.mxu0 %v823
    %v845 = vpop.f32.mrf.mxu0
    %v846 = vadd.f32 %v171, %v845
    %847 = vdwg.mxu0
    %v848 = vmax.f32 %v846, 0.0
    %vm849 = vcmask 572416
    %v851 = vsel %vm849, %v848, 0
    %vm853 = vcmask 1045504
    %v855 = vsel %vm853, %v180, 0
    %857 = vmatpush.msra.mxu0 0.0
    %858 = vmatpush.msra.mxu0 0.0
    %859 = vmatpush.msra.mxu0 0.0
    %860 = vmatpush.msra.mxu0 0.0
    %861 = vmatpush.msra.mxu0 0.0
    %862 = vmatpush.msra.mxu0 0.0
    %863 = vmatpush.msra.mxu0 0.0
    %864 = vmatpush.msra.mxu0 %v855
    %865 = vmatpush.msra.mxu0 %v179
    %866 = vmatpush.msra.mxu0 %v178
    %867 = vmatpush.msra.mxu0 %v177
    %868 = vmatpush.msra.mxu0 %v176
    %869 = vmatpush.msra.mxu0 %v175
    %870 = vmatpush.msra.mxu0 %v174
    %871 = vmatpush.msra.mxu0 %v173
    %872 = vmatpush.msra.mxu0 %v172
    %873 = vmatmul.f32.gmra.mxu0 %v851
    %v874 = vpop.f32.mrf.mxu0
    %v875 = vadd.f32 %v181, %v874
    %876 = vdwg.mxu0
    %v877 = vxor.u32 %v875, 2147483648
    %v878 = vmul.f32 %v877, 1.442695
    %v879 = vpow.pop %v878
    %v880 = vadd.f32 %v879, 1.0
    %v881 = vrcp.pop %v880
    %v882 = vmul.f32 %v880, %v881
    %v883 = vsub.f32 1.0, %v882
    %v884 = vmul.f32 %v881, %v883
    %v885 = vadd.f32 %v881, %v884
    %vm886 = vweird.f32 %v880
    %vm887 = vweird.f32 %v881
    %vm888 = vmor %vm886, %vm887
    %v889 = vsel %vm888, %v881, %v885
    %v890 = vand.u32 2147483647, %v880
    %vm891 = vcmp.eq.f32.partialorder %v890, 8.507059e+37
    %v892 = vand.u32 %v880, 2147483648
    %v893 = vor.u32 1.1754944e-38, %v892
    %v894 = vsel %vm891, %v893, %v889
    %v895 = vmul.f32 1.0, %v894
    %v896 = vtanh.pop %v875
    %v897 = vmul.f32 %v895, 0.0
    %899 = vrot.lane.b32.xlu0 %v896, 114
    %v900 = vpop.permute.xlu0 %899
    %v902 = vmul.f32 %v895, %v900
    %904 = vrot.lane.b32.xlu0 %v902, 114
    %v905 = vpop.permute.xlu0 %904
    %v907 = vadd.f32 %v897, %v905
    %vm908 = vcmask 402768
    %v909 = vsel %vm908, %v895, -inf
    %910 = vmax.xlane.f32.xlu0 %v909
    %v911 = vpop.xlane.xlu0 %910
    %v912 = vsub.f32 %v895, %v911
    %v913 = vmul.f32 %v912, 1.442695
    %v914 = vpow.pop %v913
    %916 = vrot.lane.b32.xlu0 %v914, 86
    %v917 = vpop.permute.xlu0 %916
    %vm919 = vcmask 58368
    %v920 = vsel %vm919, %v917, 0.0
    %921 = vadd.xlane.f32.xlu0 %v920
    %v922 = vpop.xlane.xlu0 %921
    %v923 = vrcp.pop %v922
    %v924 = vmul.f32 %v922, %v923
    %v925 = vsub.f32 1.0, %v924
    %v926 = vmul.f32 %v923, %v925
    %v927 = vadd.f32 %v923, %v926
    %vm928 = vweird.f32 %v922
    %vm929 = vweird.f32 %v923
    %vm930 = vmor %vm928, %vm929
    %v931 = vsel %vm930, %v923, %v927
    %v932 = vand.u32 2147483647, %v922
    %vm933 = vcmp.eq.f32.partialorder %v932, 8.507059e+37
    %v934 = vand.u32 %v922, 2147483648
    %v935 = vor.u32 1.1754944e-38, %v934
    %v936 = vsel %vm933, %v935, %v931
    %v937 = vmul.f32 %v914, %v936
    %939 = vrot.lane.b32.xlu0 %v937, 122
    %v940 = vpop.permute.xlu0 %939
    %v942 = vsel %vm200, %v337, %v940
    %v945 = vrot.slane %v229, 2
    %v946 = vrot.slane %v249, 2
    %v950 = vsel %vm251, %v942, 0
    %952 = vmatpush.msra.mxu0 0.0
    %953 = vmatpush.msra.mxu0 0.0
    %954 = vmatpush.msra.mxu0 0.0
    %955 = vmatpush.msra.mxu0 0.0
    %956 = vmatpush.msra.mxu0 0.0
    %957 = vmatpush.msra.mxu0 0.0
    %958 = vmatpush.msra.mxu0 0.0
    %959 = vmatpush.msra.mxu0 0.0
    %960 = vmatpush.msra.mxu0 0.0
    %961 = vmatpush.msra.mxu0 0.0
    %962 = vmatpush.msra.mxu0 %v256
    %963 = vmatpush.msra.mxu0 %v59
    %964 = vmatpush.msra.mxu0 %v57
    %965 = vmatpush.msra.mxu0 %v55
    %966 = vmatpush.msra.mxu0 %v53
    %967 = vmatpush.msra.mxu0 %v51
    %968 = vmatmul.f32.gmra.mxu0 %v950
    %v969 = vpop.f32.mrf.mxu0
    %v970 = vadd.f32 %v945, %v969
    %971 = vdwg.mxu0
    %972 = vmatpush.msra.mxu0 0.0
    %973 = vmatpush.msra.mxu0 0.0
    %974 = vmatpush.msra.mxu0 0.0
    %975 = vmatpush.msra.mxu0 0.0
    %976 = vmatpush.msra.mxu0 0.0
    %977 = vmatpush.msra.mxu0 0.0
    %978 = vmatpush.msra.mxu0 0.0
    %979 = vmatpush.msra.mxu0 0.0
    %980 = vmatpush.msra.mxu0 0.0
    %981 = vmatpush.msra.mxu0 0.0
    %982 = vmatpush.msra.mxu0 %v259
    %983 = vmatpush.msra.mxu0 %v60
    %984 = vmatpush.msra.mxu0 %v58
    %985 = vmatpush.msra.mxu0 %v56
    %986 = vmatpush.msra.mxu0 %v54
    %987 = vmatpush.msra.mxu0 %v52
    %988 = vmatmul.f32.gmra.mxu0 %v950
    %v989 = vpop.f32.mrf.mxu0
    %v990 = vadd.f32 %v946, %v989
    %991 = vdwg.mxu0
    %v992 = vxor.u32 %v970, 2147483648
    %v993 = vmul.f32 %v992, 1.442695
    %v994 = vpow.pop %v993
    %v995 = vadd.f32 %v994, 1.0
    %v996 = vrcp.pop %v995
    %v997 = vmul.f32 %v995, %v996
    %v998 = vsub.f32 1.0, %v997
    %v999 = vmul.f32 %v996, %v998
    %v1000 = vadd.f32 %v996, %v999
    %vm1001 = vweird.f32 %v995
    %vm1002 = vweird.f32 %v996
    %vm1003 = vmor %vm1001, %vm1002
    %v1004 = vsel %vm1003, %v996, %v1000
    %v1005 = vand.u32 2147483647, %v995
    %vm1006 = vcmp.eq.f32.partialorder %v1005, 8.507059e+37
    %v1007 = vand.u32 %v995, 2147483648
    %v1008 = vor.u32 1.1754944e-38, %v1007
    %v1009 = vsel %vm1006, %v1008, %v1004
    %v1010 = vmul.f32 1.0, %v1009
    %v1011 = vtanh.pop %v990
    %v1012 = vmul.f32 %v1010, %v331
    %1014 = vrot.lane.b32.xlu0 %v1011, 36
    %v1015 = vpop.permute.xlu0 %1014
    %v1017 = vmul.f32 %v1010, %v1015
    %1019 = vrot.lane.b32.xlu0 %v1017, 92
    %v1020 = vpop.permute.xlu0 %1019
    %v1022 = vadd.f32 %v1012, %v1020
    %v1023 = vtanh.pop %v1022
    %1025 = vrot.lane.b32.xlu0 %v1010, 56
    %v1026 = vpop.permute.xlu0 %1025
    %v1028 = vmul.f32 %v1023, %v1026
    %1030 = vrot.lane.b32.xlu0 %v1028, 36
    %v1031 = vpop.permute.xlu0 %1030
    %v1033 = vsel %vm200, %v337, %v1031
    %v1035 = vsel %vm343, %v1033, 0
    %1037 = vmatpush.msra.mxu0 0.0
    %1038 = vmatpush.msra.mxu0 0.0
    %1039 = vmatpush.msra.mxu0 0.0
    %1040 = vmatpush.msra.mxu0 0.0
    %1041 = vmatpush.msra.mxu0 0.0
    %1042 = vmatpush.msra.mxu0 0.0
    %1043 = vmatpush.msra.mxu0 0.0
    %1044 = vmatpush.msra.mxu0 %v73
    %1045 = vmatpush.msra.mxu0 %v72
    %1046 = vmatpush.msra.mxu0 %v71
    %1047 = vmatpush.msra.mxu0 %v70
    %1048 = vmatpush.msra.mxu0 %v69
    %1049 = vmatpush.msra.mxu0 %v68
    %1050 = vmatpush.msra.mxu0 %v67
    %1051 = vmatpush.msra.mxu0 %v66
    %1052 = vmatpush.msra.mxu0 %v65
    %1053 = vmatmul.f32.gmra.mxu0 %v1035
    %v1054 = vpop.f32.mrf.mxu0
    %v1055 = vadd.f32 %v74, %v1054
    %1056 = vdwg.mxu0
    %v1057 = vmax.f32 %v1055, 0.0
    %v1059 = vsel %vm368, %v1057, 0
    %1061 = vmatpush.msra.mxu0 0.0
    %1062 = vmatpush.msra.mxu0 0.0
    %1063 = vmatpush.msra.mxu0 0.0
    %1064 = vmatpush.msra.mxu0 0.0
    %1065 = vmatpush.msra.mxu0 0.0
    %1066 = vmatpush.msra.mxu0 0.0
    %1067 = vmatpush.msra.mxu0 0.0
    %1068 = vmatpush.msra.mxu0 0.0
    %1069 = vmatpush.msra.mxu0 %v373
    %1070 = vmatpush.msra.mxu0 %v81
    %1071 = vmatpush.msra.mxu0 %v80
    %1072 = vmatpush.msra.mxu0 %v79
    %1073 = vmatpush.msra.mxu0 %v78
    %1074 = vmatpush.msra.mxu0 %v77
    %1075 = vmatpush.msra.mxu0 %v76
    %1076 = vmatpush.msra.mxu0 %v75
    %1077 = vmatmul.f32.gmra.mxu0 %v1059
    %v1078 = vpop.f32.mrf.mxu0
    %v1079 = vadd.f32 %v83, %v1078
    %1080 = vdwg.mxu0
    %v1081 = vxor.u32 %v1079, 2147483648
    %v1082 = vmul.f32 %v1081, 1.442695
    %v1083 = vpow.pop %v1082
    %v1084 = vadd.f32 %v1083, 1.0
    %v1085 = vrcp.pop %v1084
    %v1086 = vmul.f32 %v1084, %v1085
    %v1087 = vsub.f32 1.0, %v1086
    %v1088 = vmul.f32 %v1085, %v1087
    %v1089 = vadd.f32 %v1085, %v1088
    %vm1090 = vweird.f32 %v1084
    %vm1091 = vweird.f32 %v1085
    %vm1092 = vmor %vm1090, %vm1091
    %v1093 = vsel %vm1092, %v1085, %v1089
    %v1094 = vand.u32 2147483647, %v1084
    %vm1095 = vcmp.eq.f32.partialorder %v1094, 8.507059e+37
    %v1096 = vand.u32 %v1084, 2147483648
    %v1097 = vor.u32 1.1754944e-38, %v1096
    %v1098 = vsel %vm1095, %v1097, %v1093
    %v1099 = vmul.f32 1.0, %v1098
    %v1101 = vsel %vm200, %v1099, 0
    %1103 = vmatpush.msra.mxu0 0.0
    %1104 = vmatpush.msra.mxu0 0.0
    %1105 = vmatpush.msra.mxu0 0.0
    %1106 = vmatpush.msra.mxu0 0.0
    %1107 = vmatpush.msra.mxu0 0.0
    %1108 = vmatpush.msra.mxu0 0.0
    %1109 = vmatpush.msra.mxu0 0.0
    %1110 = vmatpush.msra.mxu0 0.0
    %1111 = vmatpush.msra.mxu0 0.0
    %1112 = vmatpush.msra.mxu0 0.0
    %1113 = vmatpush.msra.mxu0 0.0
    %1114 = vmatpush.msra.mxu0 %v418
    %1115 = vmatpush.msra.mxu0 %v87
    %1116 = vmatpush.msra.mxu0 %v86
    %1117 = vmatpush.msra.mxu0 %v85
    %1118 = vmatpush.msra.mxu0 %v84
    %1119 = vmatmul.f32.gmra.mxu0 %v1101
    %v1120 = vpop.f32.mrf.mxu0
    %v1121 = vadd.f32 %v89, %v1120
    %1122 = vdwg.mxu0
    %v1124 = vsel %vm440, %v1121, 0
    %1126 = vmatpush.msra.mxu0 0.0
    %1127 = vmatpush.msra.mxu0 0.0
    %1128 = vmatpush.msra.mxu0 0.0
    %1129 = vmatpush.msra.mxu0 0.0
    %1130 = vmatpush.msra.mxu0 0.0
    %1131 = vmatpush.msra.mxu0 0.0
    %1132 = vmatpush.msra.mxu0 0.0
    %1133 = vmatpush.msra.mxu0 0.0
    %1134 = vmatpush.msra.mxu0 0.0
    %1135 = vmatpush.msra.mxu0 0.0
    %1136 = vmatpush.msra.mxu0 0.0
    %1137 = vmatpush.msra.mxu0 0.0
    %1138 = vmatpush.msra.mxu0 0.0
    %1139 = vmatpush.msra.mxu0 %v92
    %1140 = vmatpush.msra.mxu0 %v91
    %1141 = vmatpush.msra.mxu0 %v90
    %1142 = vmatmul.f32.gmra.mxu0 %v1124
    %v1143 = vpop.f32.mrf.mxu0
    %v1144 = vadd.f32 %v93, %v1143
    %1145 = vdwg.mxu0
    %v1146 = vmax.f32 %v1144, 0.0
    %v1148 = vsel %vm465, %v1146, 0
    %1150 = vmatpush.msra.mxu0 0.0
    %1151 = vmatpush.msra.mxu0 0.0
    %1152 = vmatpush.msra.mxu0 0.0
    %1153 = vmatpush.msra.mxu0 0.0
    %1154 = vmatpush.msra.mxu0 0.0
    %1155 = vmatpush.msra.mxu0 0.0
    %1156 = vmatpush.msra.mxu0 0.0
    %1157 = vmatpush.msra.mxu0 0.0
    %1158 = vmatpush.msra.mxu0 0.0
    %1159 = vmatpush.msra.mxu0 0.0
    %1160 = vmatpush.msra.mxu0 0.0
    %1161 = vmatpush.msra.mxu0 0.0
    %1162 = vmatpush.msra.mxu0 0.0
    %1163 = vmatpush.msra.mxu0 0.0
    %1164 = vmatpush.msra.mxu0 %v95
    %1165 = vmatpush.msra.mxu0 %v94
    %1166 = vmatmul.f32.gmra.mxu0 %v1148
    %v1167 = vpop.f32.mrf.mxu0
    %v1168 = vadd.f32 %v96, %v1167
    %1169 = vdwg.mxu0
    %v1171 = vsel %vm489, %v1168, 0
    %1173 = vmatpush.msra.mxu0 0.0
    %1174 = vmatpush.msra.mxu0 0.0
    %1175 = vmatpush.msra.mxu0 0.0
    %1176 = vmatpush.msra.mxu0 0.0
    %1177 = vmatpush.msra.mxu0 0.0
    %1178 = vmatpush.msra.mxu0 0.0
    %1179 = vmatpush.msra.mxu0 0.0
    %1180 = vmatpush.msra.mxu0 0.0
    %1181 = vmatpush.msra.mxu0 0.0
    %1182 = vmatpush.msra.mxu0 0.0
    %1183 = vmatpush.msra.mxu0 0.0
    %1184 = vmatpush.msra.mxu0 0.0
    %1185 = vmatpush.msra.mxu0 0.0
    %1186 = vmatpush.msra.mxu0 0.0
    %1187 = vmatpush.msra.mxu0 %v494
    %1188 = vmatpush.msra.mxu0 %v97
    %1189 = vmatmul.f32.gmra.mxu0 %v1171
    %v1190 = vpop.f32.mrf.mxu0
    %v1191 = vadd.f32 %v99, %v1190
    %1192 = vdwg.mxu0
    %v1194 = vsel %vm516, %v1191, 0
    %1196 = vmatpush.msra.mxu0 0.0
    %1197 = vmatpush.msra.mxu0 0.0
    %1198 = vmatpush.msra.mxu0 0.0
    %1199 = vmatpush.msra.mxu0 0.0
    %1200 = vmatpush.msra.mxu0 0.0
    %1201 = vmatpush.msra.mxu0 0.0
    %1202 = vmatpush.msra.mxu0 0.0
    %1203 = vmatpush.msra.mxu0 0.0
    %1204 = vmatpush.msra.mxu0 0.0
    %1205 = vmatpush.msra.mxu0 0.0
    %1206 = vmatpush.msra.mxu0 0.0
    %1207 = vmatpush.msra.mxu0 0.0
    %1208 = vmatpush.msra.mxu0 0.0
    %1209 = vmatpush.msra.mxu0 %v522
    %1210 = vmatpush.msra.mxu0 %v102
    %1211 = vmatpush.msra.mxu0 %v100
    %1212 = vmatmul.f32.gmra.mxu0 %v1194
    %v1213 = vpop.f32.mrf.mxu0
    %v1214 = vadd.f32 0.0, %v1213
    %1215 = vdwg.mxu0
    %1216 = vmatpush.msra.mxu0 0.0
    %1217 = vmatpush.msra.mxu0 0.0
    %1218 = vmatpush.msra.mxu0 0.0
    %1219 = vmatpush.msra.mxu0 0.0
    %1220 = vmatpush.msra.mxu0 0.0
    %1221 = vmatpush.msra.mxu0 0.0
    %1222 = vmatpush.msra.mxu0 0.0
    %1223 = vmatpush.msra.mxu0 0.0
    %1224 = vmatpush.msra.mxu0 0.0
    %1225 = vmatpush.msra.mxu0 0.0
    %1226 = vmatpush.msra.mxu0 0.0
    %1227 = vmatpush.msra.mxu0 0.0
    %1228 = vmatpush.msra.mxu0 0.0
    %1229 = vmatpush.msra.mxu0 %v525
    %1230 = vmatpush.msra.mxu0 %v103
    %1231 = vmatpush.msra.mxu0 %v101
    %1232 = vmatmul.f32.gmra.mxu0 %v1194
    %v1233 = vpop.f32.mrf.mxu0
    %v1234 = vadd.f32 0.0, %v1233
    %1235 = vdwg.mxu0
    %1236 = vrot.lane.b32.xlu0 %v1099, 22
    %v1237 = vpop.permute.xlu0 %1236
    %1239 = vrot.lane.b32.xlu0 %v1099, 10
    %v1240 = vpop.permute.xlu0 %1239
    %1242 = vrot.lane.b32.xlu0 %v1099, 36
    %v1243 = vpop.permute.xlu0 %1242
    %v1245 = vsel %vm576, %v1099, %v1237
    %v1246 = vsel %vm578, %v1245, %v1240
    %v1247 = vsel %vm580, %v1246, %v1243
    %v1248 = vmul.f32 %v1247, %v1214
    %v1250 = vsel %vm343, %v1248, 0
    %1252 = vmatpush.msra.mxu0 0.0
    %1253 = vmatpush.msra.mxu0 0.0
    %1254 = vmatpush.msra.mxu0 0.0
    %1255 = vmatpush.msra.mxu0 0.0
    %1256 = vmatpush.msra.mxu0 0.0
    %1257 = vmatpush.msra.mxu0 0.0
    %1258 = vmatpush.msra.mxu0 0.0
    %1259 = vmatpush.msra.mxu0 %v114
    %1260 = vmatpush.msra.mxu0 %v113
    %1261 = vmatpush.msra.mxu0 %v112
    %1262 = vmatpush.msra.mxu0 %v111
    %1263 = vmatpush.msra.mxu0 %v110
    %1264 = vmatpush.msra.mxu0 %v109
    %1265 = vmatpush.msra.mxu0 %v108
    %1266 = vmatpush.msra.mxu0 %v107
    %1267 = vmatpush.msra.mxu0 %v106
    %1268 = vmatmul.f32.gmra.mxu0 %v1250
    %v1269 = vpop.f32.mrf.mxu0
    %v1270 = vadd.f32 %v115, %v1269
    %1271 = vdwg.mxu0
    %v1273 = vsel %vm343, %v1270, 0
    %1275 = vmatpush.msra.mxu0 0.0
    %1276 = vmatpush.msra.mxu0 0.0
    %1277 = vmatpush.msra.mxu0 0.0
    %1278 = vmatpush.msra.mxu0 0.0
    %1279 = vmatpush.msra.mxu0 0.0
    %1280 = vmatpush.msra.mxu0 0.0
    %1281 = vmatpush.msra.mxu0 0.0
    %1282 = vmatpush.msra.mxu0 %v124
    %1283 = vmatpush.msra.mxu0 %v123
    %1284 = vmatpush.msra.mxu0 %v122
    %1285 = vmatpush.msra.mxu0 %v121
    %1286 = vmatpush.msra.mxu0 %v120
    %1287 = vmatpush.msra.mxu0 %v119
    %1288 = vmatpush.msra.mxu0 %v118
    %1289 = vmatpush.msra.mxu0 %v117
    %1290 = vmatpush.msra.mxu0 %v116
    %1291 = vmatmul.f32.gmra.mxu0 %v1273
    %v1292 = vpop.f32.mrf.mxu0
    %v1293 = vadd.f32 %v125, %v1292
    %1294 = vdwg.mxu0
    %v1295 = vmax.f32 %v1293, 0.0
    %v1297 = vsel %vm630, %v1295, 0
    %1299 = vmatpush.msra.mxu0 0.0
    %1300 = vmatpush.msra.mxu0 0.0
    %1301 = vmatpush.msra.mxu0 0.0
    %1302 = vmatpush.msra.mxu0 0.0
    %1303 = vmatpush.msra.mxu0 0.0
    %1304 = vmatpush.msra.mxu0 0.0
    %1305 = vmatpush.msra.mxu0 0.0
    %1306 = vmatpush.msra.mxu0 0.0
    %1307 = vmatpush.msra.mxu0 0.0
    %1308 = vmatpush.msra.mxu0 0.0
    %1309 = vmatpush.msra.mxu0 %v131
    %1310 = vmatpush.msra.mxu0 %v130
    %1311 = vmatpush.msra.mxu0 %v129
    %1312 = vmatpush.msra.mxu0 %v128
    %1313 = vmatpush.msra.mxu0 %v127
    %1314 = vmatpush.msra.mxu0 %v126
    %1315 = vmatmul.f32.gmra.mxu0 %v1297
    %v1316 = vpop.f32.mrf.mxu0
    %v1317 = vadd.f32 %v132, %v1316
    %1318 = vdwg.mxu0
    %1320 = vrot.lane.b32.xlu0 %v1317, 36
    %v1321 = vpop.permute.xlu0 %1320
    %v1323 = vsel %vm200, %v1099, %v1321
    %1326 = vrot.lane.b32.xlu0 %v1214, 56
    %v1327 = vpop.permute.xlu0 %1326
    %1328 = vrot.lane.b32.xlu0 %v1234, 56
    %v1329 = vpop.permute.xlu0 %1328
    %v1330 = vsel %vm665, %v1327, %v1329
    %v1332 = vmul.f32 %v1323, %v1330
    %v1334 = vsel %vm343, %v1332, 0
    %1336 = vmatpush.msra.mxu0 0.0
    %1337 = vmatpush.msra.mxu0 0.0
    %1338 = vmatpush.msra.mxu0 0.0
    %1339 = vmatpush.msra.mxu0 0.0
    %1340 = vmatpush.msra.mxu0 0.0
    %1341 = vmatpush.msra.mxu0 0.0
    %1342 = vmatpush.msra.mxu0 0.0
    %1343 = vmatpush.msra.mxu0 %v141
    %1344 = vmatpush.msra.mxu0 %v140
    %1345 = vmatpush.msra.mxu0 %v139
    %1346 = vmatpush.msra.mxu0 %v138
    %1347 = vmatpush.msra.mxu0 %v137
    %1348 = vmatpush.msra.mxu0 %v136
    %1349 = vmatpush.msra.mxu0 %v135
    %1350 = vmatpush.msra.mxu0 %v134
    %1351 = vmatpush.msra.mxu0 %v133
    %1352 = vmatmul.f32.gmra.mxu0 %v1334
    %v1353 = vpop.f32.mrf.mxu0
    %v1354 = vadd.f32 %v142, %v1353
    %1355 = vdwg.mxu0
    %v1357 = vsel %vm440, %v1354, 0
    %1359 = vmatpush.msra.mxu0 0.0
    %1360 = vmatpush.msra.mxu0 0.0
    %1361 = vmatpush.msra.mxu0 0.0
    %1362 = vmatpush.msra.mxu0 0.0
    %1363 = vmatpush.msra.mxu0 0.0
    %1364 = vmatpush.msra.mxu0 0.0
    %1365 = vmatpush.msra.mxu0 0.0
    %1366 = vmatpush.msra.mxu0 0.0
    %1367 = vmatpush.msra.mxu0 0.0
    %1368 = vmatpush.msra.mxu0 0.0
    %1369 = vmatpush.msra.mxu0 0.0
    %1370 = vmatpush.msra.mxu0 0.0
    %1371 = vmatpush.msra.mxu0 0.0
    %1372 = vmatpush.msra.mxu0 %v145
    %1373 = vmatpush.msra.mxu0 %v144
    %1374 = vmatpush.msra.mxu0 %v143
    %1375 = vmatmul.f32.gmra.mxu0 %v1357
    %v1376 = vpop.f32.mrf.mxu0
    %v1377 = vadd.f32 %v146, %v1376
    %1378 = vdwg.mxu0
    %v1379 = vmax.f32 %v1377, 0.0
    %v1381 = vsel %vm465, %v1379, 0
    %1383 = vmatpush.msra.mxu0 0.0
    %1384 = vmatpush.msra.mxu0 0.0
    %1385 = vmatpush.msra.mxu0 0.0
    %1386 = vmatpush.msra.mxu0 0.0
    %1387 = vmatpush.msra.mxu0 0.0
    %1388 = vmatpush.msra.mxu0 0.0
    %1389 = vmatpush.msra.mxu0 0.0
    %1390 = vmatpush.msra.mxu0 0.0
    %1391 = vmatpush.msra.mxu0 0.0
    %1392 = vmatpush.msra.mxu0 0.0
    %1393 = vmatpush.msra.mxu0 0.0
    %1394 = vmatpush.msra.mxu0 0.0
    %1395 = vmatpush.msra.mxu0 0.0
    %1396 = vmatpush.msra.mxu0 0.0
    %1397 = vmatpush.msra.mxu0 %v148
    %1398 = vmatpush.msra.mxu0 %v147
    %1399 = vmatmul.f32.gmra.mxu0 %v1381
    %v1400 = vpop.f32.mrf.mxu0
    %v1401 = vadd.f32 %v149, %v1400
    %1402 = vdwg.mxu0
    %1404 = vrot.lane.b32.xlu0 %v1401, 72
    %v1405 = vpop.permute.xlu0 %1404
    %v1407 = vsel %vm343, %v1323, %v1405
    %1408 = vrot.lane.b32.xlu0 %v1234, 112
    %v1409 = vpop.permute.xlu0 %1408
    %v1411 = vmul.f32 %v1407, %v1409
    %v1413 = vsel %vm748, %v1411, 0
    %1415 = vmatpush.msra.mxu0 0.0
    %1416 = vmatpush.msra.mxu0 0.0
    %1417 = vmatpush.msra.mxu0 0.0
    %1418 = vmatpush.msra.mxu0 0.0
    %1419 = vmatpush.msra.mxu0 0.0
    %1420 = vmatpush.msra.mxu0 %v753
    %1421 = vmatpush.msra.mxu0 %v159
    %1422 = vmatpush.msra.mxu0 %v158
    %1423 = vmatpush.msra.mxu0 %v157
    %1424 = vmatpush.msra.mxu0 %v156
    %1425 = vmatpush.msra.mxu0 %v155
    %1426 = vmatpush.msra.mxu0 %v154
    %1427 = vmatpush.msra.mxu0 %v153
    %1428 = vmatpush.msra.mxu0 %v152
    %1429 = vmatpush.msra.mxu0 %v151
    %1430 = vmatpush.msra.mxu0 %v150
    %1431 = vmatmul.f32.gmra.mxu0 %v1413
    %v1432 = vpop.f32.mrf.mxu0
    %v1433 = vadd.f32 %v161, %v1432
    %1434 = vdwg.mxu0
    %v1436 = vsel %vm440, %v1433, 0
    %1438 = vmatpush.msra.mxu0 0.0
    %1439 = vmatpush.msra.mxu0 0.0
    %1440 = vmatpush.msra.mxu0 0.0
    %1441 = vmatpush.msra.mxu0 0.0
    %1442 = vmatpush.msra.mxu0 0.0
    %1443 = vmatpush.msra.mxu0 0.0
    %1444 = vmatpush.msra.mxu0 0.0
    %1445 = vmatpush.msra.mxu0 0.0
    %1446 = vmatpush.msra.mxu0 0.0
    %1447 = vmatpush.msra.mxu0 0.0
    %1448 = vmatpush.msra.mxu0 0.0
    %1449 = vmatpush.msra.mxu0 0.0
    %1450 = vmatpush.msra.mxu0 0.0
    %1451 = vmatpush.msra.mxu0 %v164
    %1452 = vmatpush.msra.mxu0 %v163
    %1453 = vmatpush.msra.mxu0 %v162
    %1454 = vmatmul.f32.gmra.mxu0 %v1436
    %v1455 = vpop.f32.mrf.mxu0
    %v1456 = vadd.f32 %v165, %v1455
    %1457 = vdwg.mxu0
    %v1458 = vmax.f32 %v1456, 0.0
    %v1460 = vsel %vm465, %v1458, 0
    %1462 = vmatpush.msra.mxu0 0.0
    %1463 = vmatpush.msra.mxu0 0.0
    %1464 = vmatpush.msra.mxu0 0.0
    %1465 = vmatpush.msra.mxu0 0.0
    %1466 = vmatpush.msra.mxu0 0.0
    %1467 = vmatpush.msra.mxu0 0.0
    %1468 = vmatpush.msra.mxu0 0.0
    %1469 = vmatpush.msra.mxu0 0.0
    %1470 = vmatpush.msra.mxu0 0.0
    %1471 = vmatpush.msra.mxu0 0.0
    %1472 = vmatpush.msra.mxu0 0.0
    %1473 = vmatpush.msra.mxu0 0.0
    %1474 = vmatpush.msra.mxu0 0.0
    %1475 = vmatpush.msra.mxu0 0.0
    %1476 = vmatpush.msra.mxu0 %v167
    %1477 = vmatpush.msra.mxu0 %v166
    %1478 = vmatmul.f32.gmra.mxu0 %v1460
    %v1479 = vpop.f32.mrf.mxu0
    %v1480 = vadd.f32 %v168, %v1479
    %1481 = vdwg.mxu0
    %v1483 = vsel %vm489, %v1480, 0
    %1485 = vmatpush.msra.mxu0 0.0
    %1486 = vmatpush.msra.mxu0 0.0
    %1487 = vmatpush.msra.mxu0 0.0
    %1488 = vmatpush.msra.mxu0 0.0
    %1489 = vmatpush.msra.mxu0 0.0
    %1490 = vmatpush.msra.mxu0 0.0
    %1491 = vmatpush.msra.mxu0 0.0
    %1492 = vmatpush.msra.mxu0 0.0
    %1493 = vmatpush.msra.mxu0 0.0
    %1494 = vmatpush.msra.mxu0 0.0
    %1495 = vmatpush.msra.mxu0 0.0
    %1496 = vmatpush.msra.mxu0 0.0
    %1497 = vmatpush.msra.mxu0 0.0
    %1498 = vmatpush.msra.mxu0 0.0
    %1499 = vmatpush.msra.mxu0 %v826
    %1500 = vmatpush.msra.mxu0 %v169
    %1501 = vmatmul.f32.gmra.mxu0 %v1483
    %v1502 = vpop.f32.mrf.mxu0
    %v1503 = vadd.f32 %v171, %v1502
    %1504 = vdwg.mxu0
    %v1505 = vmax.f32 %v1503, 0.0
    %v1507 = vsel %vm849, %v1505, 0
    %1509 = vmatpush.msra.mxu0 0.0
    %1510 = vmatpush.msra.mxu0 0.0
    %1511 = vmatpush.msra.mxu0 0.0
    %1512 = vmatpush.msra.mxu0 0.0
    %1513 = vmatpush.msra.mxu0 0.0
    %1514 = vmatpush.msra.mxu0 0.0
    %1515 = vmatpush.msra.mxu0 0.0
    %1516 = vmatpush.msra.mxu0 %v855
    %1517 = vmatpush.msra.mxu0 %v179
    %1518 = vmatpush.msra.mxu0 %v178
    %1519 = vmatpush.msra.mxu0 %v177
    %1520 = vmatpush.msra.mxu0 %v176
    %1521 = vmatpush.msra.mxu0 %v175
    %1522 = vmatpush.msra.mxu0 %v174
    %1523 = vmatpush.msra.mxu0 %v173
    %1524 = vmatpush.msra.mxu0 %v172
    %1525 = vmatmul.f32.gmra.mxu0 %v1507
    %v1526 = vpop.f32.mrf.mxu0
    %v1527 = vadd.f32 %v181, %v1526
    %1528 = vdwg.mxu0
    %v1529 = vxor.u32 %v1527, 2147483648
    %v1530 = vmul.f32 %v1529, 1.442695
    %v1531 = vpow.pop %v1530
    %v1532 = vadd.f32 %v1531, 1.0
    %v1533 = vrcp.pop %v1532
    %v1534 = vmul.f32 %v1532, %v1533
    %v1535 = vsub.f32 1.0, %v1534
    %v1536 = vmul.f32 %v1533, %v1535
    %v1537 = vadd.f32 %v1533, %v1536
    %vm1538 = vweird.f32 %v1532
    %vm1539 = vweird.f32 %v1533
    %vm1540 = vmor %vm1538, %vm1539
    %v1541 = vsel %vm1540, %v1533, %v1537
    %v1542 = vand.u32 2147483647, %v1532
    %vm1543 = vcmp.eq.f32.partialorder %v1542, 8.507059e+37
    %v1544 = vand.u32 %v1532, 2147483648
    %v1545 = vor.u32 1.1754944e-38, %v1544
    %v1546 = vsel %vm1543, %v1545, %v1541
    %v1547 = vmul.f32 1.0, %v1546
    %v1548 = vtanh.pop %v1527
    %v1549 = vmul.f32 %v1547, %v907
    %1551 = vrot.lane.b32.xlu0 %v1548, 114
    %v1552 = vpop.permute.xlu0 %1551
    %v1554 = vmul.f32 %v1547, %v1552
    %1556 = vrot.lane.b32.xlu0 %v1554, 114
    %v1557 = vpop.permute.xlu0 %1556
    %v1559 = vadd.f32 %v1549, %v1557
    %v1560 = vsel %vm908, %v1547, -inf
    %1561 = vmax.xlane.f32.xlu0 %v1560
    %v1562 = vpop.xlane.xlu0 %1561
    %v1563 = vsub.f32 %v1547, %v1562
    %v1564 = vmul.f32 %v1563, 1.442695
    %v1565 = vpow.pop %v1564
    %1567 = vrot.lane.b32.xlu0 %v1565, 86
    %v1568 = vpop.permute.xlu0 %1567
    %v1570 = vsel %vm919, %v1568, 0.0
    %1571 = vadd.xlane.f32.xlu0 %v1570
    %v1572 = vpop.xlane.xlu0 %1571
    %v1573 = vrcp.pop %v1572
    %v1574 = vmul.f32 %v1572, %v1573
    %v1575 = vsub.f32 1.0, %v1574
    %v1576 = vmul.f32 %v1573, %v1575
    %v1577 = vadd.f32 %v1573, %v1576
    %vm1578 = vweird.f32 %v1572
    %vm1579 = vweird.f32 %v1573
    %vm1580 = vmor %vm1578, %vm1579
    %v1581 = vsel %vm1580, %v1573, %v1577
    %v1582 = vand.u32 2147483647, %v1572
    %vm1583 = vcmp.eq.f32.partialorder %v1582, 8.507059e+37
    %v1584 = vand.u32 %v1572, 2147483648
    %v1585 = vor.u32 1.1754944e-38, %v1584
    %v1586 = vsel %vm1583, %v1585, %v1581
    %v1587 = vmul.f32 %v1565, %v1586
    %1589 = vrot.lane.b32.xlu0 %v1587, 122
    %v1590 = vpop.permute.xlu0 %1589
    %v1592 = vsel %vm200, %v1028, %v1590
    %v1593 = vrot.slane %v229, 4
    %v1594 = vrot.slane %v249, 4
    %v1598 = vsel %vm251, %v1592, 0
    %1600 = vmatpush.msra.mxu0 0.0
    %1601 = vmatpush.msra.mxu0 0.0
    %1602 = vmatpush.msra.mxu0 0.0
    %1603 = vmatpush.msra.mxu0 0.0
    %1604 = vmatpush.msra.mxu0 0.0
    %1605 = vmatpush.msra.mxu0 0.0
    %1606 = vmatpush.msra.mxu0 0.0
    %1607 = vmatpush.msra.mxu0 0.0
    %1608 = vmatpush.msra.mxu0 0.0
    %1609 = vmatpush.msra.mxu0 0.0
    %1610 = vmatpush.msra.mxu0 %v256
    %1611 = vmatpush.msra.mxu0 %v59
    %1612 = vmatpush.msra.mxu0 %v57
    %1613 = vmatpush.msra.mxu0 %v55
    %1614 = vmatpush.msra.mxu0 %v53
    %1615 = vmatpush.msra.mxu0 %v51
    %1616 = vmatmul.f32.gmra.mxu0 %v1598
    %v1617 = vpop.f32.mrf.mxu0
    %v1618 = vadd.f32 %v1593, %v1617
    %1619 = vdwg.mxu0
    %1620 = vmatpush.msra.mxu0 0.0
    %1621 = vmatpush.msra.mxu0 0.0
    %1622 = vmatpush.msra.mxu0 0.0
    %1623 = vmatpush.msra.mxu0 0.0
    %1624 = vmatpush.msra.mxu0 0.0
    %1625 = vmatpush.msra.mxu0 0.0
    %1626 = vmatpush.msra.mxu0 0.0
    %1627 = vmatpush.msra.mxu0 0.0
    %1628 = vmatpush.msra.mxu0 0.0
    %1629 = vmatpush.msra.mxu0 0.0
    %1630 = vmatpush.msra.mxu0 %v259
    %1631 = vmatpush.msra.mxu0 %v60
    %1632 = vmatpush.msra.mxu0 %v58
    %1633 = vmatpush.msra.mxu0 %v56
    %1634 = vmatpush.msra.mxu0 %v54
    %1635 = vmatpush.msra.mxu0 %v52
    %1636 = vmatmul.f32.gmra.mxu0 %v1598
    %v1637 = vpop.f32.mrf.mxu0
    %v1638 = vadd.f32 %v1594, %v1637
    %1639 = vdwg.mxu0
    %v1640 = vxor.u32 %v1618, 2147483648
    %v1641 = vmul.f32 %v1640, 1.442695
    %v1642 = vpow.pop %v1641
    %v1643 = vadd.f32 %v1642, 1.0
    %v1644 = vrcp.pop %v1643
    %v1645 = vmul.f32 %v1643, %v1644
    %v1646 = vsub.f32 1.0, %v1645
    %v1647 = vmul.f32 %v1644, %v1646
    %v1648 = vadd.f32 %v1644, %v1647
    %vm1649 = vweird.f32 %v1643
    %vm1650 = vweird.f32 %v1644
    %vm1651 = vmor %vm1649, %vm1650
    %v1652 = vsel %vm1651, %v1644, %v1648
    %v1653 = vand.u32 2147483647, %v1643
    %vm1654 = vcmp.eq.f32.partialorder %v1653, 8.507059e+37
    %v1655 = vand.u32 %v1643, 2147483648
    %v1656 = vor.u32 1.1754944e-38, %v1655
    %v1657 = vsel %vm1654, %v1656, %v1652
    %v1658 = vmul.f32 1.0, %v1657
    %v1659 = vtanh.pop %v1638
    %v1660 = vmul.f32 %v1658, %v1022
    %1662 = vrot.lane.b32.xlu0 %v1659, 36
    %v1663 = vpop.permute.xlu0 %1662
    %v1665 = vmul.f32 %v1658, %v1663
    %1667 = vrot.lane.b32.xlu0 %v1665, 92
    %v1668 = vpop.permute.xlu0 %1667
    %v1670 = vadd.f32 %v1660, %v1668
    %v1671 = vtanh.pop %v1670
    %1673 = vrot.lane.b32.xlu0 %v1658, 56
    %v1674 = vpop.permute.xlu0 %1673
    %v1676 = vmul.f32 %v1671, %v1674
    %1678 = vrot.lane.b32.xlu0 %v1676, 36
    %v1679 = vpop.permute.xlu0 %1678
    %v1681 = vsel %vm200, %v1028, %v1679
    %v1683 = vsel %vm343, %v1681, 0
    %1685 = vmatpush.msra.mxu0 0.0
    %1686 = vmatpush.msra.mxu0 0.0
    %1687 = vmatpush.msra.mxu0 0.0
    %1688 = vmatpush.msra.mxu0 0.0
    %1689 = vmatpush.msra.mxu0 0.0
    %1690 = vmatpush.msra.mxu0 0.0
    %1691 = vmatpush.msra.mxu0 0.0
    %1692 = vmatpush.msra.mxu0 %v73
    %1693 = vmatpush.msra.mxu0 %v72
    %1694 = vmatpush.msra.mxu0 %v71
    %1695 = vmatpush.msra.mxu0 %v70
    %1696 = vmatpush.msra.mxu0 %v69
    %1697 = vmatpush.msra.mxu0 %v68
    %1698 = vmatpush.msra.mxu0 %v67
    %1699 = vmatpush.msra.mxu0 %v66
    %1700 = vmatpush.msra.mxu0 %v65
    %1701 = vmatmul.f32.gmra.mxu0 %v1683
    %v1702 = vpop.f32.mrf.mxu0
    %v1703 = vadd.f32 %v74, %v1702
    %1704 = vdwg.mxu0
    %v1705 = vmax.f32 %v1703, 0.0
    %v1707 = vsel %vm368, %v1705, 0
    %1709 = vmatpush.msra.mxu0 0.0
    %1710 = vmatpush.msra.mxu0 0.0
    %1711 = vmatpush.msra.mxu0 0.0
    %1712 = vmatpush.msra.mxu0 0.0
    %1713 = vmatpush.msra.mxu0 0.0
    %1714 = vmatpush.msra.mxu0 0.0
    %1715 = vmatpush.msra.mxu0 0.0
    %1716 = vmatpush.msra.mxu0 0.0
    %1717 = vmatpush.msra.mxu0 %v373
    %1718 = vmatpush.msra.mxu0 %v81
    %1719 = vmatpush.msra.mxu0 %v80
    %1720 = vmatpush.msra.mxu0 %v79
    %1721 = vmatpush.msra.mxu0 %v78
    %1722 = vmatpush.msra.mxu0 %v77
    %1723 = vmatpush.msra.mxu0 %v76
    %1724 = vmatpush.msra.mxu0 %v75
    %1725 = vmatmul.f32.gmra.mxu0 %v1707
    %v1726 = vpop.f32.mrf.mxu0
    %v1727 = vadd.f32 %v83, %v1726
    %1728 = vdwg.mxu0
    %v1729 = vxor.u32 %v1727, 2147483648
    %v1730 = vmul.f32 %v1729, 1.442695
    %v1731 = vpow.pop %v1730
    %v1732 = vadd.f32 %v1731, 1.0
    %v1733 = vrcp.pop %v1732
    %v1734 = vmul.f32 %v1732, %v1733
    %v1735 = vsub.f32 1.0, %v1734
    %v1736 = vmul.f32 %v1733, %v1735
    %v1737 = vadd.f32 %v1733, %v1736
    %vm1738 = vweird.f32 %v1732
    %vm1739 = vweird.f32 %v1733
    %vm1740 = vmor %vm1738, %vm1739
    %v1741 = vsel %vm1740, %v1733, %v1737
    %v1742 = vand.u32 2147483647, %v1732
    %vm1743 = vcmp.eq.f32.partialorder %v1742, 8.507059e+37
    %v1744 = vand.u32 %v1732, 2147483648
    %v1745 = vor.u32 1.1754944e-38, %v1744
    %v1746 = vsel %vm1743, %v1745, %v1741
    %v1747 = vmul.f32 1.0, %v1746
    %v1749 = vsel %vm200, %v1747, 0
    %1751 = vmatpush.msra.mxu0 0.0
    %1752 = vmatpush.msra.mxu0 0.0
    %1753 = vmatpush.msra.mxu0 0.0
    %1754 = vmatpush.msra.mxu0 0.0
    %1755 = vmatpush.msra.mxu0 0.0
    %1756 = vmatpush.msra.mxu0 0.0
    %1757 = vmatpush.msra.mxu0 0.0
    %1758 = vmatpush.msra.mxu0 0.0
    %1759 = vmatpush.msra.mxu0 0.0
    %1760 = vmatpush.msra.mxu0 0.0
    %1761 = vmatpush.msra.mxu0 0.0
    %1762 = vmatpush.msra.mxu0 %v418
    %1763 = vmatpush.msra.mxu0 %v87
    %1764 = vmatpush.msra.mxu0 %v86
    %1765 = vmatpush.msra.mxu0 %v85
    %1766 = vmatpush.msra.mxu0 %v84
    %1767 = vmatmul.f32.gmra.mxu0 %v1749
    %v1768 = vpop.f32.mrf.mxu0
    %v1769 = vadd.f32 %v89, %v1768
    %1770 = vdwg.mxu0
    %v1772 = vsel %vm440, %v1769, 0
    %1774 = vmatpush.msra.mxu0 0.0
    %1775 = vmatpush.msra.mxu0 0.0
    %1776 = vmatpush.msra.mxu0 0.0
    %1777 = vmatpush.msra.mxu0 0.0
    %1778 = vmatpush.msra.mxu0 0.0
    %1779 = vmatpush.msra.mxu0 0.0
    %1780 = vmatpush.msra.mxu0 0.0
    %1781 = vmatpush.msra.mxu0 0.0
    %1782 = vmatpush.msra.mxu0 0.0
    %1783 = vmatpush.msra.mxu0 0.0
    %1784 = vmatpush.msra.mxu0 0.0
    %1785 = vmatpush.msra.mxu0 0.0
    %1786 = vmatpush.msra.mxu0 0.0
    %1787 = vmatpush.msra.mxu0 %v92
    %1788 = vmatpush.msra.mxu0 %v91
    %1789 = vmatpush.msra.mxu0 %v90
    %1790 = vmatmul.f32.gmra.mxu0 %v1772
    %v1791 = vpop.f32.mrf.mxu0
    %v1792 = vadd.f32 %v93, %v1791
    %1793 = vdwg.mxu0
    %v1794 = vmax.f32 %v1792, 0.0
    %v1796 = vsel %vm465, %v1794, 0
    %1798 = vmatpush.msra.mxu0 0.0
    %1799 = vmatpush.msra.mxu0 0.0
    %1800 = vmatpush.msra.mxu0 0.0
    %1801 = vmatpush.msra.mxu0 0.0
    %1802 = vmatpush.msra.mxu0 0.0
    %1803 = vmatpush.msra.mxu0 0.0
    %1804 = vmatpush.msra.mxu0 0.0
    %1805 = vmatpush.msra.mxu0 0.0
    %1806 = vmatpush.msra.mxu0 0.0
    %1807 = vmatpush.msra.mxu0 0.0
    %1808 = vmatpush.msra.mxu0 0.0
    %1809 = vmatpush.msra.mxu0 0.0
    %1810 = vmatpush.msra.mxu0 0.0
    %1811 = vmatpush.msra.mxu0 0.0
    %1812 = vmatpush.msra.mxu0 %v95
    %1813 = vmatpush.msra.mxu0 %v94
    %1814 = vmatmul.f32.gmra.mxu0 %v1796
    %v1815 = vpop.f32.mrf.mxu0
    %v1816 = vadd.f32 %v96, %v1815
    %1817 = vdwg.mxu0
    %v1819 = vsel %vm489, %v1816, 0
    %1821 = vmatpush.msra.mxu0 0.0
    %1822 = vmatpush.msra.mxu0 0.0
    %1823 = vmatpush.msra.mxu0 0.0
    %1824 = vmatpush.msra.mxu0 0.0
    %1825 = vmatpush.msra.mxu0 0.0
    %1826 = vmatpush.msra.mxu0 0.0
    %1827 = vmatpush.msra.mxu0 0.0
    %1828 = vmatpush.msra.mxu0 0.0
    %1829 = vmatpush.msra.mxu0 0.0
    %1830 = vmatpush.msra.mxu0 0.0
    %1831 = vmatpush.msra.mxu0 0.0
    %1832 = vmatpush.msra.mxu0 0.0
    %1833 = vmatpush.msra.mxu0 0.0
    %1834 = vmatpush.msra.mxu0 0.0
    %1835 = vmatpush.msra.mxu0 %v494
    %1836 = vmatpush.msra.mxu0 %v97
    %1837 = vmatmul.f32.gmra.mxu0 %v1819
    %v1838 = vpop.f32.mrf.mxu0
    %v1839 = vadd.f32 %v99, %v1838
    %1840 = vdwg.mxu0
    %v1842 = vsel %vm516, %v1839, 0
    %1844 = vmatpush.msra.mxu0 0.0
    %1845 = vmatpush.msra.mxu0 0.0
    %1846 = vmatpush.msra.mxu0 0.0
    %1847 = vmatpush.msra.mxu0 0.0
    %1848 = vmatpush.msra.mxu0 0.0
    %1849 = vmatpush.msra.mxu0 0.0
    %1850 = vmatpush.msra.mxu0 0.0
    %1851 = vmatpush.msra.mxu0 0.0
    %1852 = vmatpush.msra.mxu0 0.0
    %1853 = vmatpush.msra.mxu0 0.0
    %1854 = vmatpush.msra.mxu0 0.0
    %1855 = vmatpush.msra.mxu0 0.0
    %1856 = vmatpush.msra.mxu0 0.0
    %1857 = vmatpush.msra.mxu0 %v522
    %1858 = vmatpush.msra.mxu0 %v102
    %1859 = vmatpush.msra.mxu0 %v100
    %1860 = vmatmul.f32.gmra.mxu0 %v1842
    %v1861 = vpop.f32.mrf.mxu0
    %v1862 = vadd.f32 0.0, %v1861
    %1863 = vdwg.mxu0
    %1864 = vmatpush.msra.mxu0 0.0
    %1865 = vmatpush.msra.mxu0 0.0
    %1866 = vmatpush.msra.mxu0 0.0
    %1867 = vmatpush.msra.mxu0 0.0
    %1868 = vmatpush.msra.mxu0 0.0
    %1869 = vmatpush.msra.mxu0 0.0
    %1870 = vmatpush.msra.mxu0 0.0
    %1871 = vmatpush.msra.mxu0 0.0
    %1872 = vmatpush.msra.mxu0 0.0
    %1873 = vmatpush.msra.mxu0 0.0
    %1874 = vmatpush.msra.mxu0 0.0
    %1875 = vmatpush.msra.mxu0 0.0
    %1876 = vmatpush.msra.mxu0 0.0
    %1877 = vmatpush.msra.mxu0 %v525
    %1878 = vmatpush.msra.mxu0 %v103
    %1879 = vmatpush.msra.mxu0 %v101
    %1880 = vmatmul.f32.gmra.mxu0 %v1842
    %v1881 = vpop.f32.mrf.mxu0
    %v1882 = vadd.f32 0.0, %v1881
    %1883 = vdwg.mxu0
    %1884 = vrot.lane.b32.xlu0 %v1747, 22
    %v1885 = vpop.permute.xlu0 %1884
    %1887 = vrot.lane.b32.xlu0 %v1747, 10
    %v1888 = vpop.permute.xlu0 %1887
    %1890 = vrot.lane.b32.xlu0 %v1747, 36
    %v1891 = vpop.permute.xlu0 %1890
    %v1893 = vsel %vm576, %v1747, %v1885
    %v1894 = vsel %vm578, %v1893, %v1888
    %v1895 = vsel %vm580, %v1894, %v1891
    %v1896 = vmul.f32 %v1895, %v1862
    %v1898 = vsel %vm343, %v1896, 0
    %1900 = vmatpush.msra.mxu0 0.0
    %1901 = vmatpush.msra.mxu0 0.0
    %1902 = vmatpush.msra.mxu0 0.0
    %1903 = vmatpush.msra.mxu0 0.0
    %1904 = vmatpush.msra.mxu0 0.0
    %1905 = vmatpush.msra.mxu0 0.0
    %1906 = vmatpush.msra.mxu0 0.0
    %1907 = vmatpush.msra.mxu0 %v114
    %1908 = vmatpush.msra.mxu0 %v113
    %1909 = vmatpush.msra.mxu0 %v112
    %1910 = vmatpush.msra.mxu0 %v111
    %1911 = vmatpush.msra.mxu0 %v110
    %1912 = vmatpush.msra.mxu0 %v109
    %1913 = vmatpush.msra.mxu0 %v108
    %1914 = vmatpush.msra.mxu0 %v107
    %1915 = vmatpush.msra.mxu0 %v106
    %1916 = vmatmul.f32.gmra.mxu0 %v1898
    %v1917 = vpop.f32.mrf.mxu0
    %v1918 = vadd.f32 %v115, %v1917
    %1919 = vdwg.mxu0
    %v1921 = vsel %vm343, %v1918, 0
    %1923 = vmatpush.msra.mxu0 0.0
    %1924 = vmatpush.msra.mxu0 0.0
    %1925 = vmatpush.msra.mxu0 0.0
    %1926 = vmatpush.msra.mxu0 0.0
    %1927 = vmatpush.msra.mxu0 0.0
    %1928 = vmatpush.msra.mxu0 0.0
    %1929 = vmatpush.msra.mxu0 0.0
    %1930 = vmatpush.msra.mxu0 %v124
    %1931 = vmatpush.msra.mxu0 %v123
    %1932 = vmatpush.msra.mxu0 %v122
    %1933 = vmatpush.msra.mxu0 %v121
    %1934 = vmatpush.msra.mxu0 %v120
    %1935 = vmatpush.msra.mxu0 %v119
    %1936 = vmatpush.msra.mxu0 %v118
    %1937 = vmatpush.msra.mxu0 %v117
    %1938 = vmatpush.msra.mxu0 %v116
    %1939 = vmatmul.f32.gmra.mxu0 %v1921
    %v1940 = vpop.f32.mrf.mxu0
    %v1941 = vadd.f32 %v125, %v1940
    %1942 = vdwg.mxu0
    %v1943 = vmax.f32 %v1941, 0.0
    %v1945 = vsel %vm630, %v1943, 0
    %1947 = vmatpush.msra.mxu0 0.0
    %1948 = vmatpush.msra.mxu0 0.0
    %1949 = vmatpush.msra.mxu0 0.0
    %1950 = vmatpush.msra.mxu0 0.0
    %1951 = vmatpush.msra.mxu0 0.0
    %1952 = vmatpush.msra.mxu0 0.0
    %1953 = vmatpush.msra.mxu0 0.0
    %1954 = vmatpush.msra.mxu0 0.0
    %1955 = vmatpush.msra.mxu0 0.0
    %1956 = vmatpush.msra.mxu0 0.0
    %1957 = vmatpush.msra.mxu0 %v131
    %1958 = vmatpush.msra.mxu0 %v130
    %1959 = vmatpush.msra.mxu0 %v129
    %1960 = vmatpush.msra.mxu0 %v128
    %1961 = vmatpush.msra.mxu0 %v127
    %1962 = vmatpush.msra.mxu0 %v126
    %1963 = vmatmul.f32.gmra.mxu0 %v1945
    %v1964 = vpop.f32.mrf.mxu0
    %v1965 = vadd.f32 %v132, %v1964
    %1966 = vdwg.mxu0
    %1968 = vrot.lane.b32.xlu0 %v1965, 36
    %v1969 = vpop.permute.xlu0 %1968
    %v1971 = vsel %vm200, %v1747, %v1969
    %1974 = vrot.lane.b32.xlu0 %v1862, 56
    %v1975 = vpop.permute.xlu0 %1974
    %1976 = vrot.lane.b32.xlu0 %v1882, 56
    %v1977 = vpop.permute.xlu0 %1976
    %v1978 = vsel %vm665, %v1975, %v1977
    %v1980 = vmul.f32 %v1971, %v1978
    %v1982 = vsel %vm343, %v1980, 0
    %1984 = vmatpush.msra.mxu0 0.0
    %1985 = vmatpush.msra.mxu0 0.0
    %1986 = vmatpush.msra.mxu0 0.0
    %1987 = vmatpush.msra.mxu0 0.0
    %1988 = vmatpush.msra.mxu0 0.0
    %1989 = vmatpush.msra.mxu0 0.0
    %1990 = vmatpush.msra.mxu0 0.0
    %1991 = vmatpush.msra.mxu0 %v141
    %1992 = vmatpush.msra.mxu0 %v140
    %1993 = vmatpush.msra.mxu0 %v139
    %1994 = vmatpush.msra.mxu0 %v138
    %1995 = vmatpush.msra.mxu0 %v137
    %1996 = vmatpush.msra.mxu0 %v136
    %1997 = vmatpush.msra.mxu0 %v135
    %1998 = vmatpush.msra.mxu0 %v134
    %1999 = vmatpush.msra.mxu0 %v133
    %2000 = vmatmul.f32.gmra.mxu0 %v1982
    %v2001 = vpop.f32.mrf.mxu0
    %v2002 = vadd.f32 %v142, %v2001
    %2003 = vdwg.mxu0
    %v2005 = vsel %vm440, %v2002, 0
    %2007 = vmatpush.msra.mxu0 0.0
    %2008 = vmatpush.msra.mxu0 0.0
    %2009 = vmatpush.msra.mxu0 0.0
    %2010 = vmatpush.msra.mxu0 0.0
    %2011 = vmatpush.msra.mxu0 0.0
    %2012 = vmatpush.msra.mxu0 0.0
    %2013 = vmatpush.msra.mxu0 0.0
    %2014 = vmatpush.msra.mxu0 0.0
    %2015 = vmatpush.msra.mxu0 0.0
    %2016 = vmatpush.msra.mxu0 0.0
    %2017 = vmatpush.msra.mxu0 0.0
    %2018 = vmatpush.msra.mxu0 0.0
    %2019 = vmatpush.msra.mxu0 0.0
    %2020 = vmatpush.msra.mxu0 %v145
    %2021 = vmatpush.msra.mxu0 %v144
    %2022 = vmatpush.msra.mxu0 %v143
    %2023 = vmatmul.f32.gmra.mxu0 %v2005
    %v2024 = vpop.f32.mrf.mxu0
    %v2025 = vadd.f32 %v146, %v2024
    %2026 = vdwg.mxu0
    %v2027 = vmax.f32 %v2025, 0.0
    %v2029 = vsel %vm465, %v2027, 0
    %2031 = vmatpush.msra.mxu0 0.0
    %2032 = vmatpush.msra.mxu0 0.0
    %2033 = vmatpush.msra.mxu0 0.0
    %2034 = vmatpush.msra.mxu0 0.0
    %2035 = vmatpush.msra.mxu0 0.0
    %2036 = vmatpush.msra.mxu0 0.0
    %2037 = vmatpush.msra.mxu0 0.0
    %2038 = vmatpush.msra.mxu0 0.0
    %2039 = vmatpush.msra.mxu0 0.0
    %2040 = vmatpush.msra.mxu0 0.0
    %2041 = vmatpush.msra.mxu0 0.0
    %2042 = vmatpush.msra.mxu0 0.0
    %2043 = vmatpush.msra.mxu0 0.0
    %2044 = vmatpush.msra.mxu0 0.0
    %2045 = vmatpush.msra.mxu0 %v148
    %2046 = vmatpush.msra.mxu0 %v147
    %2047 = vmatmul.f32.gmra.mxu0 %v2029
    %v2048 = vpop.f32.mrf.mxu0
    %v2049 = vadd.f32 %v149, %v2048
    %2050 = vdwg.mxu0
    %2052 = vrot.lane.b32.xlu0 %v2049, 72
    %v2053 = vpop.permute.xlu0 %2052
    %v2055 = vsel %vm343, %v1971, %v2053
    %2056 = vrot.lane.b32.xlu0 %v1882, 112
    %v2057 = vpop.permute.xlu0 %2056
    %v2059 = vmul.f32 %v2055, %v2057
    %v2061 = vsel %vm748, %v2059, 0
    %2063 = vmatpush.msra.mxu0 0.0
    %2064 = vmatpush.msra.mxu0 0.0
    %2065 = vmatpush.msra.mxu0 0.0
    %2066 = vmatpush.msra.mxu0 0.0
    %2067 = vmatpush.msra.mxu0 0.0
    %2068 = vmatpush.msra.mxu0 %v753
    %2069 = vmatpush.msra.mxu0 %v159
    %2070 = vmatpush.msra.mxu0 %v158
    %2071 = vmatpush.msra.mxu0 %v157
    %2072 = vmatpush.msra.mxu0 %v156
    %2073 = vmatpush.msra.mxu0 %v155
    %2074 = vmatpush.msra.mxu0 %v154
    %2075 = vmatpush.msra.mxu0 %v153
    %2076 = vmatpush.msra.mxu0 %v152
    %2077 = vmatpush.msra.mxu0 %v151
    %2078 = vmatpush.msra.mxu0 %v150
    %2079 = vmatmul.f32.gmra.mxu0 %v2061
    %v2080 = vpop.f32.mrf.mxu0
    %v2081 = vadd.f32 %v161, %v2080
    %2082 = vdwg.mxu0
    %v2084 = vsel %vm440, %v2081, 0
    %2086 = vmatpush.msra.mxu0 0.0
    %2087 = vmatpush.msra.mxu0 0.0
    %2088 = vmatpush.msra.mxu0 0.0
    %2089 = vmatpush.msra.mxu0 0.0
    %2090 = vmatpush.msra.mxu0 0.0
    %2091 = vmatpush.msra.mxu0 0.0
    %2092 = vmatpush.msra.mxu0 0.0
    %2093 = vmatpush.msra.mxu0 0.0
    %2094 = vmatpush.msra.mxu0 0.0
    %2095 = vmatpush.msra.mxu0 0.0
    %2096 = vmatpush.msra.mxu0 0.0
    %2097 = vmatpush.msra.mxu0 0.0
    %2098 = vmatpush.msra.mxu0 0.0
    %2099 = vmatpush.msra.mxu0 %v164
    %2100 = vmatpush.msra.mxu0 %v163
    %2101 = vmatpush.msra.mxu0 %v162
    %2102 = vmatmul.f32.gmra.mxu0 %v2084
    %v2103 = vpop.f32.mrf.mxu0
    %v2104 = vadd.f32 %v165, %v2103
    %2105 = vdwg.mxu0
    %v2106 = vmax.f32 %v2104, 0.0
    %v2108 = vsel %vm465, %v2106, 0
    %2110 = vmatpush.msra.mxu0 0.0
    %2111 = vmatpush.msra.mxu0 0.0
    %2112 = vmatpush.msra.mxu0 0.0
    %2113 = vmatpush.msra.mxu0 0.0
    %2114 = vmatpush.msra.mxu0 0.0
    %2115 = vmatpush.msra.mxu0 0.0
    %2116 = vmatpush.msra.mxu0 0.0
    %2117 = vmatpush.msra.mxu0 0.0
    %2118 = vmatpush.msra.mxu0 0.0
    %2119 = vmatpush.msra.mxu0 0.0
    %2120 = vmatpush.msra.mxu0 0.0
    %2121 = vmatpush.msra.mxu0 0.0
    %2122 = vmatpush.msra.mxu0 0.0
    %2123 = vmatpush.msra.mxu0 0.0
    %2124 = vmatpush.msra.mxu0 %v167
    %2125 = vmatpush.msra.mxu0 %v166
    %2126 = vmatmul.f32.gmra.mxu0 %v2108
    %v2127 = vpop.f32.mrf.mxu0
    %v2128 = vadd.f32 %v168, %v2127
    %2129 = vdwg.mxu0
    %v2131 = vsel %vm489, %v2128, 0
    %2133 = vmatpush.msra.mxu0 0.0
    %2134 = vmatpush.msra.mxu0 0.0
    %2135 = vmatpush.msra.mxu0 0.0
    %2136 = vmatpush.msra.mxu0 0.0
    %2137 = vmatpush.msra.mxu0 0.0
    %2138 = vmatpush.msra.mxu0 0.0
    %2139 = vmatpush.msra.mxu0 0.0
    %2140 = vmatpush.msra.mxu0 0.0
    %2141 = vmatpush.msra.mxu0 0.0
    %2142 = vmatpush.msra.mxu0 0.0
    %2143 = vmatpush.msra.mxu0 0.0
    %2144 = vmatpush.msra.mxu0 0.0
    %2145 = vmatpush.msra.mxu0 0.0
    %2146 = vmatpush.msra.mxu0 0.0
    %2147 = vmatpush.msra.mxu0 %v826
    %2148 = vmatpush.msra.mxu0 %v169
    %2149 = vmatmul.f32.gmra.mxu0 %v2131
    %v2150 = vpop.f32.mrf.mxu0
    %v2151 = vadd.f32 %v171, %v2150
    %2152 = vdwg.mxu0
    %v2153 = vmax.f32 %v2151, 0.0
    %v2155 = vsel %vm849, %v2153, 0
    %2157 = vmatpush.msra.mxu0 0.0
    %2158 = vmatpush.msra.mxu0 0.0
    %2159 = vmatpush.msra.mxu0 0.0
    %2160 = vmatpush.msra.mxu0 0.0
    %2161 = vmatpush.msra.mxu0 0.0
    %2162 = vmatpush.msra.mxu0 0.0
    %2163 = vmatpush.msra.mxu0 0.0
    %2164 = vmatpush.msra.mxu0 %v855
    %2165 = vmatpush.msra.mxu0 %v179
    %2166 = vmatpush.msra.mxu0 %v178
    %2167 = vmatpush.msra.mxu0 %v177
    %2168 = vmatpush.msra.mxu0 %v176
    %2169 = vmatpush.msra.mxu0 %v175
    %2170 = vmatpush.msra.mxu0 %v174
    %2171 = vmatpush.msra.mxu0 %v173
    %2172 = vmatpush.msra.mxu0 %v172
    %2173 = vmatmul.f32.gmra.mxu0 %v2155
    %v2174 = vpop.f32.mrf.mxu0
    %v2175 = vadd.f32 %v181, %v2174
    %2176 = vdwg.mxu0
    %v2177 = vxor.u32 %v2175, 2147483648
    %v2178 = vmul.f32 %v2177, 1.442695
    %v2179 = vpow.pop %v2178
    %v2180 = vadd.f32 %v2179, 1.0
    %v2181 = vrcp.pop %v2180
    %v2182 = vmul.f32 %v2180, %v2181
    %v2183 = vsub.f32 1.0, %v2182
    %v2184 = vmul.f32 %v2181, %v2183
    %v2185 = vadd.f32 %v2181, %v2184
    %vm2186 = vweird.f32 %v2180
    %vm2187 = vweird.f32 %v2181
    %vm2188 = vmor %vm2186, %vm2187
    %v2189 = vsel %vm2188, %v2181, %v2185
    %v2190 = vand.u32 2147483647, %v2180
    %vm2191 = vcmp.eq.f32.partialorder %v2190, 8.507059e+37
    %v2192 = vand.u32 %v2180, 2147483648
    %v2193 = vor.u32 1.1754944e-38, %v2192
    %v2194 = vsel %vm2191, %v2193, %v2189
    %v2195 = vmul.f32 1.0, %v2194
    %v2196 = vtanh.pop %v2175
    %v2197 = vmul.f32 %v2195, %v1559
    %2199 = vrot.lane.b32.xlu0 %v2196, 114
    %v2200 = vpop.permute.xlu0 %2199
    %v2202 = vmul.f32 %v2195, %v2200
    %2204 = vrot.lane.b32.xlu0 %v2202, 114
    %v2205 = vpop.permute.xlu0 %2204
    %v2207 = vadd.f32 %v2197, %v2205
    %v2208 = vsel %vm908, %v2195, -inf
    %2209 = vmax.xlane.f32.xlu0 %v2208
    %v2210 = vpop.xlane.xlu0 %2209
    %v2211 = vsub.f32 %v2195, %v2210
    %v2212 = vmul.f32 %v2211, 1.442695
    %v2213 = vpow.pop %v2212
    %2215 = vrot.lane.b32.xlu0 %v2213, 86
    %v2216 = vpop.permute.xlu0 %2215
    %v2218 = vsel %vm919, %v2216, 0.0
    %2219 = vadd.xlane.f32.xlu0 %v2218
    %v2220 = vpop.xlane.xlu0 %2219
    %v2221 = vrcp.pop %v2220
    %v2222 = vmul.f32 %v2220, %v2221
    %v2223 = vsub.f32 1.0, %v2222
    %v2224 = vmul.f32 %v2221, %v2223
    %v2225 = vadd.f32 %v2221, %v2224
    %vm2226 = vweird.f32 %v2220
    %vm2227 = vweird.f32 %v2221
    %vm2228 = vmor %vm2226, %vm2227
    %v2229 = vsel %vm2228, %v2221, %v2225
    %v2230 = vand.u32 2147483647, %v2220
    %vm2231 = vcmp.eq.f32.partialorder %v2230, 8.507059e+37
    %v2232 = vand.u32 %v2220, 2147483648
    %v2233 = vor.u32 1.1754944e-38, %v2232
    %v2234 = vsel %vm2231, %v2233, %v2229
    %v2235 = vmul.f32 %v2213, %v2234
    %2237 = vrot.lane.b32.xlu0 %v2235, 122
    %v2238 = vpop.permute.xlu0 %2237
    %v2240 = vsel %vm200, %v1676, %v2238
    %v2241 = vrot.slane %v229, 6
    %v2242 = vrot.slane %v249, 6
    %v2246 = vsel %vm251, %v2240, 0
    %2248 = vmatpush.msra.mxu0 0.0
    %2249 = vmatpush.msra.mxu0 0.0
    %2250 = vmatpush.msra.mxu0 0.0
    %2251 = vmatpush.msra.mxu0 0.0
    %2252 = vmatpush.msra.mxu0 0.0
    %2253 = vmatpush.msra.mxu0 0.0
    %2254 = vmatpush.msra.mxu0 0.0
    %2255 = vmatpush.msra.mxu0 0.0
    %2256 = vmatpush.msra.mxu0 0.0
    %2257 = vmatpush.msra.mxu0 0.0
    %2258 = vmatpush.msra.mxu0 %v256
    %2259 = vmatpush.msra.mxu0 %v59
    %2260 = vmatpush.msra.mxu0 %v57
    %2261 = vmatpush.msra.mxu0 %v55
    %2262 = vmatpush.msra.mxu0 %v53
    %2263 = vmatpush.msra.mxu0 %v51
    %2264 = vmatmul.f32.gmra.mxu0 %v2246
    %v2265 = vpop.f32.mrf.mxu0
    %v2266 = vadd.f32 %v2241, %v2265
    %2267 = vdwg.mxu0
    %2268 = vmatpush.msra.mxu0 0.0
    %2269 = vmatpush.msra.mxu0 0.0
    %2270 = vmatpush.msra.mxu0 0.0
    %2271 = vmatpush.msra.mxu0 0.0
    %2272 = vmatpush.msra.mxu0 0.0
    %2273 = vmatpush.msra.mxu0 0.0
    %2274 = vmatpush.msra.mxu0 0.0
    %2275 = vmatpush.msra.mxu0 0.0
    %2276 = vmatpush.msra.mxu0 0.0
    %2277 = vmatpush.msra.mxu0 0.0
    %2278 = vmatpush.msra.mxu0 %v259
    %2279 = vmatpush.msra.mxu0 %v60
    %2280 = vmatpush.msra.mxu0 %v58
    %2281 = vmatpush.msra.mxu0 %v56
    %2282 = vmatpush.msra.mxu0 %v54
    %2283 = vmatpush.msra.mxu0 %v52
    %2284 = vmatmul.f32.gmra.mxu0 %v2246
    %v2285 = vpop.f32.mrf.mxu0
    %v2286 = vadd.f32 %v2242, %v2285
    %2287 = vdwg.mxu0
    %v2288 = vxor.u32 %v2266, 2147483648
    %v2289 = vmul.f32 %v2288, 1.442695
    %v2290 = vpow.pop %v2289
    %v2291 = vadd.f32 %v2290, 1.0
    %v2292 = vrcp.pop %v2291
    %v2293 = vmul.f32 %v2291, %v2292
    %v2294 = vsub.f32 1.0, %v2293
    %v2295 = vmul.f32 %v2292, %v2294
    %v2296 = vadd.f32 %v2292, %v2295
    %vm2297 = vweird.f32 %v2291
    %vm2298 = vweird.f32 %v2292
    %vm2299 = vmor %vm2297, %vm2298
    %v2300 = vsel %vm2299, %v2292, %v2296
    %v2301 = vand.u32 2147483647, %v2291
    %vm2302 = vcmp.eq.f32.partialorder %v2301, 8.507059e+37
    %v2303 = vand.u32 %v2291, 2147483648
    %v2304 = vor.u32 1.1754944e-38, %v2303
    %v2305 = vsel %vm2302, %v2304, %v2300
    %v2306 = vmul.f32 1.0, %v2305
    %v2307 = vtanh.pop %v2286
    %v2308 = vmul.f32 %v2306, %v1670
    %2310 = vrot.lane.b32.xlu0 %v2307, 36
    %v2311 = vpop.permute.xlu0 %2310
    %v2313 = vmul.f32 %v2306, %v2311
    %2315 = vrot.lane.b32.xlu0 %v2313, 92
    %v2316 = vpop.permute.xlu0 %2315
    %v2318 = vadd.f32 %v2308, %v2316
    %v2319 = vtanh.pop %v2318
    %2321 = vrot.lane.b32.xlu0 %v2306, 56
    %v2322 = vpop.permute.xlu0 %2321
    %v2324 = vmul.f32 %v2319, %v2322
    %2326 = vrot.lane.b32.xlu0 %v2324, 36
    %v2327 = vpop.permute.xlu0 %2326
    %v2329 = vsel %vm200, %v1676, %v2327
    %v2331 = vsel %vm343, %v2329, 0
    %2333 = vmatpush.msra.mxu0 0.0
    %2334 = vmatpush.msra.mxu0 0.0
    %2335 = vmatpush.msra.mxu0 0.0
    %2336 = vmatpush.msra.mxu0 0.0
    %2337 = vmatpush.msra.mxu0 0.0
    %2338 = vmatpush.msra.mxu0 0.0
    %2339 = vmatpush.msra.mxu0 0.0
    %2340 = vmatpush.msra.mxu0 %v73
    %2341 = vmatpush.msra.mxu0 %v72
    %2342 = vmatpush.msra.mxu0 %v71
    %2343 = vmatpush.msra.mxu0 %v70
    %2344 = vmatpush.msra.mxu0 %v69
    %2345 = vmatpush.msra.mxu0 %v68
    %2346 = vmatpush.msra.mxu0 %v67
    %2347 = vmatpush.msra.mxu0 %v66
    %2348 = vmatpush.msra.mxu0 %v65
    %2349 = vmatmul.f32.gmra.mxu0 %v2331
    %v2350 = vpop.f32.mrf.mxu0
    %v2351 = vadd.f32 %v74, %v2350
    %2352 = vdwg.mxu0
    %v2353 = vmax.f32 %v2351, 0.0
    %v2355 = vsel %vm368, %v2353, 0
    %2357 = vmatpush.msra.mxu0 0.0
    %2358 = vmatpush.msra.mxu0 0.0
    %2359 = vmatpush.msra.mxu0 0.0
    %2360 = vmatpush.msra.mxu0 0.0
    %2361 = vmatpush.msra.mxu0 0.0
    %2362 = vmatpush.msra.mxu0 0.0
    %2363 = vmatpush.msra.mxu0 0.0
    %2364 = vmatpush.msra.mxu0 0.0
    %2365 = vmatpush.msra.mxu0 %v373
    %2366 = vmatpush.msra.mxu0 %v81
    %2367 = vmatpush.msra.mxu0 %v80
    %2368 = vmatpush.msra.mxu0 %v79
    %2369 = vmatpush.msra.mxu0 %v78
    %2370 = vmatpush.msra.mxu0 %v77
    %2371 = vmatpush.msra.mxu0 %v76
    %2372 = vmatpush.msra.mxu0 %v75
    %2373 = vmatmul.f32.gmra.mxu0 %v2355
    %v2374 = vpop.f32.mrf.mxu0
    %v2375 = vadd.f32 %v83, %v2374
    %2376 = vdwg.mxu0
    %v2377 = vxor.u32 %v2375, 2147483648
    %v2378 = vmul.f32 %v2377, 1.442695
    %v2379 = vpow.pop %v2378
    %v2380 = vadd.f32 %v2379, 1.0
    %v2381 = vrcp.pop %v2380
    %v2382 = vmul.f32 %v2380, %v2381
    %v2383 = vsub.f32 1.0, %v2382
    %v2384 = vmul.f32 %v2381, %v2383
    %v2385 = vadd.f32 %v2381, %v2384
    %vm2386 = vweird.f32 %v2380
    %vm2387 = vweird.f32 %v2381
    %vm2388 = vmor %vm2386, %vm2387
    %v2389 = vsel %vm2388, %v2381, %v2385
    %v2390 = vand.u32 2147483647, %v2380
    %vm2391 = vcmp.eq.f32.partialorder %v2390, 8.507059e+37
    %v2392 = vand.u32 %v2380, 2147483648
    %v2393 = vor.u32 1.1754944e-38, %v2392
    %v2394 = vsel %vm2391, %v2393, %v2389
    %v2395 = vmul.f32 1.0, %v2394
    %v2397 = vsel %vm200, %v2395, 0
    %2399 = vmatpush.msra.mxu0 0.0
    %2400 = vmatpush.msra.mxu0 0.0
    %2401 = vmatpush.msra.mxu0 0.0
    %2402 = vmatpush.msra.mxu0 0.0
    %2403 = vmatpush.msra.mxu0 0.0
    %2404 = vmatpush.msra.mxu0 0.0
    %2405 = vmatpush.msra.mxu0 0.0
    %2406 = vmatpush.msra.mxu0 0.0
    %2407 = vmatpush.msra.mxu0 0.0
    %2408 = vmatpush.msra.mxu0 0.0
    %2409 = vmatpush.msra.mxu0 0.0
    %2410 = vmatpush.msra.mxu0 %v418
    %2411 = vmatpush.msra.mxu0 %v87
    %2412 = vmatpush.msra.mxu0 %v86
    %2413 = vmatpush.msra.mxu0 %v85
    %2414 = vmatpush.msra.mxu0 %v84
    %2415 = vmatmul.f32.gmra.mxu0 %v2397
    %v2416 = vpop.f32.mrf.mxu0
    %v2417 = vadd.f32 %v89, %v2416
    %2418 = vdwg.mxu0
    %v2420 = vsel %vm440, %v2417, 0
    %2422 = vmatpush.msra.mxu0 0.0
    %2423 = vmatpush.msra.mxu0 0.0
    %2424 = vmatpush.msra.mxu0 0.0
    %2425 = vmatpush.msra.mxu0 0.0
    %2426 = vmatpush.msra.mxu0 0.0
    %2427 = vmatpush.msra.mxu0 0.0
    %2428 = vmatpush.msra.mxu0 0.0
    %2429 = vmatpush.msra.mxu0 0.0
    %2430 = vmatpush.msra.mxu0 0.0
    %2431 = vmatpush.msra.mxu0 0.0
    %2432 = vmatpush.msra.mxu0 0.0
    %2433 = vmatpush.msra.mxu0 0.0
    %2434 = vmatpush.msra.mxu0 0.0
    %2435 = vmatpush.msra.mxu0 %v92
    %2436 = vmatpush.msra.mxu0 %v91
    %2437 = vmatpush.msra.mxu0 %v90
    %2438 = vmatmul.f32.gmra.mxu0 %v2420
    %v2439 = vpop.f32.mrf.mxu0
    %v2440 = vadd.f32 %v93, %v2439
    %2441 = vdwg.mxu0
    %v2442 = vmax.f32 %v2440, 0.0
    %v2444 = vsel %vm465, %v2442, 0
    %2446 = vmatpush.msra.mxu0 0.0
    %2447 = vmatpush.msra.mxu0 0.0
    %2448 = vmatpush.msra.mxu0 0.0
    %2449 = vmatpush.msra.mxu0 0.0
    %2450 = vmatpush.msra.mxu0 0.0
    %2451 = vmatpush.msra.mxu0 0.0
    %2452 = vmatpush.msra.mxu0 0.0
    %2453 = vmatpush.msra.mxu0 0.0
    %2454 = vmatpush.msra.mxu0 0.0
    %2455 = vmatpush.msra.mxu0 0.0
    %2456 = vmatpush.msra.mxu0 0.0
    %2457 = vmatpush.msra.mxu0 0.0
    %2458 = vmatpush.msra.mxu0 0.0
    %2459 = vmatpush.msra.mxu0 0.0
    %2460 = vmatpush.msra.mxu0 %v95
    %2461 = vmatpush.msra.mxu0 %v94
    %2462 = vmatmul.f32.gmra.mxu0 %v2444
    %v2463 = vpop.f32.mrf.mxu0
    %v2464 = vadd.f32 %v96, %v2463
    %2465 = vdwg.mxu0
    %v2467 = vsel %vm489, %v2464, 0
    %2469 = vmatpush.msra.mxu0 0.0
    %2470 = vmatpush.msra.mxu0 0.0
    %2471 = vmatpush.msra.mxu0 0.0
    %2472 = vmatpush.msra.mxu0 0.0
    %2473 = vmatpush.msra.mxu0 0.0
    %2474 = vmatpush.msra.mxu0 0.0
    %2475 = vmatpush.msra.mxu0 0.0
    %2476 = vmatpush.msra.mxu0 0.0
    %2477 = vmatpush.msra.mxu0 0.0
    %2478 = vmatpush.msra.mxu0 0.0
    %2479 = vmatpush.msra.mxu0 0.0
    %2480 = vmatpush.msra.mxu0 0.0
    %2481 = vmatpush.msra.mxu0 0.0
    %2482 = vmatpush.msra.mxu0 0.0
    %2483 = vmatpush.msra.mxu0 %v494
    %2484 = vmatpush.msra.mxu0 %v97
    %2485 = vmatmul.f32.gmra.mxu0 %v2467
    %v2486 = vpop.f32.mrf.mxu0
    %v2487 = vadd.f32 %v99, %v2486
    %2488 = vdwg.mxu0
    %v2490 = vsel %vm516, %v2487, 0
    %2492 = vmatpush.msra.mxu0 0.0
    %2493 = vmatpush.msra.mxu0 0.0
    %2494 = vmatpush.msra.mxu0 0.0
    %2495 = vmatpush.msra.mxu0 0.0
    %2496 = vmatpush.msra.mxu0 0.0
    %2497 = vmatpush.msra.mxu0 0.0
    %2498 = vmatpush.msra.mxu0 0.0
    %2499 = vmatpush.msra.mxu0 0.0
    %2500 = vmatpush.msra.mxu0 0.0
    %2501 = vmatpush.msra.mxu0 0.0
    %2502 = vmatpush.msra.mxu0 0.0
    %2503 = vmatpush.msra.mxu0 0.0
    %2504 = vmatpush.msra.mxu0 0.0
    %2505 = vmatpush.msra.mxu0 %v522
    %2506 = vmatpush.msra.mxu0 %v102
    %2507 = vmatpush.msra.mxu0 %v100
    %2508 = vmatmul.f32.gmra.mxu0 %v2490
    %v2509 = vpop.f32.mrf.mxu0
    %v2510 = vadd.f32 0.0, %v2509
    %2511 = vdwg.mxu0
    %2512 = vmatpush.msra.mxu0 0.0
    %2513 = vmatpush.msra.mxu0 0.0
    %2514 = vmatpush.msra.mxu0 0.0
    %2515 = vmatpush.msra.mxu0 0.0
    %2516 = vmatpush.msra.mxu0 0.0
    %2517 = vmatpush.msra.mxu0 0.0
    %2518 = vmatpush.msra.mxu0 0.0
    %2519 = vmatpush.msra.mxu0 0.0
    %2520 = vmatpush.msra.mxu0 0.0
    %2521 = vmatpush.msra.mxu0 0.0
    %2522 = vmatpush.msra.mxu0 0.0
    %2523 = vmatpush.msra.mxu0 0.0
    %2524 = vmatpush.msra.mxu0 0.0
    %2525 = vmatpush.msra.mxu0 %v525
    %2526 = vmatpush.msra.mxu0 %v103
    %2527 = vmatpush.msra.mxu0 %v101
    %2528 = vmatmul.f32.gmra.mxu0 %v2490
    %v2529 = vpop.f32.mrf.mxu0
    %v2530 = vadd.f32 0.0, %v2529
    %2531 = vdwg.mxu0
    %2532 = vrot.lane.b32.xlu0 %v2395, 22
    %v2533 = vpop.permute.xlu0 %2532
    %2535 = vrot.lane.b32.xlu0 %v2395, 10
    %v2536 = vpop.permute.xlu0 %2535
    %2538 = vrot.lane.b32.xlu0 %v2395, 36
    %v2539 = vpop.permute.xlu0 %2538
    %v2541 = vsel %vm576, %v2395, %v2533
    %v2542 = vsel %vm578, %v2541, %v2536
    %v2543 = vsel %vm580, %v2542, %v2539
    %v2544 = vmul.f32 %v2543, %v2510
    %v2546 = vsel %vm343, %v2544, 0
    %2548 = vmatpush.msra.mxu0 0.0
    %2549 = vmatpush.msra.mxu0 0.0
    %2550 = vmatpush.msra.mxu0 0.0
    %2551 = vmatpush.msra.mxu0 0.0
    %2552 = vmatpush.msra.mxu0 0.0
    %2553 = vmatpush.msra.mxu0 0.0
    %2554 = vmatpush.msra.mxu0 0.0
    %2555 = vmatpush.msra.mxu0 %v114
    %2556 = vmatpush.msra.mxu0 %v113
    %2557 = vmatpush.msra.mxu0 %v112
    %2558 = vmatpush.msra.mxu0 %v111
    %2559 = vmatpush.msra.mxu0 %v110
    %2560 = vmatpush.msra.mxu0 %v109
    %2561 = vmatpush.msra.mxu0 %v108
    %2562 = vmatpush.msra.mxu0 %v107
    %2563 = vmatpush.msra.mxu0 %v106
    %2564 = vmatmul.f32.gmra.mxu0 %v2546
    %v2565 = vpop.f32.mrf.mxu0
    %v2566 = vadd.f32 %v115, %v2565
    %2567 = vdwg.mxu0
    %v2569 = vsel %vm343, %v2566, 0
    %2571 = vmatpush.msra.mxu0 0.0
    %2572 = vmatpush.msra.mxu0 0.0
    %2573 = vmatpush.msra.mxu0 0.0
    %2574 = vmatpush.msra.mxu0 0.0
    %2575 = vmatpush.msra.mxu0 0.0
    %2576 = vmatpush.msra.mxu0 0.0
    %2577 = vmatpush.msra.mxu0 0.0
    %2578 = vmatpush.msra.mxu0 %v124
    %2579 = vmatpush.msra.mxu0 %v123
    %2580 = vmatpush.msra.mxu0 %v122
    %2581 = vmatpush.msra.mxu0 %v121
    %2582 = vmatpush.msra.mxu0 %v120
    %2583 = vmatpush.msra.mxu0 %v119
    %2584 = vmatpush.msra.mxu0 %v118
    %2585 = vmatpush.msra.mxu0 %v117
    %2586 = vmatpush.msra.mxu0 %v116
    %2587 = vmatmul.f32.gmra.mxu0 %v2569
    %v2588 = vpop.f32.mrf.mxu0
    %v2589 = vadd.f32 %v125, %v2588
    %2590 = vdwg.mxu0
    %v2591 = vmax.f32 %v2589, 0.0
    %v2593 = vsel %vm630, %v2591, 0
    %2595 = vmatpush.msra.mxu0 0.0
    %2596 = vmatpush.msra.mxu0 0.0
    %2597 = vmatpush.msra.mxu0 0.0
    %2598 = vmatpush.msra.mxu0 0.0
    %2599 = vmatpush.msra.mxu0 0.0
    %2600 = vmatpush.msra.mxu0 0.0
    %2601 = vmatpush.msra.mxu0 0.0
    %2602 = vmatpush.msra.mxu0 0.0
    %2603 = vmatpush.msra.mxu0 0.0
    %2604 = vmatpush.msra.mxu0 0.0
    %2605 = vmatpush.msra.mxu0 %v131
    %2606 = vmatpush.msra.mxu0 %v130
    %2607 = vmatpush.msra.mxu0 %v129
    %2608 = vmatpush.msra.mxu0 %v128
    %2609 = vmatpush.msra.mxu0 %v127
    %2610 = vmatpush.msra.mxu0 %v126
    %2611 = vmatmul.f32.gmra.mxu0 %v2593
    %v2612 = vpop.f32.mrf.mxu0
    %v2613 = vadd.f32 %v132, %v2612
    %2614 = vdwg.mxu0
    %2616 = vrot.lane.b32.xlu0 %v2613, 36
    %v2617 = vpop.permute.xlu0 %2616
    %v2619 = vsel %vm200, %v2395, %v2617
    %2622 = vrot.lane.b32.xlu0 %v2510, 56
    %v2623 = vpop.permute.xlu0 %2622
    %2624 = vrot.lane.b32.xlu0 %v2530, 56
    %v2625 = vpop.permute.xlu0 %2624
    %v2626 = vsel %vm665, %v2623, %v2625
    %v2628 = vmul.f32 %v2619, %v2626
    %v2630 = vsel %vm343, %v2628, 0
    %2632 = vmatpush.msra.mxu0 0.0
    %2633 = vmatpush.msra.mxu0 0.0
    %2634 = vmatpush.msra.mxu0 0.0
    %2635 = vmatpush.msra.mxu0 0.0
    %2636 = vmatpush.msra.mxu0 0.0
    %2637 = vmatpush.msra.mxu0 0.0
    %2638 = vmatpush.msra.mxu0 0.0
    %2639 = vmatpush.msra.mxu0 %v141
    %2640 = vmatpush.msra.mxu0 %v140
    %2641 = vmatpush.msra.mxu0 %v139
    %2642 = vmatpush.msra.mxu0 %v138
    %2643 = vmatpush.msra.mxu0 %v137
    %2644 = vmatpush.msra.mxu0 %v136
    %2645 = vmatpush.msra.mxu0 %v135
    %2646 = vmatpush.msra.mxu0 %v134
    %2647 = vmatpush.msra.mxu0 %v133
    %2648 = vmatmul.f32.gmra.mxu0 %v2630
    %v2649 = vpop.f32.mrf.mxu0
    %v2650 = vadd.f32 %v142, %v2649
    %2651 = vdwg.mxu0
    %v2653 = vsel %vm440, %v2650, 0
    %2655 = vmatpush.msra.mxu0 0.0
    %2656 = vmatpush.msra.mxu0 0.0
    %2657 = vmatpush.msra.mxu0 0.0
    %2658 = vmatpush.msra.mxu0 0.0
    %2659 = vmatpush.msra.mxu0 0.0
    %2660 = vmatpush.msra.mxu0 0.0
    %2661 = vmatpush.msra.mxu0 0.0
    %2662 = vmatpush.msra.mxu0 0.0
    %2663 = vmatpush.msra.mxu0 0.0
    %2664 = vmatpush.msra.mxu0 0.0
    %2665 = vmatpush.msra.mxu0 0.0
    %2666 = vmatpush.msra.mxu0 0.0
    %2667 = vmatpush.msra.mxu0 0.0
    %2668 = vmatpush.msra.mxu0 %v145
    %2669 = vmatpush.msra.mxu0 %v144
    %2670 = vmatpush.msra.mxu0 %v143
    %2671 = vmatmul.f32.gmra.mxu0 %v2653
    %v2672 = vpop.f32.mrf.mxu0
    %v2673 = vadd.f32 %v146, %v2672
    %2674 = vdwg.mxu0
    %v2675 = vmax.f32 %v2673, 0.0
    %v2677 = vsel %vm465, %v2675, 0
    %2679 = vmatpush.msra.mxu0 0.0
    %2680 = vmatpush.msra.mxu0 0.0
    %2681 = vmatpush.msra.mxu0 0.0
    %2682 = vmatpush.msra.mxu0 0.0
    %2683 = vmatpush.msra.mxu0 0.0
    %2684 = vmatpush.msra.mxu0 0.0
    %2685 = vmatpush.msra.mxu0 0.0
    %2686 = vmatpush.msra.mxu0 0.0
    %2687 = vmatpush.msra.mxu0 0.0
    %2688 = vmatpush.msra.mxu0 0.0
    %2689 = vmatpush.msra.mxu0 0.0
    %2690 = vmatpush.msra.mxu0 0.0
    %2691 = vmatpush.msra.mxu0 0.0
    %2692 = vmatpush.msra.mxu0 0.0
    %2693 = vmatpush.msra.mxu0 %v148
    %2694 = vmatpush.msra.mxu0 %v147
    %2695 = vmatmul.f32.gmra.mxu0 %v2677
    %v2696 = vpop.f32.mrf.mxu0
    %v2697 = vadd.f32 %v149, %v2696
    %2698 = vdwg.mxu0
    %2700 = vrot.lane.b32.xlu0 %v2697, 72
    %v2701 = vpop.permute.xlu0 %2700
    %v2703 = vsel %vm343, %v2619, %v2701
    %2704 = vrot.lane.b32.xlu0 %v2530, 112
    %v2705 = vpop.permute.xlu0 %2704
    %v2707 = vmul.f32 %v2703, %v2705
    %v2709 = vsel %vm748, %v2707, 0
    %2711 = vmatpush.msra.mxu0 0.0
    %2712 = vmatpush.msra.mxu0 0.0
    %2713 = vmatpush.msra.mxu0 0.0
    %2714 = vmatpush.msra.mxu0 0.0
    %2715 = vmatpush.msra.mxu0 0.0
    %2716 = vmatpush.msra.mxu0 %v753
    %2717 = vmatpush.msra.mxu0 %v159
    %2718 = vmatpush.msra.mxu0 %v158
    %2719 = vmatpush.msra.mxu0 %v157
    %2720 = vmatpush.msra.mxu0 %v156
    %2721 = vmatpush.msra.mxu0 %v155
    %2722 = vmatpush.msra.mxu0 %v154
    %2723 = vmatpush.msra.mxu0 %v153
    %2724 = vmatpush.msra.mxu0 %v152
    %2725 = vmatpush.msra.mxu0 %v151
    %2726 = vmatpush.msra.mxu0 %v150
    %2727 = vmatmul.f32.gmra.mxu0 %v2709
    %v2728 = vpop.f32.mrf.mxu0
    %v2729 = vadd.f32 %v161, %v2728
    %2730 = vdwg.mxu0
    %v2732 = vsel %vm440, %v2729, 0
    %2734 = vmatpush.msra.mxu0 0.0
    %2735 = vmatpush.msra.mxu0 0.0
    %2736 = vmatpush.msra.mxu0 0.0
    %2737 = vmatpush.msra.mxu0 0.0
    %2738 = vmatpush.msra.mxu0 0.0
    %2739 = vmatpush.msra.mxu0 0.0
    %2740 = vmatpush.msra.mxu0 0.0
    %2741 = vmatpush.msra.mxu0 0.0
    %2742 = vmatpush.msra.mxu0 0.0
    %2743 = vmatpush.msra.mxu0 0.0
    %2744 = vmatpush.msra.mxu0 0.0
    %2745 = vmatpush.msra.mxu0 0.0
    %2746 = vmatpush.msra.mxu0 0.0
    %2747 = vmatpush.msra.mxu0 %v164
    %2748 = vmatpush.msra.mxu0 %v163
    %2749 = vmatpush.msra.mxu0 %v162
    %2750 = vmatmul.f32.gmra.mxu0 %v2732
    %v2751 = vpop.f32.mrf.mxu0
    %v2752 = vadd.f32 %v165, %v2751
    %2753 = vdwg.mxu0
    %v2754 = vmax.f32 %v2752, 0.0
    %v2756 = vsel %vm465, %v2754, 0
    %2758 = vmatpush.msra.mxu0 0.0
    %2759 = vmatpush.msra.mxu0 0.0
    %2760 = vmatpush.msra.mxu0 0.0
    %2761 = vmatpush.msra.mxu0 0.0
    %2762 = vmatpush.msra.mxu0 0.0
    %2763 = vmatpush.msra.mxu0 0.0
    %2764 = vmatpush.msra.mxu0 0.0
    %2765 = vmatpush.msra.mxu0 0.0
    %2766 = vmatpush.msra.mxu0 0.0
    %2767 = vmatpush.msra.mxu0 0.0
    %2768 = vmatpush.msra.mxu0 0.0
    %2769 = vmatpush.msra.mxu0 0.0
    %2770 = vmatpush.msra.mxu0 0.0
    %2771 = vmatpush.msra.mxu0 0.0
    %2772 = vmatpush.msra.mxu0 %v167
    %2773 = vmatpush.msra.mxu0 %v166
    %2774 = vmatmul.f32.gmra.mxu0 %v2756
    %v2775 = vpop.f32.mrf.mxu0
    %v2776 = vadd.f32 %v168, %v2775
    %2777 = vdwg.mxu0
    %v2779 = vsel %vm489, %v2776, 0
    %2781 = vmatpush.msra.mxu0 0.0
    %2782 = vmatpush.msra.mxu0 0.0
    %2783 = vmatpush.msra.mxu0 0.0
    %2784 = vmatpush.msra.mxu0 0.0
    %2785 = vmatpush.msra.mxu0 0.0
    %2786 = vmatpush.msra.mxu0 0.0
    %2787 = vmatpush.msra.mxu0 0.0
    %2788 = vmatpush.msra.mxu0 0.0
    %2789 = vmatpush.msra.mxu0 0.0
    %2790 = vmatpush.msra.mxu0 0.0
    %2791 = vmatpush.msra.mxu0 0.0
    %2792 = vmatpush.msra.mxu0 0.0
    %2793 = vmatpush.msra.mxu0 0.0
    %2794 = vmatpush.msra.mxu0 0.0
    %2795 = vmatpush.msra.mxu0 %v826
    %2796 = vmatpush.msra.mxu0 %v169
    %2797 = vmatmul.f32.gmra.mxu0 %v2779
    %v2798 = vpop.f32.mrf.mxu0
    %v2799 = vadd.f32 %v171, %v2798
    %2800 = vdwg.mxu0
    %v2801 = vmax.f32 %v2799, 0.0
    %v2803 = vsel %vm849, %v2801, 0
    %2805 = vmatpush.msra.mxu0 0.0
    %2806 = vmatpush.msra.mxu0 0.0
    %2807 = vmatpush.msra.mxu0 0.0
    %2808 = vmatpush.msra.mxu0 0.0
    %2809 = vmatpush.msra.mxu0 0.0
    %2810 = vmatpush.msra.mxu0 0.0
    %2811 = vmatpush.msra.mxu0 0.0
    %2812 = vmatpush.msra.mxu0 %v855
    %2813 = vmatpush.msra.mxu0 %v179
    %2814 = vmatpush.msra.mxu0 %v178
    %2815 = vmatpush.msra.mxu0 %v177
    %2816 = vmatpush.msra.mxu0 %v176
    %2817 = vmatpush.msra.mxu0 %v175
    %2818 = vmatpush.msra.mxu0 %v174
    %2819 = vmatpush.msra.mxu0 %v173
    %2820 = vmatpush.msra.mxu0 %v172
    %2821 = vmatmul.f32.gmra.mxu0 %v2803
    %v2822 = vpop.f32.mrf.mxu0
    %v2823 = vadd.f32 %v181, %v2822
    %2824 = vdwg.mxu0
    %v2825 = vxor.u32 %v2823, 2147483648
    %v2826 = vmul.f32 %v2825, 1.442695
    %v2827 = vpow.pop %v2826
    %v2828 = vadd.f32 %v2827, 1.0
    %v2829 = vrcp.pop %v2828
    %v2830 = vmul.f32 %v2828, %v2829
    %v2831 = vsub.f32 1.0, %v2830
    %v2832 = vmul.f32 %v2829, %v2831
    %v2833 = vadd.f32 %v2829, %v2832
    %vm2834 = vweird.f32 %v2828
    %vm2835 = vweird.f32 %v2829
    %vm2836 = vmor %vm2834, %vm2835
    %v2837 = vsel %vm2836, %v2829, %v2833
    %v2838 = vand.u32 2147483647, %v2828
    %vm2839 = vcmp.eq.f32.partialorder %v2838, 8.507059e+37
    %v2840 = vand.u32 %v2828, 2147483648
    %v2841 = vor.u32 1.1754944e-38, %v2840
    %v2842 = vsel %vm2839, %v2841, %v2837
    %v2843 = vmul.f32 1.0, %v2842
    %v2844 = vtanh.pop %v2823
    %v2845 = vmul.f32 %v2843, %v2207
    %2847 = vrot.lane.b32.xlu0 %v2844, 114
    %v2848 = vpop.permute.xlu0 %2847
    %v2850 = vmul.f32 %v2843, %v2848
    %2852 = vrot.lane.b32.xlu0 %v2850, 114
    %v2853 = vpop.permute.xlu0 %2852
    %v2855 = vadd.f32 %v2845, %v2853
    %2857 = vrot.lane.b32.xlu0 %v2855, 36
    %v2858 = vpop.permute.xlu0 %2857
    %v2860 = vsel %vm200, %v2324, %v2858
    %vm2861 = vcmask 408576
    %v2863 = vsel %vm2861, %v2860, 0
    %vm2865 = vcmask 1041408
    %v2867 = vsel %vm2865, %v188, 0
    %2869 = vmatpush.msra.mxu0 0.0
    %2870 = vmatpush.msra.mxu0 0.0
    %2871 = vmatpush.msra.mxu0 0.0
    %2872 = vmatpush.msra.mxu0 0.0
    %2873 = vmatpush.msra.mxu0 0.0
    %2874 = vmatpush.msra.mxu0 0.0
    %2875 = vmatpush.msra.mxu0 0.0
    %2876 = vmatpush.msra.mxu0 0.0
    %2877 = vmatpush.msra.mxu0 0.0
    %2878 = vmatpush.msra.mxu0 %v2867
    %2879 = vmatpush.msra.mxu0 %v187
    %2880 = vmatpush.msra.mxu0 %v186
    %2881 = vmatpush.msra.mxu0 %v185
    %2882 = vmatpush.msra.mxu0 %v184
    %2883 = vmatpush.msra.mxu0 %v183
    %2884 = vmatpush.msra.mxu0 %v182
    %2885 = vmatmul.f32.gmra.mxu0 %v2863
    %v2886 = vpop.f32.mrf.mxu0
    %v2887 = vadd.f32 %v189, %v2886
    %2888 = vdwg.mxu0
    %v2889 = vmax.f32 %v2887, 0.0
    %vm2890 = vcmask 162816
    %v2892 = vsel %vm2890, %v2889, 0
    %v2895 = vsel %vm204, %v192, 0
    %2897 = vmatpush.msra.mxu0 0.0
    %2898 = vmatpush.msra.mxu0 0.0
    %2899 = vmatpush.msra.mxu0 0.0
    %2900 = vmatpush.msra.mxu0 0.0
    %2901 = vmatpush.msra.mxu0 0.0
    %2902 = vmatpush.msra.mxu0 0.0
    %2903 = vmatpush.msra.mxu0 0.0
    %2904 = vmatpush.msra.mxu0 0.0
    %2905 = vmatpush.msra.mxu0 0.0
    %2906 = vmatpush.msra.mxu0 0.0
    %2907 = vmatpush.msra.mxu0 0.0
    %2908 = vmatpush.msra.mxu0 0.0
    %2909 = vmatpush.msra.mxu0 0.0
    %2910 = vmatpush.msra.mxu0 %v2895
    %2911 = vmatpush.msra.mxu0 %v191
    %2912 = vmatpush.msra.mxu0 %v190
    %2913 = vmatmul.f32.gmra.mxu0 %v2892
    %v2914 = vpop.f32.mrf.mxu0
    %v2915 = vadd.f32 %v193, %v2914
    %2916 = vdwg.mxu0
    %vm2917 = vcmask 1024
    %2918 = vst.msk [vmem:[%s2] sm:$0x3] %vm2917, %v2915
    // Predicated region
    $region18: #{_lambda_.1} parent=1 // pred_check
      _
    $region19: #{_lambda_.1} parent=1 // pred_check_branch
      %2920 = sbr.rel (0) target = $region21
    $region20: #{_lambda_.1} parent=1 // pred_region
      _
    $region21: #{_lambda_.1} parent=1 // pred_fallthru
      _
    // Predicated region
    $region22: #{_lambda_.1} parent=1 // pred_check
      _
    $region23: #{_lambda_.1} parent=1 // pred_check_branch
      %2922 = sbr.rel (0) target = $region25
    $region24: #{_lambda_.1} parent=1 // pred_region
      _
    $region25: #{_lambda_.1} parent=1 // pred_fallthru
      _
    %2923 = vsyncpa [#allocation3], 1
    %2924 = vsyncpa [#allocation5], 1

</llo_original>
